<compile_context>
chip_gen: v7x
topology: tpu7x:2x2x1
jax: 0.10.0
libtpu: 0.0.40
codegen_flags: <defaults>
</compile_context>

<pallas_src>
import jax
import jax.numpy as jnp
import numpy as np
from jax.experimental import pallas as pl
from jax.experimental.pallas import tpu as pltpu

# -----------------------------------------------------------------------------
# Hyper-parameters (the PyTorch module references these as module-level globals).
# -----------------------------------------------------------------------------
MINI_BOARD_DIM   = 4
MINI_BOARD_SIZE  = MINI_BOARD_DIM * MINI_BOARD_DIM      # 16
QUAD_DIM         = 2.0
X_CHANNELS       = 3                                    # channels of raw input x
EMB_ROWS         = 2                                    # rows of value_mini_board
INPUT_CHANNELS   = X_CHANNELS + 1 + EMB_ROWS            # after concat: 6
CONV_CHANNELS    = 16
CONV_KERNEL_SIZE = 3
RESIDUAL_BLOCKS  = 2
HEAD_CHANNELS    = 4
HEAD_FEATURES    = HEAD_CHANNELS * MINI_BOARD_SIZE      # 64
HIDDEN_FEATURES  = 32
BN_EPS           = 1e-5

# Kernel layout constants.
TB        = 128                                  # samples per grid step
NHEADS    = 3                                    # spi, epi, v
HEAD_C    = NHEADS * HEAD_CHANNELS               # 12 (merged 1x1 head convs)
HIDDEN3   = NHEADS * HIDDEN_FEATURES             # 96 (merged hidden FCs)
FIN_COLS  = 2 * MINI_BOARD_SIZE + 1              # 33 = [spi | epi | v]
TRUNK_F   = MINI_BOARD_SIZE * CONV_CHANNELS      # 256 trunk features per sample
IN_F      = MINI_BOARD_SIZE * INPUT_CHANNELS     # 96 input features per sample
IN_F_PAD  = 128                                  # padded to a full lane group
HEAD_F3   = MINI_BOARD_SIZE * HEAD_C             # 192 merged head features
PI_COLS   = MINI_BOARD_SIZE * MINI_BOARD_SIZE    # 256 lane-dense pi slab

WCONV_ROWS  = IN_F_PAD + 2 * RESIDUAL_BLOCKS * TRUNK_F   # 1152
WHEAD_ROWS  = TRUNK_F + HEAD_F3 + HIDDEN3                # 544
NCONST_ROWS = 8 + 2 * MINI_BOARD_SIZE                    # 8 bias rows + 32 expand rows


# -----------------------------------------------------------------------------
# Fused forward kernel: one batch tile (TB samples) per grid step.
# Activations are (TB, S*C) with feature index f = s*C + c (spatial-major).
# -----------------------------------------------------------------------------
def _fused_forward_kernel(x_ref, wconv_ref, whead_ref, const_ref, pi_ref, v_ref):
    f32, bf16 = jnp.float32, jnp.bfloat16
    ms = MINI_BOARD_SIZE

    def mm(a, w):
        return jnp.dot(a.astype(bf16), w, preferred_element_type=f32)

    # Init conv (+ folded BN + ReLU) as one dense block-Toeplitz matmul.
    a = jnp.maximum(mm(x_ref[...], wconv_ref[0:IN_F_PAD, :]) + const_ref[0:1, :], 0.0)

    # Residual tower: each 3x3 conv is a single (TB,256)@(256,256) MXU matmul.
    for blk in range(RESIDUAL_BLOCKS):
        r0 = IN_F_PAD + 2 * blk * TRUNK_F
        wa = wconv_ref[r0:r0 + TRUNK_F, :]
        wb = wconv_ref[r0 + TRUNK_F:r0 + 2 * TRUNK_F, :]
        ba = const_ref[1 + 2 * blk:2 + 2 * blk, :]
        bb = const_ref[2 + 2 * blk:3 + 2 * blk, :]
        mid = jnp.maximum(mm(a, wa) + ba, 0.0)
        a = jnp.maximum(mm(mid, wb) + bb + a, 0.0)

    # Merged 1x1 head convs (spi|epi|v), 256 -> 192, block-diagonal per pixel.
    hd = jnp.maximum(mm(a, whead_ref[0:TRUNK_F, :]) + const_ref[5:6, 0:HEAD_F3], 0.0)
    # Merged hidden FCs, 192 -> 96.
    hidden = jnp.maximum(
        mm(hd, whead_ref[TRUNK_F:TRUNK_F + HEAD_F3, 0:HIDDEN3])
        + const_ref[6:7, 0:HIDDEN3], 0.0)
    # Merged final FCs, 96 -> 33 = [spi logits | epi logits | v].
    fin = (mm(hidden, whead_ref[TRUNK_F + HEAD_F3:WHEAD_ROWS, 0:FIN_COLS])
           + const_ref[7:8, 0:FIN_COLS])

    def log_softmax(z):
        z = z - jnp.max(z, axis=-1, keepdims=True)
        return z - jnp.log(jnp.sum(jnp.exp(z), axis=-1, keepdims=True))

    spi = log_softmax(fin[:, 0:ms])
    epi = log_softmax(fin[:, ms:2 * ms])
    v = jnp.tanh(fin[:, 2 * ms:2 * ms + 1])

    # pi[n, i*16 + j] = spi[n, i] + epi[n, j], built lane-dense with one exact
    # f32 matmul against a constant 0/1 expansion matrix.
    sm = jnp.concatenate([spi, epi], axis=1)                 # (TB, 32) f32
    expand = const_ref[8:8 + 2 * ms, :]                      # (32, 256) 0/1 f32
    pi_ref[...] = jnp.dot(sm, expand, preferred_element_type=f32)
    v_ref[...] = v


# -----------------------------------------------------------------------------
# Wrapper: batch padding, sample-major lane-dense input layout, one pallas_call.
# -----------------------------------------------------------------------------
def model_forward(params, x):
    n = x.shape[0]
    ms = MINI_BOARD_SIZE
    vac = jnp.broadcast_to(params["vacant_board"], (n, 1, ms))
    emb = jnp.broadcast_to(params["embedding"], (n, EMB_ROWS, ms))
    xin = jnp.concatenate([x, vac, emb], axis=1)                  # (n, 6, 16)

    # Sample-major feature layout: f = s*INPUT_CHANNELS + c, padded to 128 lanes.
    xin = xin.transpose(0, 2, 1).reshape(n, IN_F)
    xin = jnp.pad(xin, ((0, 0), (0, IN_F_PAD - IN_F)))

    n_pad = ((n + TB - 1) // TB) * TB
    if n_pad != n:
        xin = jnp.pad(xin, ((0, n_pad - n), (0, 0)))
    g = n_pad // TB

    pi_flat, v = pl.pallas_call(
        _fused_forward_kernel,
        grid=(g,),
        in_specs=[
            pl.BlockSpec((TB, IN_F_PAD), lambda i: (i, 0)),
            pl.BlockSpec((WCONV_ROWS, TRUNK_F), lambda i: (0, 0)),
            pl.BlockSpec((WHEAD_ROWS, HEAD_F3), lambda i: (0, 0)),
            pl.BlockSpec((NCONST_ROWS, TRUNK_F), lambda i: (0, 0)),
        ],
        out_specs=(pl.BlockSpec((TB, PI_COLS), lambda i: (i, 0)),
                   pl.BlockSpec((TB, 1), lambda i: (i, 0))),
        out_shape=(jax.ShapeDtypeStruct((n_pad, PI_COLS), jnp.float32),
                   jax.ShapeDtypeStruct((n_pad, 1), jnp.float32)),
        compiler_params=pltpu.CompilerParams(
            dimension_semantics=("parallel",)),
    )(xin, params["wconv"], params["whead"], params["consts"])

    return pi_flat[:n].reshape(n, ms, ms), v[:n, 0]


# -----------------------------------------------------------------------------
# Parameter init.  BatchNorm (eval mode) is folded into conv weights/biases.
# The dict carries both the "tap" form (used by the pure-JAX reference) and the
# packed dense form (used by the kernel):
#   wconv  : (1152, 256) bf16 = [init-conv Toeplitz (rows 0:96, 96:128 zero) |
#                                 4 tower-conv Toeplitz blocks of (256,256)]
#   whead  : (544, 192)  bf16 = [merged 1x1 head convs (256,192) |
#                                 merged hidden FCs (192,96) | final FCs (96,33)]
#   consts : (40, 256)   f32  = [5 conv biases | head/hidden/final biases |
#                                 32-row 0/1 outer-sum expansion matrix]
# -----------------------------------------------------------------------------
def _np_f32(a):
    return np.asarray(a).astype(np.float32)


def _folded_conv_params(key, cin, cout, ksize):
    kw, kb, kg, kbt, km, kv = jax.random.split(key, 6)
    taps = ksize * ksize
    w = jax.random.normal(kw, (taps, cin, cout), jnp.float32) / np.sqrt(taps * cin)
    b = 0.05 * jax.random.normal(kb, (cout,), jnp.float32)
    gamma = 1.0 + 0.1 * jax.random.normal(kg, (cout,), jnp.float32)
    beta = 0.1 * jax.random.normal(kbt, (cout,), jnp.float32)
    mean = 0.1 * jax.random.normal(km, (cout,), jnp.float32)
    var = 1.0 + 0.2 * jax.random.uniform(kv, (cout,), jnp.float32)
    scale = gamma / jnp.sqrt(var + BN_EPS)
    w_folded = jnp.asarray(w * scale[None, None, :], jnp.bfloat16)
    b_folded = ((b - mean) * scale + beta).reshape(1, cout)
    if ksize == 1:
        w_folded = w_folded[0]                                   # (cin, cout)
    return w_folded, b_folded


def _dense_params(key, shape, fan_in):
    kw, kb = jax.random.split(key)
    w = jnp.asarray(jax.random.normal(kw, shape, jnp.float32) / np.sqrt(fan_in),
                    jnp.bfloat16)
    b = 0.05 * jax.random.normal(kb, (shape[-1],), jnp.float32)
    return w, b


def _toeplitz_conv(w9_bf16, cin):
    """Dense (16*cin, 256) block-Toeplitz matrix for a 3x3 same-pad conv."""
    d = MINI_BOARD_DIM
    w9 = _np_f32(w9_bf16)                                        # (9, cin, 16)
    W = np.zeros((MINI_BOARD_SIZE * cin, TRUNK_F), np.float32)
    for ho in range(d):
        for wo in range(d):
            so = ho * d + wo
            k = 0
            for dh in (-1, 0, 1):
                for dw in (-1, 0, 1):
                    hi, wi = ho + dh, wo + dw
                    if 0 <= hi < d and 0 <= wi < d:
                        si = hi * d + wi
                        W[si * cin:(si + 1) * cin,
                          so * CONV_CHANNELS:(so + 1) * CONV_CHANNELS] = w9[k]
                    k += 1
    return W


def init_params(key):
    ks = jax.random.split(key, 14)
    ms = MINI_BOARD_SIZE
    p = {}
    # Constant boards (mirrors Model._get_vacant_board_ / _get_embedding_).
    vacant = jnp.arange(ms, dtype=jnp.float32) % 2.0
    value = jnp.arange(EMB_ROWS * ms, dtype=jnp.float32).reshape(EMB_ROWS, ms)
    p["vacant_board"] = vacant[None, None, :] + 2.0               # (1, 1, 16)
    p["embedding"] = value[None, :, :] / QUAD_DIM                 # (1, 2, 16)

    p["w0"], p["b0"] = _folded_conv_params(ks[0], INPUT_CHANNELS, CONV_CHANNELS, 3)
    p["w1a"], p["b1a"] = _folded_conv_params(ks[1], CONV_CHANNELS, CONV_CHANNELS, 3)
    p["w1b"], p["b1b"] = _folded_conv_params(ks[2], CONV_CHANNELS, CONV_CHANNELS, 3)
    p["w2a"], p["b2a"] = _folded_conv_params(ks[3], CONV_CHANNELS, CONV_CHANNELS, 3)
    p["w2b"], p["b2b"] = _folded_conv_params(ks[4], CONV_CHANNELS, CONV_CHANNELS, 3)

    # Merged 1x1 head convs (spi | epi | v).
    wsh, bsh = _folded_conv_params(ks[5], CONV_CHANNELS, HEAD_CHANNELS, 1)
    weh, beh = _folded_conv_params(ks[6], CONV_CHANNELS, HEAD_CHANNELS, 1)
    wvh, bvh = _folded_conv_params(ks[7], CONV_CHANNELS, HEAD_CHANNELS, 1)
    p["wh"] = jnp.concatenate([wsh, weh, wvh], axis=1)            # (16, 12)
    p["bh"] = jnp.concatenate([bsh, beh, bvh], axis=1)            # (1, 12)

    # Merged hidden FCs, stored (spatial, head_channel, hidden).
    wsf, bsf = _dense_params(ks[8], (ms, HEAD_CHANNELS, HIDDEN_FEATURES), HEAD_FEATURES)
    wef, bef = _dense_params(ks[9], (ms, HEAD_CHANNELS, HIDDEN_FEATURES), HEAD_FEATURES)
    wvf, bvf = _dense_params(ks[10], (ms, HEAD_CHANNELS, HIDDEN_FEATURES), HEAD_FEATURES)
    wfc = jnp.zeros((ms, HEAD_C, HIDDEN3), jnp.bfloat16)
    wfc = wfc.at[:, 0:HEAD_CHANNELS, 0:HIDDEN_FEATURES].set(wsf)
    wfc = wfc.at[:, HEAD_CHANNELS:2 * HEAD_CHANNELS,
                 HIDDEN_FEATURES:2 * HIDDEN_FEATURES].set(wef)
    wfc = wfc.at[:, 2 * HEAD_CHANNELS:3 * HEAD_CHANNELS,
                 2 * HIDDEN_FEATURES:3 * HIDDEN_FEATURES].set(wvf)
    p["wfc"] = wfc                                                # (16, 12, 96)
    p["bfc"] = jnp.concatenate([bsf, bef, bvf]).reshape(1, HIDDEN3)

    # Merged final FCs (spi_fc 32->16, epi_fc 32->16, v_fc 32->1).
    wsl, bsl = _dense_params(ks[11], (HIDDEN_FEATURES, ms), HIDDEN_FEATURES)
    wel, bel = _dense_params(ks[12], (HIDDEN_FEATURES, ms), HIDDEN_FEATURES)
    wvl, bvl = _dense_params(ks[13], (HIDDEN_FEATURES, 1), HIDDEN_FEATURES)
    wfin = jnp.zeros((HIDDEN3, FIN_COLS), jnp.bfloat16)
    wfin = wfin.at[0:HIDDEN_FEATURES, 0:ms].set(wsl)
    wfin = wfin.at[HIDDEN_FEATURES:2 * HIDDEN_FEATURES, ms:2 * ms].set(wel)
    wfin = wfin.at[2 * HIDDEN_FEATURES:3 * HIDDEN_FEATURES, 2 * ms:].set(wvl)
    p["wfin"] = wfin                                              # (96, 33)
    p["bfin"] = jnp.concatenate([bsl, bel, bvl]).reshape(1, FIN_COLS)

    # ---- packed dense forms for the fused Pallas kernel ----
    wconv = np.zeros((WCONV_ROWS, TRUNK_F), np.float32)
    wconv[0:IN_F, :] = _toeplitz_conv(p["w0"], INPUT_CHANNELS)
    off = IN_F_PAD
    for w in (p["w1a"], p["w1b"], p["w2a"], p["w2b"]):
        wconv[off:off + TRUNK_F, :] = _toeplitz_conv(w, CONV_CHANNELS)
        off += TRUNK_F
    p["wconv"] = jnp.asarray(wconv, jnp.bfloat16)

    whead = np.zeros((WHEAD_ROWS, HEAD_F3), np.float32)
    wh_np = _np_f32(p["wh"])
    for s in range(ms):
        whead[s * CONV_CHANNELS:(s + 1) * CONV_CHANNELS,
              s * HEAD_C:(s + 1) * HEAD_C] = wh_np
    whead[TRUNK_F:TRUNK_F + HEAD_F3, 0:HIDDEN3] = _np_f32(p["wfc"]).reshape(HEAD_F3, HIDDEN3)
    whead[TRUNK_F + HEAD_F3:WHEAD_ROWS, 0:FIN_COLS] = _np_f32(p["wfin"])
    p["whead"] = jnp.asarray(whead, jnp.bfloat16)

    consts = np.zeros((NCONST_ROWS, TRUNK_F), np.float32)
    for row, b in enumerate((p["b0"], p["b1a"], p["b1b"], p["b2a"], p["b2b"])):
        consts[row, :] = np.tile(_np_f32(b).reshape(-1), ms)
    consts[5, 0:HEAD_F3] = np.tile(_np_f32(p["bh"]).reshape(-1), ms)
    consts[6, 0:HIDDEN3] = _np_f32(p["bfc"]).reshape(-1)
    consts[7, 0:FIN_COLS] = _np_f32(p["bfin"]).reshape(-1)
    for i in range(ms):
        for j in range(ms):
            consts[8 + i, i * ms + j] = 1.0          # spi[i] -> pi[i, j]
            consts[8 + ms + j, i * ms + j] = 1.0     # epi[j] -> pi[i, j]
    p["consts"] = jnp.asarray(consts, jnp.float32)
    return p


# -----------------------------------------------------------------------------
# Pure-JAX (non-Pallas) reference forward on the tap-form params, used to
# validate the fused kernel numerically.
# -----------------------------------------------------------------------------
def reference_forward(params, x):
    n = x.shape[0]
    ms, d = MINI_BOARD_SIZE, MINI_BOARD_DIM
    vac = jnp.broadcast_to(params["vacant_board"], (n, 1, ms))
    emb = jnp.broadcast_to(params["embedding"], (n, EMB_ROWS, ms))
    a = jnp.concatenate([x, vac, emb], axis=1).reshape(n, INPUT_CHANNELS, d, d)
    a = a.transpose(0, 2, 3, 1)                                   # NHWC

    def conv3(a_nhwc, w9, bias):
        ap = jnp.pad(a_nhwc, ((0, 0), (1, 1), (1, 1), (0, 0))).astype(jnp.bfloat16)
        out = bias.reshape(1, 1, 1, -1)
        k = 0
        for dh in (-1, 0, 1):
            for dw in (-1, 0, 1):
                patch = ap[:, 1 + dh:1 + dh + d, 1 + dw:1 + dw + d, :]
                out = out + jnp.einsum('nhwc,co->nhwo', patch, w9[k],
                                       preferred_element_type=jnp.float32)
                k += 1
        return out

    a = jax.nn.relu(conv3(a, params["w0"], params["b0"]))
    for wa, ba, wb, bb in (
        (params["w1a"], params["b1a"], params["w1b"], params["b1b"]),
        (params["w2a"], params["b2a"], params["w2b"], params["b2b"]),
    ):
        mid = jax.nn.relu(conv3(a, wa, ba))
        a = jax.nn.relu(conv3(mid, wb, bb) + a)

    hd = jax.nn.relu(
        jnp.einsum('nhwc,co->nhwo', a.astype(jnp.bfloat16), params["wh"],
                   preferred_element_type=jnp.float32)
        + params["bh"].reshape(1, 1, 1, -1))
    hd = hd.reshape(n, ms, HEAD_C)
    hidden = jax.nn.relu(
        jnp.einsum('nsc,scj->nj', hd.astype(jnp.bfloat16), params["wfc"],
                   preferred_element_type=jnp.float32) + params["bfc"])
    fin = (jnp.einsum('nk,kj->nj', hidden.astype(jnp.bfloat16), params["wfin"],
                      preferred_element_type=jnp.float32) + params["bfin"])
    spi = jax.nn.log_softmax(fin[:, :ms], axis=-1)
    epi = jax.nn.log_softmax(fin[:, ms:2 * ms], axis=-1)
    v = jnp.tanh(fin[:, 2 * ms])
    pi = spi[:, :, None] + epi[:, None, :]
    return pi, v


# -----------------------------------------------------------------------------
if __name__ == "__main__":
    key = jax.random.PRNGKey(0)
    pkey, xkey = jax.random.split(key)
    params = init_params(pkey)
    x = jax.random.normal(xkey, (2, X_CHANNELS, MINI_BOARD_SIZE), jnp.float32)

    pi, v = jax.jit(model_forward)(params, x)
    jax.block_until_ready((pi, v))

    pi_ref, v_ref = jax.jit(reference_forward)(params, x)
    jax.block_until_ready((pi_ref, v_ref))

    assert pi.shape == (2, MINI_BOARD_SIZE, MINI_BOARD_SIZE)
    assert v.shape == (2,)
    assert bool(jnp.all(jnp.isfinite(pi))) and bool(jnp.all(jnp.isfinite(v)))
    np.testing.assert_allclose(np.asarray(pi), np.asarray(pi_ref),
                               rtol=1e-2, atol=1e-2)
    np.testing.assert_allclose(np.asarray(v), np.asarray(v_ref),
                               rtol=1e-2, atol=1e-2)
    print("KERNEL_OK")
</pallas_src>

<mosaic_0001>
module attributes {stable_mosaic.version = 11 : i64} {
  func.func @_fused_forward_kernel(%arg0: i32, %arg1: memref<128x128xf32, #tpu.memory_space<vmem>>, %arg2: memref<1152x256xbf16, #tpu.memory_space<vmem>>, %arg3: memref<544x192xbf16, #tpu.memory_space<vmem>>, %arg4: memref<40x256xf32, #tpu.memory_space<vmem>>, %arg5: memref<128x256xf32, #tpu.memory_space<vmem>>, %arg6: memref<128x1xf32, #tpu.memory_space<vmem>>) attributes {dimension_semantics = [#tpu.dimension_semantics<parallel>], iteration_bounds = array<i64: 1>, scalar_prefetch = 0 : i64, scratch_operands = 0 : i64, tpu.core_type = #tpu.core_type<tc>, window_params = [{transform_indices = @transform_0, window_bounds = array<i64: 128, 128>}, {pipeline_mode = #tpu.pipeline_mode<synchronous>, transform_indices = @transform_1, window_bounds = array<i64: 1152, 256>}, {pipeline_mode = #tpu.pipeline_mode<synchronous>, transform_indices = @transform_2, window_bounds = array<i64: 544, 192>}, {pipeline_mode = #tpu.pipeline_mode<synchronous>, transform_indices = @transform_3, window_bounds = array<i64: 40, 256>}, {transform_indices = @transform_4, window_bounds = array<i64: 128, 256>}, {transform_indices = @transform_5, window_bounds = array<i64: 128, 1>}]} {
    %c0 = arith.constant 0 : index
    %c0_0 = arith.constant 0 : index
    %0 = vector.load %arg1[%c0, %c0_0] : memref<128x128xf32, #tpu.memory_space<vmem>>, vector<128x128xf32>
    %c0_1 = arith.constant 0 : index
    %c0_2 = arith.constant 0 : index
    %1 = vector.load %arg2[%c0_1, %c0_2] : memref<1152x256xbf16, #tpu.memory_space<vmem>>, vector<128x256xbf16>
    %2 = arith.truncf %0 : vector<128x128xf32> to vector<128x128xbf16>
    %cst = arith.constant dense<0.000000e+00> : vector<128x256xf32>
    %3 = tpu.matmul %2, %1, %cst {dimension_numbers = #tpu.dot_dimension_numbers<[1], [0], [0], [1], [0, 0, 1, 1], [], []>} : vector<128x128xbf16>, vector<128x256xbf16>, vector<128x256xf32> -> vector<128x256xf32>
    %c0_3 = arith.constant 0 : index
    %c0_4 = arith.constant 0 : index
    %4 = vector.load %arg4[%c0_3, %c0_4] : memref<40x256xf32, #tpu.memory_space<vmem>>, vector<1x256xf32>
    %5 = vector.broadcast %4 : vector<1x256xf32> to vector<128x256xf32>
    %6 = arith.addf %3, %5 : vector<128x256xf32>
    %cst_5 = arith.constant 0.000000e+00 : f32
    %7 = vector.broadcast %cst_5 : f32 to vector<128x256xf32>
    %8 = arith.maximumf %6, %7 : vector<128x256xf32>
    %c128 = arith.constant 128 : index
    %c0_6 = arith.constant 0 : index
    %9 = vector.load %arg2[%c128, %c0_6] : memref<1152x256xbf16, #tpu.memory_space<vmem>>, vector<256x256xbf16>
    %c384 = arith.constant 384 : index
    %c0_7 = arith.constant 0 : index
    %10 = vector.load %arg2[%c384, %c0_7] : memref<1152x256xbf16, #tpu.memory_space<vmem>>, vector<256x256xbf16>
    %c1 = arith.constant 1 : index
    %c0_8 = arith.constant 0 : index
    %11 = vector.load %arg4[%c1, %c0_8] : memref<40x256xf32, #tpu.memory_space<vmem>>, vector<1x256xf32>
    %c2 = arith.constant 2 : index
    %c0_9 = arith.constant 0 : index
    %12 = vector.load %arg4[%c2, %c0_9] : memref<40x256xf32, #tpu.memory_space<vmem>>, vector<1x256xf32>
    %13 = arith.truncf %8 : vector<128x256xf32> to vector<128x256xbf16>
    %cst_10 = arith.constant dense<0.000000e+00> : vector<128x256xf32>
    %14 = tpu.matmul %13, %9, %cst_10 {dimension_numbers = #tpu.dot_dimension_numbers<[1], [0], [0], [1], [0, 0, 1, 1], [], []>} : vector<128x256xbf16>, vector<256x256xbf16>, vector<128x256xf32> -> vector<128x256xf32>
    %15 = vector.broadcast %11 : vector<1x256xf32> to vector<128x256xf32>
    %16 = arith.addf %14, %15 : vector<128x256xf32>
    %cst_11 = arith.constant 0.000000e+00 : f32
    %17 = vector.broadcast %cst_11 : f32 to vector<128x256xf32>
    %18 = arith.maximumf %16, %17 : vector<128x256xf32>
    %19 = arith.truncf %18 : vector<128x256xf32> to vector<128x256xbf16>
    %cst_12 = arith.constant dense<0.000000e+00> : vector<128x256xf32>
    %20 = tpu.matmul %19, %10, %cst_12 {dimension_numbers = #tpu.dot_dimension_numbers<[1], [0], [0], [1], [0, 0, 1, 1], [], []>} : vector<128x256xbf16>, vector<256x256xbf16>, vector<128x256xf32> -> vector<128x256xf32>
    %21 = vector.broadcast %12 : vector<1x256xf32> to vector<128x256xf32>
    %22 = arith.addf %20, %21 : vector<128x256xf32>
    %23 = arith.addf %22, %8 : vector<128x256xf32>
    %cst_13 = arith.constant 0.000000e+00 : f32
    %24 = vector.broadcast %cst_13 : f32 to vector<128x256xf32>
    %25 = arith.maximumf %23, %24 : vector<128x256xf32>
    %c640 = arith.constant 640 : index
    %c0_14 = arith.constant 0 : index
    %26 = vector.load %arg2[%c640, %c0_14] : memref<1152x256xbf16, #tpu.memory_space<vmem>>, vector<256x256xbf16>
    %c896 = arith.constant 896 : index
    %c0_15 = arith.constant 0 : index
    %27 = vector.load %arg2[%c896, %c0_15] : memref<1152x256xbf16, #tpu.memory_space<vmem>>, vector<256x256xbf16>
    %c3 = arith.constant 3 : index
    %c0_16 = arith.constant 0 : index
    %28 = vector.load %arg4[%c3, %c0_16] : memref<40x256xf32, #tpu.memory_space<vmem>>, vector<1x256xf32>
    %c4 = arith.constant 4 : index
    %c0_17 = arith.constant 0 : index
    %29 = vector.load %arg4[%c4, %c0_17] : memref<40x256xf32, #tpu.memory_space<vmem>>, vector<1x256xf32>
    %30 = arith.truncf %25 : vector<128x256xf32> to vector<128x256xbf16>
    %cst_18 = arith.constant dense<0.000000e+00> : vector<128x256xf32>
    %31 = tpu.matmul %30, %26, %cst_18 {dimension_numbers = #tpu.dot_dimension_numbers<[1], [0], [0], [1], [0, 0, 1, 1], [], []>} : vector<128x256xbf16>, vector<256x256xbf16>, vector<128x256xf32> -> vector<128x256xf32>
    %32 = vector.broadcast %28 : vector<1x256xf32> to vector<128x256xf32>
    %33 = arith.addf %31, %32 : vector<128x256xf32>
    %cst_19 = arith.constant 0.000000e+00 : f32
    %34 = vector.broadcast %cst_19 : f32 to vector<128x256xf32>
    %35 = arith.maximumf %33, %34 : vector<128x256xf32>
    %36 = arith.truncf %35 : vector<128x256xf32> to vector<128x256xbf16>
    %cst_20 = arith.constant dense<0.000000e+00> : vector<128x256xf32>
    %37 = tpu.matmul %36, %27, %cst_20 {dimension_numbers = #tpu.dot_dimension_numbers<[1], [0], [0], [1], [0, 0, 1, 1], [], []>} : vector<128x256xbf16>, vector<256x256xbf16>, vector<128x256xf32> -> vector<128x256xf32>
    %38 = vector.broadcast %29 : vector<1x256xf32> to vector<128x256xf32>
    %39 = arith.addf %37, %38 : vector<128x256xf32>
    %40 = arith.addf %39, %25 : vector<128x256xf32>
    %cst_21 = arith.constant 0.000000e+00 : f32
    %41 = vector.broadcast %cst_21 : f32 to vector<128x256xf32>
    %42 = arith.maximumf %40, %41 : vector<128x256xf32>
    %c0_22 = arith.constant 0 : index
    %c0_23 = arith.constant 0 : index
    %43 = vector.load %arg3[%c0_22, %c0_23] : memref<544x192xbf16, #tpu.memory_space<vmem>>, vector<256x192xbf16>
    %44 = arith.truncf %42 : vector<128x256xf32> to vector<128x256xbf16>
    %cst_24 = arith.constant dense<0.000000e+00> : vector<128x192xf32>
    %45 = tpu.matmul %44, %43, %cst_24 {dimension_numbers = #tpu.dot_dimension_numbers<[1], [0], [0], [1], [0, 0, 1, 1], [], []>} : vector<128x256xbf16>, vector<256x192xbf16>, vector<128x192xf32> -> vector<128x192xf32>
    %c5 = arith.constant 5 : index
    %c0_25 = arith.constant 0 : index
    %46 = vector.load %arg4[%c5, %c0_25] : memref<40x256xf32, #tpu.memory_space<vmem>>, vector<1x192xf32>
    %47 = vector.broadcast %46 : vector<1x192xf32> to vector<128x192xf32>
    %48 = arith.addf %45, %47 : vector<128x192xf32>
    %cst_26 = arith.constant 0.000000e+00 : f32
    %49 = vector.broadcast %cst_26 : f32 to vector<128x192xf32>
    %50 = arith.maximumf %48, %49 : vector<128x192xf32>
    %c256 = arith.constant 256 : index
    %c0_27 = arith.constant 0 : index
    %51 = vector.load %arg3[%c256, %c0_27] : memref<544x192xbf16, #tpu.memory_space<vmem>>, vector<192x96xbf16>
    %52 = arith.truncf %50 : vector<128x192xf32> to vector<128x192xbf16>
    %cst_28 = arith.constant dense<0.000000e+00> : vector<128x96xf32>
    %53 = tpu.matmul %52, %51, %cst_28 {dimension_numbers = #tpu.dot_dimension_numbers<[1], [0], [0], [1], [0, 0, 1, 1], [], []>} : vector<128x192xbf16>, vector<192x96xbf16>, vector<128x96xf32> -> vector<128x96xf32>
    %c6 = arith.constant 6 : index
    %c0_29 = arith.constant 0 : index
    %54 = vector.load %arg4[%c6, %c0_29] : memref<40x256xf32, #tpu.memory_space<vmem>>, vector<1x96xf32>
    %55 = vector.broadcast %54 : vector<1x96xf32> to vector<128x96xf32>
    %56 = arith.addf %53, %55 : vector<128x96xf32>
    %cst_30 = arith.constant 0.000000e+00 : f32
    %57 = vector.broadcast %cst_30 : f32 to vector<128x96xf32>
    %58 = arith.maximumf %56, %57 : vector<128x96xf32>
    %c448 = arith.constant 448 : index
    %c0_31 = arith.constant 0 : index
    %59 = vector.load %arg3[%c448, %c0_31] : memref<544x192xbf16, #tpu.memory_space<vmem>>, vector<96x33xbf16>
    %60 = arith.truncf %58 : vector<128x96xf32> to vector<128x96xbf16>
    %cst_32 = arith.constant dense<0.000000e+00> : vector<128x33xf32>
    %61 = tpu.matmul %60, %59, %cst_32 {dimension_numbers = #tpu.dot_dimension_numbers<[1], [0], [0], [1], [0, 0, 1, 1], [], []>} : vector<128x96xbf16>, vector<96x33xbf16>, vector<128x33xf32> -> vector<128x33xf32>
    %c7 = arith.constant 7 : index
    %c0_33 = arith.constant 0 : index
    %62 = vector.load %arg4[%c7, %c0_33] : memref<40x256xf32, #tpu.memory_space<vmem>>, vector<1x33xf32>
    %63 = vector.broadcast %62 : vector<1x33xf32> to vector<128x33xf32>
    %64 = arith.addf %61, %63 : vector<128x33xf32>
    %65 = vector.extract_strided_slice %64 {offsets = [0, 0], sizes = [128, 16], strides = [1, 1]} : vector<128x33xf32> to vector<128x16xf32>
    %cst_34 = arith.constant dense<0xFF800000> : vector<128xf32>
    %66 = vector.multi_reduction <maximumf>, %65, %cst_34 [1] : vector<128x16xf32> to vector<128xf32>
    %67 = vector.shape_cast %66 : vector<128xf32> to vector<128x1xf32>
    %68 = vector.broadcast %67 : vector<128x1xf32> to vector<128x16xf32>
    %69 = arith.subf %65, %68 : vector<128x16xf32>
    %70 = math.exp %69 : vector<128x16xf32>
    %cst_35 = arith.constant dense<0.000000e+00> : vector<128xf32>
    %71 = vector.multi_reduction <add>, %70, %cst_35 [1] : vector<128x16xf32> to vector<128xf32>
    %72 = vector.shape_cast %71 : vector<128xf32> to vector<128x1xf32>
    %73 = math.log %72 : vector<128x1xf32>
    %74 = vector.broadcast %73 : vector<128x1xf32> to vector<128x16xf32>
    %75 = arith.subf %69, %74 : vector<128x16xf32>
    %76 = vector.extract_strided_slice %64 {offsets = [0, 16], sizes = [128, 16], strides = [1, 1]} : vector<128x33xf32> to vector<128x16xf32>
    %cst_36 = arith.constant dense<0xFF800000> : vector<128xf32>
    %77 = vector.multi_reduction <maximumf>, %76, %cst_36 [1] : vector<128x16xf32> to vector<128xf32>
    %78 = vector.shape_cast %77 : vector<128xf32> to vector<128x1xf32>
    %79 = vector.broadcast %78 : vector<128x1xf32> to vector<128x16xf32>
    %80 = arith.subf %76, %79 : vector<128x16xf32>
    %81 = math.exp %80 : vector<128x16xf32>
    %cst_37 = arith.constant dense<0.000000e+00> : vector<128xf32>
    %82 = vector.multi_reduction <add>, %81, %cst_37 [1] : vector<128x16xf32> to vector<128xf32>
    %83 = vector.shape_cast %82 : vector<128xf32> to vector<128x1xf32>
    %84 = math.log %83 : vector<128x1xf32>
    %85 = vector.broadcast %84 : vector<128x1xf32> to vector<128x16xf32>
    %86 = arith.subf %80, %85 : vector<128x16xf32>
    %87 = vector.extract_strided_slice %64 {offsets = [0, 32], sizes = [128, 1], strides = [1, 1]} : vector<128x33xf32> to vector<128x1xf32>
    %88 = math.tanh %87 : vector<128x1xf32>
    %89 = tpu.concatenate %75, %86 in 1 : vector<128x16xf32>, vector<128x16xf32> -> vector<128x32xf32>
    %c8 = arith.constant 8 : index
    %c0_38 = arith.constant 0 : index
    %90 = vector.load %arg4[%c8, %c0_38] : memref<40x256xf32, #tpu.memory_space<vmem>>, vector<32x256xf32>
    %cst_39 = arith.constant dense<0.000000e+00> : vector<128x256xf32>
    %91 = tpu.matmul %89, %90, %cst_39 {dimension_numbers = #tpu.dot_dimension_numbers<[1], [0], [0], [1], [0, 0, 1, 1], [], []>} : vector<128x32xf32>, vector<32x256xf32>, vector<128x256xf32> -> vector<128x256xf32>
    %c0_40 = arith.constant 0 : index
    %c0_41 = arith.constant 0 : index
    %92 = vector.load %arg5[%c0_40, %c0_41] : memref<128x256xf32, #tpu.memory_space<vmem>>, vector<128x256xf32>
    tpu.vector_store %arg5[%c0_40, %c0_41], %91 {strides = array<i32>} : memref<128x256xf32, #tpu.memory_space<vmem>>, vector<128x256xf32>,
    %c0_42 = arith.constant 0 : index
    %c0_43 = arith.constant 0 : index
    %93 = vector.load %arg6[%c0_42, %c0_43] : memref<128x1xf32, #tpu.memory_space<vmem>>, vector<128x1xf32>
    tpu.vector_store %arg6[%c0_42, %c0_43], %88 {strides = array<i32>} : memref<128x1xf32, #tpu.memory_space<vmem>>, vector<128x1xf32>,
    return
  }
  func.func @transform_0(%arg0: i32) -> (i32, i32) {
    %c0_i32 = arith.constant 0 : i32
    %c0_i32_0 = arith.constant 0 : i32
    return %arg0, %c0_i32 : i32, i32
  }
  func.func @transform_1(%arg0: i32) -> (i32, i32) {
    %c0_i32 = arith.constant 0 : i32
    %c0_i32_0 = arith.constant 0 : i32
    %c0_i32_1 = arith.constant 0 : i32
    return %c0_i32, %c0_i32_0 : i32, i32
  }
  func.func @transform_2(%arg0: i32) -> (i32, i32) {
    %c0_i32 = arith.constant 0 : i32
    %c0_i32_0 = arith.constant 0 : i32
    %c0_i32_1 = arith.constant 0 : i32
    return %c0_i32, %c0_i32_0 : i32, i32
  }
  func.func @transform_3(%arg0: i32) -> (i32, i32) {
    %c0_i32 = arith.constant 0 : i32
    %c0_i32_0 = arith.constant 0 : i32
    %c0_i32_1 = arith.constant 0 : i32
    return %c0_i32, %c0_i32_0 : i32, i32
  }
  func.func @transform_4(%arg0: i32) -> (i32, i32) {
    %c0_i32 = arith.constant 0 : i32
    %c0_i32_0 = arith.constant 0 : i32
    return %arg0, %c0_i32 : i32, i32
  }
  func.func @transform_5(%arg0: i32) -> (i32, i32) {
    %c0_i32 = arith.constant 0 : i32
    %c0_i32_0 = arith.constant 0 : i32
    return %arg0, %c0_i32 : i32, i32
  }
}

</mosaic_0001>

<llo_original>
// kernel: model_forward.1
$region0: #{model_forward.1}
  #allocation0 [shape = 'u32[]', space=smem, size = 0x4, offset = 0x4, fixed_abs, tag = 'smem constant byte address 0x4 - core index']
  #allocation1 [shape = 'u32[144,128]{1,0:T(1,128)}', space=vmem, size = 0x12000, scoped, tag = 'internal scratch']
  %s0 = inlined_call_operand.vmem [shape: f32[128,128], index: 0, kind: input, shape index: {}]
  %s1 = inlined_call_operand.vmem [shape: bf16[1152,256], index: 1, kind: input, shape index: {}]
  %s2 = inlined_call_operand.vmem [shape: bf16[544,192], index: 2, kind: input, shape index: {}]
  %s3 = inlined_call_operand.vmem [shape: f32[40,256], index: 3, kind: input, shape index: {}]
  %s4 = inlined_call_operand.vmem [shape: f32[128,256], index: 4, kind: output, shape index: {0}]
  %s5 = inlined_call_operand.vmem [shape: f32[128,1], index: 5, kind: output, shape index: {1}]
  %6 = xla_tuple %s4, %s5
  %s7 = sld [smem:[#allocation0]]
  $region34: #{model_forward.1} parent=0
    _
  %s9 = ssub.s32 1, %s7
  %s10 = scalar_select 0, %s9, %s7
  // Predicated region
  $region2: #{model_forward.1} parent=0 // pred_check
    _
  $region3: #{model_forward.1} parent=0 // pred_check_branch
    %12 = sbr.rel (0) target = $region5
  $region4: #{model_forward.1} parent=0 // pred_region
    _
  $region5: #{model_forward.1} parent=0 // pred_fallthru
    _
  // Predicated region
  $region6: #{model_forward.1} parent=0 // pred_check
    _
  $region7: #{model_forward.1} parent=0 // pred_check_branch
    %14 = sbr.rel (0) target = $region9
  $region8: #{model_forward.1} parent=0 // pred_region
    _
  $region9: #{model_forward.1} parent=0 // pred_fallthru
    _
  // Predicated region
  $region10: #{model_forward.1} parent=0 // pred_check
    _
  $region11: #{model_forward.1} parent=0 // pred_check_branch
    %16 = sbr.rel (0) target = $region13
  $region12: #{model_forward.1} parent=0 // pred_region
    _
  $region13: #{model_forward.1} parent=0 // pred_fallthru
    _
  // Predicated region
  $region14: #{model_forward.1} parent=0 // pred_check
    _
  $region15: #{model_forward.1} parent=0 // pred_check_branch
    %18 = sbr.rel (0) target = $region17
  $region16: #{model_forward.1} parent=0 // pred_region
    _
  $region17: #{model_forward.1} parent=0 // pred_fallthru
    _
  %v20 = vld [vmem:[%s0] sm:$0xff]
  %v21 = vld [vmem:[%s0 + $0x8] sm:$0xff]
  %v22 = vld [vmem:[%s0 + $0x10] sm:$0xff]
  %v23 = vld [vmem:[%s0 + $0x18] sm:$0xff]
  %v24 = vld [vmem:[%s0 + $0x20] sm:$0xff]
  %v25 = vld [vmem:[%s0 + $0x28] sm:$0xff]
  %v26 = vld [vmem:[%s0 + $0x30] sm:$0xff]
  %v27 = vld [vmem:[%s0 + $0x38] sm:$0xff]
  %v28 = vld [vmem:[%s0 + $0x40] sm:$0xff]
  %v29 = vld [vmem:[%s0 + $0x48] sm:$0xff]
  %v30 = vld [vmem:[%s0 + $0x50] sm:$0xff]
  %v31 = vld [vmem:[%s0 + $0x58] sm:$0xff]
  %v32 = vld [vmem:[%s0 + $0x60] sm:$0xff]
  %v33 = vld [vmem:[%s0 + $0x68] sm:$0xff]
  %v34 = vld [vmem:[%s0 + $0x70] sm:$0xff]
  %v35 = vld [vmem:[%s0 + $0x78] sm:$0xff]
  %v36 = vld [vmem:[%s1] sm:$0xff]
  %v37 = vld [vmem:[%s1 + $0x8] sm:$0xff]
  %v38 = vld [vmem:[%s1 + $0x10] sm:$0xff]
  %v39 = vld [vmem:[%s1 + $0x18] sm:$0xff]
  %v40 = vld [vmem:[%s1 + $0x20] sm:$0xff]
  %v41 = vld [vmem:[%s1 + $0x28] sm:$0xff]
  %v42 = vld [vmem:[%s1 + $0x30] sm:$0xff]
  %v43 = vld [vmem:[%s1 + $0x38] sm:$0xff]
  %v44 = vld [vmem:[%s1 + $0x40] sm:$0xff]
  %v45 = vld [vmem:[%s1 + $0x48] sm:$0xff]
  %v46 = vld [vmem:[%s1 + $0x50] sm:$0xff]
  %v47 = vld [vmem:[%s1 + $0x58] sm:$0xff]
  %v48 = vld [vmem:[%s1 + $0x60] sm:$0xff]
  %v49 = vld [vmem:[%s1 + $0x68] sm:$0xff]
  %v50 = vld [vmem:[%s1 + $0x70] sm:$0xff]
  %v51 = vld [vmem:[%s1 + $0x78] sm:$0xff]
  %v52 = vpack.c.bf16 %v21, %v20
  %v53 = vpack.c.bf16 %v23, %v22
  %v54 = vpack.c.bf16 %v25, %v24
  %v55 = vpack.c.bf16 %v27, %v26
  %v56 = vpack.c.bf16 %v29, %v28
  %v57 = vpack.c.bf16 %v31, %v30
  %v58 = vpack.c.bf16 %v33, %v32
  %v59 = vpack.c.bf16 %v35, %v34
  %v60 = vld [vmem:[%s3] ss:$8 sm:$0x3]
  %v62 = vlaneseq
  %v63 = vshrl.u32 %v62, 7
  %v64 = vsub.s32 0, %v63
  %v65 = vrot.slane %v60, %v64
  %v66 = vlaneseq
  %v67 = vshrl.u32 %v66, 7
  %v68 = vsub.s32 1, %v67
  %v69 = vrot.slane %v60, %v68
  %v88 = vunpack.c.l.b16 %v36
  %v89 = vunpack.c.h.b16 %v36
  %v90 = vunpack.c.l.b16 %v37
  %v91 = vunpack.c.h.b16 %v37
  %v92 = vunpack.c.l.b16 %v38
  %v93 = vunpack.c.h.b16 %v38
  %v94 = vunpack.c.l.b16 %v39
  %v95 = vunpack.c.h.b16 %v39
  %v96 = vunpack.c.l.b16 %v40
  %v97 = vunpack.c.h.b16 %v40
  %v98 = vunpack.c.l.b16 %v41
  %v99 = vunpack.c.h.b16 %v41
  %v100 = vunpack.c.l.b16 %v42
  %v101 = vunpack.c.h.b16 %v42
  %v102 = vunpack.c.l.b16 %v43
  %v103 = vunpack.c.h.b16 %v43
  %v104 = vunpack.c.l.b16 %v44
  %v105 = vunpack.c.h.b16 %v44
  %v106 = vunpack.c.l.b16 %v45
  %v107 = vunpack.c.h.b16 %v45
  %v108 = vunpack.c.l.b16 %v46
  %v109 = vunpack.c.h.b16 %v46
  %v110 = vunpack.c.l.b16 %v47
  %v111 = vunpack.c.h.b16 %v47
  %v112 = vunpack.c.l.b16 %v48
  %v113 = vunpack.c.h.b16 %v48
  %v114 = vunpack.c.l.b16 %v49
  %v115 = vunpack.c.h.b16 %v49
  %v116 = vunpack.c.l.b16 %v50
  %v117 = vunpack.c.h.b16 %v50
  %v118 = vunpack.c.l.b16 %v51
  %v119 = vunpack.c.h.b16 %v51
  %v120 = vpack.c.b16 %v90, %v88
  %v121 = vpack.c.b16 %v91, %v89
  %v122 = vpack.c.b16 %v94, %v92
  %v123 = vpack.c.b16 %v95, %v93
  %v124 = vpack.c.b16 %v98, %v96
  %v125 = vpack.c.b16 %v99, %v97
  %v126 = vpack.c.b16 %v102, %v100
  %v127 = vpack.c.b16 %v103, %v101
  %v128 = vpack.c.b16 %v106, %v104
  %v129 = vpack.c.b16 %v107, %v105
  %v130 = vpack.c.b16 %v110, %v108
  %v131 = vpack.c.b16 %v111, %v109
  %v132 = vpack.c.b16 %v114, %v112
  %v133 = vpack.c.b16 %v115, %v113
  %v134 = vpack.c.b16 %v118, %v116
  %v135 = vpack.c.b16 %v119, %v117
  %152 = vmatprep.subr.bf16.mxu0 %v121
  %153 = vmatpush1.bf16.msra.mxu0 %v120
  %154 = vmatprep.subr.bf16.mxu0 %v123
  %155 = vmatpush1.bf16.msra.mxu0 %v122
  %156 = vmatprep.subr.bf16.mxu0 %v125
  %157 = vmatpush1.bf16.msra.mxu0 %v124
  %158 = vmatprep.subr.bf16.mxu0 %v127
  %159 = vmatpush1.bf16.msra.mxu0 %v126
  %160 = vmatprep.subr.bf16.mxu0 %v129
  %161 = vmatpush1.bf16.msra.mxu0 %v128
  %162 = vmatprep.subr.bf16.mxu0 %v131
  %163 = vmatpush1.bf16.msra.mxu0 %v130
  %164 = vmatprep.subr.bf16.mxu0 %v133
  %165 = vmatpush1.bf16.msra.mxu0 %v132
  %166 = vmatprep.subr.bf16.mxu0 %v135
  %167 = vmatpush1.bf16.msra.mxu0 %v134
  %168 = vmatprep.subr.bf16.mxu0 0
  %169 = vmatpush1.bf16.msra.mxu0 0
  %170 = vmatprep.subr.bf16.mxu0 0
  %171 = vmatpush1.bf16.msra.mxu0 0
  %172 = vmatprep.subr.bf16.mxu0 0
  %173 = vmatpush1.bf16.msra.mxu0 0
  %174 = vmatprep.subr.bf16.mxu0 0
  %175 = vmatpush1.bf16.msra.mxu0 0
  %176 = vmatprep.subr.bf16.mxu0 0
  %177 = vmatpush1.bf16.msra.mxu0 0
  %178 = vmatprep.subr.bf16.mxu0 0
  %179 = vmatpush1.bf16.msra.mxu0 0
  %180 = vmatprep.subr.bf16.mxu0 0
  %181 = vmatpush1.bf16.msra.mxu0 0
  %182 = vmatprep.subr.bf16.mxu0 0
  %183 = vmatpush1.bf16.msra.mxu0 0
  %184 = vmatprep.mubr.bf16.mxu0 0
  %185 = vmatmul.mubr.bf16.gmra.mrb[0].mxu0 %v52
  %v186 = vpop.f32.mrb[0].mxu0
  %v187 = vadd.f32 %v65, %v186
  %v188 = vpop.f32.mrb[0].mxu0
  %v189 = vadd.f32 %v69, %v188
  %v190 = vpop.f32.mrb[0].mxu0
  %v191 = vadd.f32 %v65, %v190
  %v192 = vpop.f32.mrb[0].mxu0
  %v193 = vadd.f32 %v69, %v192
  %194 = vmatprep.mubr.bf16.mxu0 0
  %195 = vmatmul.mubr.bf16.gmra.mrb[0].mxu0 %v53
  %v196 = vpop.f32.mrb[0].mxu0
  %v197 = vadd.f32 %v65, %v196
  %v198 = vpop.f32.mrb[0].mxu0
  %v199 = vadd.f32 %v69, %v198
  %v200 = vpop.f32.mrb[0].mxu0
  %v201 = vadd.f32 %v65, %v200
  %v202 = vpop.f32.mrb[0].mxu0
  %v203 = vadd.f32 %v69, %v202
  %204 = vmatprep.mubr.bf16.mxu0 0
  %205 = vmatmul.mubr.bf16.gmra.mrb[0].mxu0 %v54
  %v206 = vpop.f32.mrb[0].mxu0
  %v207 = vadd.f32 %v65, %v206
  %v208 = vpop.f32.mrb[0].mxu0
  %v209 = vadd.f32 %v69, %v208
  %v210 = vpop.f32.mrb[0].mxu0
  %v211 = vadd.f32 %v65, %v210
  %v212 = vpop.f32.mrb[0].mxu0
  %v213 = vadd.f32 %v69, %v212
  %214 = vmatprep.mubr.bf16.mxu0 0
  %215 = vmatmul.mubr.bf16.gmra.mrb[0].mxu0 %v55
  %v216 = vpop.f32.mrb[0].mxu0
  %v217 = vadd.f32 %v65, %v216
  %v218 = vpop.f32.mrb[0].mxu0
  %v219 = vadd.f32 %v69, %v218
  %v220 = vpop.f32.mrb[0].mxu0
  %v221 = vadd.f32 %v65, %v220
  %v222 = vpop.f32.mrb[0].mxu0
  %v223 = vadd.f32 %v69, %v222
  %224 = vmatprep.mubr.bf16.mxu0 0
  %225 = vmatmul.mubr.bf16.gmra.mrb[0].mxu0 %v56
  %v226 = vpop.f32.mrb[0].mxu0
  %v227 = vadd.f32 %v65, %v226
  %v228 = vpop.f32.mrb[0].mxu0
  %v229 = vadd.f32 %v69, %v228
  %v230 = vpop.f32.mrb[0].mxu0
  %v231 = vadd.f32 %v65, %v230
  %v232 = vpop.f32.mrb[0].mxu0
  %v233 = vadd.f32 %v69, %v232
  %234 = vmatprep.mubr.bf16.mxu0 0
  %235 = vmatmul.mubr.bf16.gmra.mrb[0].mxu0 %v57
  %v236 = vpop.f32.mrb[0].mxu0
  %v237 = vadd.f32 %v65, %v236
  %v238 = vpop.f32.mrb[0].mxu0
  %v239 = vadd.f32 %v69, %v238
  %v240 = vpop.f32.mrb[0].mxu0
  %v241 = vadd.f32 %v65, %v240
  %v242 = vpop.f32.mrb[0].mxu0
  %v243 = vadd.f32 %v69, %v242
  %244 = vmatprep.mubr.bf16.mxu0 0
  %245 = vmatmul.mubr.bf16.gmra.mrb[0].mxu0 %v58
  %v246 = vpop.f32.mrb[0].mxu0
  %v247 = vadd.f32 %v65, %v246
  %v248 = vpop.f32.mrb[0].mxu0
  %v249 = vadd.f32 %v69, %v248
  %v250 = vpop.f32.mrb[0].mxu0
  %v251 = vadd.f32 %v65, %v250
  %v252 = vpop.f32.mrb[0].mxu0
  %v253 = vadd.f32 %v69, %v252
  %254 = vmatprep.mubr.bf16.mxu0 0
  %255 = vmatmul.mubr.bf16.gmra.mrb[0].mxu0 %v59
  %v256 = vpop.f32.mrb[0].mxu0
  %v257 = vadd.f32 %v65, %v256
  %v258 = vpop.f32.mrb[0].mxu0
  %v259 = vadd.f32 %v69, %v258
  %v260 = vpop.f32.mrb[0].mxu0
  %v261 = vadd.f32 %v65, %v260
  %v262 = vpop.f32.mrb[0].mxu0
  %v263 = vadd.f32 %v69, %v262
  %264 = vdwg.mxu0
  %v265 = vmax.f32 %v187, 0.0
  %v266 = vmax.f32 %v189, 0.0
  %v267 = vmax.f32 %v191, 0.0
  %v268 = vmax.f32 %v193, 0.0
  %v269 = vmax.f32 %v197, 0.0
  %v270 = vmax.f32 %v199, 0.0
  %v271 = vmax.f32 %v201, 0.0
  %v272 = vmax.f32 %v203, 0.0
  %v273 = vmax.f32 %v207, 0.0
  %v274 = vmax.f32 %v209, 0.0
  %v275 = vmax.f32 %v211, 0.0
  %v276 = vmax.f32 %v213, 0.0
  %v277 = vmax.f32 %v217, 0.0
  %v278 = vmax.f32 %v219, 0.0
  %v279 = vmax.f32 %v221, 0.0
  %v280 = vmax.f32 %v223, 0.0
  %v281 = vmax.f32 %v227, 0.0
  %v282 = vmax.f32 %v229, 0.0
  %v283 = vmax.f32 %v231, 0.0
  %v284 = vmax.f32 %v233, 0.0
  %v285 = vmax.f32 %v237, 0.0
  %v286 = vmax.f32 %v239, 0.0
  %v287 = vmax.f32 %v241, 0.0
  %v288 = vmax.f32 %v243, 0.0
  %v289 = vmax.f32 %v247, 0.0
  %v290 = vmax.f32 %v249, 0.0
  %v291 = vmax.f32 %v251, 0.0
  %v292 = vmax.f32 %v253, 0.0
  %v293 = vmax.f32 %v257, 0.0
  %v294 = vmax.f32 %v259, 0.0
  %v295 = vmax.f32 %v261, 0.0
  %v296 = vmax.f32 %v263, 0.0
  %v297 = vld [vmem:[%s1 + $0x80] sm:$0xff]
  %v298 = vld [vmem:[%s1 + $0x88] sm:$0xff]
  %v299 = vld [vmem:[%s1 + $0x90] sm:$0xff]
  %v300 = vld [vmem:[%s1 + $0x98] sm:$0xff]
  %v301 = vld [vmem:[%s1 + $0xa0] sm:$0xff]
  %v302 = vld [vmem:[%s1 + $0xa8] sm:$0xff]
  %v303 = vld [vmem:[%s1 + $0xb0] sm:$0xff]
  %v304 = vld [vmem:[%s1 + $0xb8] sm:$0xff]
  %v305 = vld [vmem:[%s1 + $0xc0] sm:$0xff]
  %v306 = vld [vmem:[%s1 + $0xc8] sm:$0xff]
  %v307 = vld [vmem:[%s1 + $0xd0] sm:$0xff]
  %v308 = vld [vmem:[%s1 + $0xd8] sm:$0xff]
  %v309 = vld [vmem:[%s1 + $0xe0] sm:$0xff]
  %v310 = vld [vmem:[%s1 + $0xe8] sm:$0xff]
  %v311 = vld [vmem:[%s1 + $0xf0] sm:$0xff]
  %v312 = vld [vmem:[%s1 + $0xf8] sm:$0xff]
  %v313 = vld [vmem:[%s1 + $0x100] sm:$0xff]
  %v314 = vld [vmem:[%s1 + $0x108] sm:$0xff]
  %v315 = vld [vmem:[%s1 + $0x110] sm:$0xff]
  %v316 = vld [vmem:[%s1 + $0x118] sm:$0xff]
  %v317 = vld [vmem:[%s1 + $0x120] sm:$0xff]
  %v318 = vld [vmem:[%s1 + $0x128] sm:$0xff]
  %v319 = vld [vmem:[%s1 + $0x130] sm:$0xff]
  %v320 = vld [vmem:[%s1 + $0x138] sm:$0xff]
  %v321 = vld [vmem:[%s1 + $0x140] sm:$0xff]
  %v322 = vld [vmem:[%s1 + $0x148] sm:$0xff]
  %v323 = vld [vmem:[%s1 + $0x150] sm:$0xff]
  %v324 = vld [vmem:[%s1 + $0x158] sm:$0xff]
  %v325 = vld [vmem:[%s1 + $0x160] sm:$0xff]
  %v326 = vld [vmem:[%s1 + $0x168] sm:$0xff]
  %v327 = vld [vmem:[%s1 + $0x170] sm:$0xff]
  %v328 = vld [vmem:[%s1 + $0x178] sm:$0xff]
  %v329 = vld [vmem:[%s1 + $0x180] sm:$0xff]
  %v330 = vld [vmem:[%s1 + $0x188] sm:$0xff]
  %v331 = vld [vmem:[%s1 + $0x190] sm:$0xff]
  %v332 = vld [vmem:[%s1 + $0x198] sm:$0xff]
  %v333 = vld [vmem:[%s1 + $0x1a0] sm:$0xff]
  %v334 = vld [vmem:[%s1 + $0x1a8] sm:$0xff]
  %v335 = vld [vmem:[%s1 + $0x1b0] sm:$0xff]
  %v336 = vld [vmem:[%s1 + $0x1b8] sm:$0xff]
  %v337 = vld [vmem:[%s1 + $0x1c0] sm:$0xff]
  %v338 = vld [vmem:[%s1 + $0x1c8] sm:$0xff]
  %v339 = vld [vmem:[%s1 + $0x1d0] sm:$0xff]
  %v340 = vld [vmem:[%s1 + $0x1d8] sm:$0xff]
  %v341 = vld [vmem:[%s1 + $0x1e0] sm:$0xff]
  %v342 = vld [vmem:[%s1 + $0x1e8] sm:$0xff]
  %v343 = vld [vmem:[%s1 + $0x1f0] sm:$0xff]
  %v344 = vld [vmem:[%s1 + $0x1f8] sm:$0xff]
  %v345 = vld [vmem:[%s1 + $0x200] sm:$0xff]
  %v346 = vld [vmem:[%s1 + $0x208] sm:$0xff]
  %v347 = vld [vmem:[%s1 + $0x210] sm:$0xff]
  %v348 = vld [vmem:[%s1 + $0x218] sm:$0xff]
  %v349 = vld [vmem:[%s1 + $0x220] sm:$0xff]
  %v350 = vld [vmem:[%s1 + $0x228] sm:$0xff]
  %v351 = vld [vmem:[%s1 + $0x230] sm:$0xff]
  %v352 = vld [vmem:[%s1 + $0x238] sm:$0xff]
  %v353 = vld [vmem:[%s1 + $0x240] sm:$0xff]
  %v354 = vld [vmem:[%s1 + $0x248] sm:$0xff]
  %v355 = vld [vmem:[%s1 + $0x250] sm:$0xff]
  %v356 = vld [vmem:[%s1 + $0x258] sm:$0xff]
  %v357 = vld [vmem:[%s1 + $0x260] sm:$0xff]
  %v358 = vld [vmem:[%s1 + $0x268] sm:$0xff]
  %v359 = vld [vmem:[%s1 + $0x270] sm:$0xff]
  %v360 = vld [vmem:[%s1 + $0x278] sm:$0xff]
  %s361 = scalar_lea.vmem %s3, 1
  %v362 = vld [vmem:[%s361] ss:$8 sm:$0x3]
  %s363 = scalar_lea.vmem %s3, 2
  %v364 = vld [vmem:[%s363] ss:$8 sm:$0x3]
  %v365 = vpack.c.bf16 %v267, %v265
  %v366 = vpack.c.bf16 %v268, %v266
  %v367 = vpack.c.bf16 %v271, %v269
  %v368 = vpack.c.bf16 %v272, %v270
  %v369 = vpack.c.bf16 %v275, %v273
  %v370 = vpack.c.bf16 %v276, %v274
  %v371 = vpack.c.bf16 %v279, %v277
  %v372 = vpack.c.bf16 %v280, %v278
  %v373 = vpack.c.bf16 %v283, %v281
  %v374 = vpack.c.bf16 %v284, %v282
  %v375 = vpack.c.bf16 %v287, %v285
  %v376 = vpack.c.bf16 %v288, %v286
  %v377 = vpack.c.bf16 %v291, %v289
  %v378 = vpack.c.bf16 %v292, %v290
  %v379 = vpack.c.bf16 %v295, %v293
  %v380 = vpack.c.bf16 %v296, %v294
  %v382 = vlaneseq
  %v383 = vshrl.u32 %v382, 7
  %v384 = vsub.s32 0, %v383
  %v385 = vrot.slane %v362, %v384
  %v386 = vlaneseq
  %v387 = vshrl.u32 %v386, 7
  %v388 = vsub.s32 1, %v387
  %v389 = vrot.slane %v362, %v388
  %v424 = vunpack.c.l.b16 %v297
  %v425 = vunpack.c.h.b16 %v297
  %v426 = vunpack.c.l.b16 %v298
  %v427 = vunpack.c.h.b16 %v298
  %v428 = vunpack.c.l.b16 %v299
  %v429 = vunpack.c.h.b16 %v299
  %v430 = vunpack.c.l.b16 %v300
  %v431 = vunpack.c.h.b16 %v300
  %v432 = vunpack.c.l.b16 %v301
  %v433 = vunpack.c.h.b16 %v301
  %v434 = vunpack.c.l.b16 %v302
  %v435 = vunpack.c.h.b16 %v302
  %v436 = vunpack.c.l.b16 %v303
  %v437 = vunpack.c.h.b16 %v303
  %v438 = vunpack.c.l.b16 %v304
  %v439 = vunpack.c.h.b16 %v304
  %v440 = vunpack.c.l.b16 %v305
  %v441 = vunpack.c.h.b16 %v305
  %v442 = vunpack.c.l.b16 %v306
  %v443 = vunpack.c.h.b16 %v306
  %v444 = vunpack.c.l.b16 %v307
  %v445 = vunpack.c.h.b16 %v307
  %v446 = vunpack.c.l.b16 %v308
  %v447 = vunpack.c.h.b16 %v308
  %v448 = vunpack.c.l.b16 %v309
  %v449 = vunpack.c.h.b16 %v309
  %v450 = vunpack.c.l.b16 %v310
  %v451 = vunpack.c.h.b16 %v310
  %v452 = vunpack.c.l.b16 %v311
  %v453 = vunpack.c.h.b16 %v311
  %v454 = vunpack.c.l.b16 %v312
  %v455 = vunpack.c.h.b16 %v312
  %v456 = vunpack.c.l.b16 %v313
  %v457 = vunpack.c.h.b16 %v313
  %v458 = vunpack.c.l.b16 %v314
  %v459 = vunpack.c.h.b16 %v314
  %v460 = vunpack.c.l.b16 %v315
  %v461 = vunpack.c.h.b16 %v315
  %v462 = vunpack.c.l.b16 %v316
  %v463 = vunpack.c.h.b16 %v316
  %v464 = vunpack.c.l.b16 %v317
  %v465 = vunpack.c.h.b16 %v317
  %v466 = vunpack.c.l.b16 %v318
  %v467 = vunpack.c.h.b16 %v318
  %v468 = vunpack.c.l.b16 %v319
  %v469 = vunpack.c.h.b16 %v319
  %v470 = vunpack.c.l.b16 %v320
  %v471 = vunpack.c.h.b16 %v320
  %v472 = vunpack.c.l.b16 %v321
  %v473 = vunpack.c.h.b16 %v321
  %v474 = vunpack.c.l.b16 %v322
  %v475 = vunpack.c.h.b16 %v322
  %v476 = vunpack.c.l.b16 %v323
  %v477 = vunpack.c.h.b16 %v323
  %v478 = vunpack.c.l.b16 %v324
  %v479 = vunpack.c.h.b16 %v324
  %v480 = vunpack.c.l.b16 %v325
  %v481 = vunpack.c.h.b16 %v325
  %v482 = vunpack.c.l.b16 %v326
  %v483 = vunpack.c.h.b16 %v326
  %v484 = vunpack.c.l.b16 %v327
  %v485 = vunpack.c.h.b16 %v327
  %v486 = vunpack.c.l.b16 %v328
  %v487 = vunpack.c.h.b16 %v328
  %v488 = vpack.c.b16 %v426, %v424
  %v489 = vpack.c.b16 %v427, %v425
  %v490 = vpack.c.b16 %v430, %v428
  %v491 = vpack.c.b16 %v431, %v429
  %v492 = vpack.c.b16 %v434, %v432
  %v493 = vpack.c.b16 %v435, %v433
  %v494 = vpack.c.b16 %v438, %v436
  %v495 = vpack.c.b16 %v439, %v437
  %v496 = vpack.c.b16 %v442, %v440
  %v497 = vpack.c.b16 %v443, %v441
  %v498 = vpack.c.b16 %v446, %v444
  %v499 = vpack.c.b16 %v447, %v445
  %v500 = vpack.c.b16 %v450, %v448
  %v501 = vpack.c.b16 %v451, %v449
  %v502 = vpack.c.b16 %v454, %v452
  %v503 = vpack.c.b16 %v455, %v453
  %v504 = vpack.c.b16 %v458, %v456
  %v505 = vpack.c.b16 %v459, %v457
  %v506 = vpack.c.b16 %v462, %v460
  %v507 = vpack.c.b16 %v463, %v461
  %v508 = vpack.c.b16 %v466, %v464
  %v509 = vpack.c.b16 %v467, %v465
  %v510 = vpack.c.b16 %v470, %v468
  %v511 = vpack.c.b16 %v471, %v469
  %v512 = vpack.c.b16 %v474, %v472
  %v513 = vpack.c.b16 %v475, %v473
  %v514 = vpack.c.b16 %v478, %v476
  %v515 = vpack.c.b16 %v479, %v477
  %v516 = vpack.c.b16 %v482, %v480
  %v517 = vpack.c.b16 %v483, %v481
  %v518 = vpack.c.b16 %v486, %v484
  %v519 = vpack.c.b16 %v487, %v485
  %552 = vmatprep.subr.bf16.mxu0 %v489
  %553 = vmatpush1.bf16.msra.mxu0 %v488
  %554 = vmatprep.subr.bf16.mxu0 %v491
  %555 = vmatpush1.bf16.msra.mxu0 %v490
  %556 = vmatprep.subr.bf16.mxu0 %v493
  %557 = vmatpush1.bf16.msra.mxu0 %v492
  %558 = vmatprep.subr.bf16.mxu0 %v495
  %559 = vmatpush1.bf16.msra.mxu0 %v494
  %560 = vmatprep.subr.bf16.mxu0 %v497
  %561 = vmatpush1.bf16.msra.mxu0 %v496
  %562 = vmatprep.subr.bf16.mxu0 %v499
  %563 = vmatpush1.bf16.msra.mxu0 %v498
  %564 = vmatprep.subr.bf16.mxu0 %v501
  %565 = vmatpush1.bf16.msra.mxu0 %v500
  %566 = vmatprep.subr.bf16.mxu0 %v503
  %567 = vmatpush1.bf16.msra.mxu0 %v502
  %568 = vmatprep.subr.bf16.mxu0 %v505
  %569 = vmatpush1.bf16.msra.mxu0 %v504
  %570 = vmatprep.subr.bf16.mxu0 %v507
  %571 = vmatpush1.bf16.msra.mxu0 %v506
  %572 = vmatprep.subr.bf16.mxu0 %v509
  %573 = vmatpush1.bf16.msra.mxu0 %v508
  %574 = vmatprep.subr.bf16.mxu0 %v511
  %575 = vmatpush1.bf16.msra.mxu0 %v510
  %576 = vmatprep.subr.bf16.mxu0 %v513
  %577 = vmatpush1.bf16.msra.mxu0 %v512
  %578 = vmatprep.subr.bf16.mxu0 %v515
  %579 = vmatpush1.bf16.msra.mxu0 %v514
  %580 = vmatprep.subr.bf16.mxu0 %v517
  %581 = vmatpush1.bf16.msra.mxu0 %v516
  %582 = vmatprep.subr.bf16.mxu0 %v519
  %583 = vmatpush1.bf16.msra.mxu0 %v518
  %584 = vmatprep.mubr.bf16.mxu0 %v366
  %585 = vmatmul.mubr.bf16.gmra.mrb[0].mxu0 %v365
  %v586 = vpop.f32.mrb[0].mxu0
  %v587 = vadd.f32 %v385, %v586
  %v588 = vpop.f32.mrb[0].mxu0
  %v589 = vadd.f32 %v389, %v588
  %v590 = vpop.f32.mrb[0].mxu0
  %v591 = vadd.f32 %v385, %v590
  %v592 = vpop.f32.mrb[0].mxu0
  %v593 = vadd.f32 %v389, %v592
  %594 = vmatprep.mubr.bf16.mxu0 %v368
  %595 = vmatmul.mubr.bf16.gmra.mrb[0].mxu0 %v367
  %v596 = vpop.f32.mrb[0].mxu0
  %v597 = vadd.f32 %v385, %v596
  %v598 = vpop.f32.mrb[0].mxu0
  %v599 = vadd.f32 %v389, %v598
  %v600 = vpop.f32.mrb[0].mxu0
  %v601 = vadd.f32 %v385, %v600
  %v602 = vpop.f32.mrb[0].mxu0
  %v603 = vadd.f32 %v389, %v602
  %604 = vmatprep.mubr.bf16.mxu0 %v370
  %605 = vmatmul.mubr.bf16.gmra.mrb[0].mxu0 %v369
  %v606 = vpop.f32.mrb[0].mxu0
  %v607 = vadd.f32 %v385, %v606
  %v608 = vpop.f32.mrb[0].mxu0
  %v609 = vadd.f32 %v389, %v608
  %v610 = vpop.f32.mrb[0].mxu0
  %v611 = vadd.f32 %v385, %v610
  %v612 = vpop.f32.mrb[0].mxu0
  %v613 = vadd.f32 %v389, %v612
  %614 = vmatprep.mubr.bf16.mxu0 %v372
  %615 = vmatmul.mubr.bf16.gmra.mrb[0].mxu0 %v371
  %v616 = vpop.f32.mrb[0].mxu0
  %v617 = vadd.f32 %v385, %v616
  %v618 = vpop.f32.mrb[0].mxu0
  %v619 = vadd.f32 %v389, %v618
  %v620 = vpop.f32.mrb[0].mxu0
  %v621 = vadd.f32 %v385, %v620
  %v622 = vpop.f32.mrb[0].mxu0
  %v623 = vadd.f32 %v389, %v622
  %624 = vmatprep.mubr.bf16.mxu0 %v374
  %625 = vmatmul.mubr.bf16.gmra.mrb[0].mxu0 %v373
  %v626 = vpop.f32.mrb[0].mxu0
  %v627 = vadd.f32 %v385, %v626
  %v628 = vpop.f32.mrb[0].mxu0
  %v629 = vadd.f32 %v389, %v628
  %v630 = vpop.f32.mrb[0].mxu0
  %v631 = vadd.f32 %v385, %v630
  %v632 = vpop.f32.mrb[0].mxu0
  %v633 = vadd.f32 %v389, %v632
  %634 = vmatprep.mubr.bf16.mxu0 %v376
  %635 = vmatmul.mubr.bf16.gmra.mrb[0].mxu0 %v375
  %v636 = vpop.f32.mrb[0].mxu0
  %v637 = vadd.f32 %v385, %v636
  %v638 = vpop.f32.mrb[0].mxu0
  %v639 = vadd.f32 %v389, %v638
  %v640 = vpop.f32.mrb[0].mxu0
  %v641 = vadd.f32 %v385, %v640
  %v642 = vpop.f32.mrb[0].mxu0
  %v643 = vadd.f32 %v389, %v642
  %644 = vmatprep.mubr.bf16.mxu0 %v378
  %645 = vmatmul.mubr.bf16.gmra.mrb[0].mxu0 %v377
  %v646 = vpop.f32.mrb[0].mxu0
  %v647 = vadd.f32 %v385, %v646
  %v648 = vpop.f32.mrb[0].mxu0
  %v649 = vadd.f32 %v389, %v648
  %v650 = vpop.f32.mrb[0].mxu0
  %v651 = vadd.f32 %v385, %v650
  %v652 = vpop.f32.mrb[0].mxu0
  %v653 = vadd.f32 %v389, %v652
  %654 = vmatprep.mubr.bf16.mxu0 %v380
  %655 = vmatmul.mubr.bf16.gmra.mrb[0].mxu0 %v379
  %v656 = vpop.f32.mrb[0].mxu0
  %v657 = vadd.f32 %v385, %v656
  %v658 = vpop.f32.mrb[0].mxu0
  %v659 = vadd.f32 %v389, %v658
  %v660 = vpop.f32.mrb[0].mxu0
  %v661 = vadd.f32 %v385, %v660
  %v662 = vpop.f32.mrb[0].mxu0
  %v663 = vadd.f32 %v389, %v662
  %664 = vdwg.mxu0
  %v665 = vmax.f32 %v587, 0.0
  %v666 = vmax.f32 %v589, 0.0
  %v667 = vmax.f32 %v591, 0.0
  %v668 = vmax.f32 %v593, 0.0
  %v669 = vmax.f32 %v597, 0.0
  %v670 = vmax.f32 %v599, 0.0
  %v671 = vmax.f32 %v601, 0.0
  %v672 = vmax.f32 %v603, 0.0
  %v673 = vmax.f32 %v607, 0.0
  %v674 = vmax.f32 %v609, 0.0
  %v675 = vmax.f32 %v611, 0.0
  %v676 = vmax.f32 %v613, 0.0
  %v677 = vmax.f32 %v617, 0.0
  %v678 = vmax.f32 %v619, 0.0
  %v679 = vmax.f32 %v621, 0.0
  %v680 = vmax.f32 %v623, 0.0
  %v681 = vmax.f32 %v627, 0.0
  %v682 = vmax.f32 %v629, 0.0
  %v683 = vmax.f32 %v631, 0.0
  %v684 = vmax.f32 %v633, 0.0
  %v685 = vmax.f32 %v637, 0.0
  %v686 = vmax.f32 %v639, 0.0
  %v687 = vmax.f32 %v641, 0.0
  %v688 = vmax.f32 %v643, 0.0
  %v689 = vmax.f32 %v647, 0.0
  %v690 = vmax.f32 %v649, 0.0
  %v691 = vmax.f32 %v651, 0.0
  %v692 = vmax.f32 %v653, 0.0
  %v693 = vmax.f32 %v657, 0.0
  %v694 = vmax.f32 %v659, 0.0
  %v695 = vmax.f32 %v661, 0.0
  %v696 = vmax.f32 %v663, 0.0
  %v697 = vpack.c.bf16 %v667, %v665
  %v698 = vpack.c.bf16 %v668, %v666
  %v699 = vpack.c.bf16 %v671, %v669
  %v700 = vpack.c.bf16 %v672, %v670
  %v701 = vpack.c.bf16 %v675, %v673
  %v702 = vpack.c.bf16 %v676, %v674
  %v703 = vpack.c.bf16 %v679, %v677
  %v704 = vpack.c.bf16 %v680, %v678
  %v705 = vpack.c.bf16 %v683, %v681
  %v706 = vpack.c.bf16 %v684, %v682
  %v707 = vpack.c.bf16 %v687, %v685
  %v708 = vpack.c.bf16 %v688, %v686
  %v709 = vpack.c.bf16 %v691, %v689
  %v710 = vpack.c.bf16 %v692, %v690
  %v711 = vpack.c.bf16 %v695, %v693
  %v712 = vpack.c.bf16 %v696, %v694
  %v714 = vlaneseq
  %v715 = vshrl.u32 %v714, 7
  %v716 = vsub.s32 0, %v715
  %v717 = vrot.slane %v364, %v716
  %v718 = vlaneseq
  %v719 = vshrl.u32 %v718, 7
  %v720 = vsub.s32 1, %v719
  %v721 = vrot.slane %v364, %v720
  %v756 = vunpack.c.l.b16 %v329
  %v757 = vunpack.c.h.b16 %v329
  %v758 = vunpack.c.l.b16 %v330
  %v759 = vunpack.c.h.b16 %v330
  %v760 = vunpack.c.l.b16 %v331
  %v761 = vunpack.c.h.b16 %v331
  %v762 = vunpack.c.l.b16 %v332
  %v763 = vunpack.c.h.b16 %v332
  %v764 = vunpack.c.l.b16 %v333
  %v765 = vunpack.c.h.b16 %v333
  %v766 = vunpack.c.l.b16 %v334
  %v767 = vunpack.c.h.b16 %v334
  %v768 = vunpack.c.l.b16 %v335
  %v769 = vunpack.c.h.b16 %v335
  %v770 = vunpack.c.l.b16 %v336
  %v771 = vunpack.c.h.b16 %v336
  %v772 = vunpack.c.l.b16 %v337
  %v773 = vunpack.c.h.b16 %v337
  %v774 = vunpack.c.l.b16 %v338
  %v775 = vunpack.c.h.b16 %v338
  %v776 = vunpack.c.l.b16 %v339
  %v777 = vunpack.c.h.b16 %v339
  %v778 = vunpack.c.l.b16 %v340
  %v779 = vunpack.c.h.b16 %v340
  %v780 = vunpack.c.l.b16 %v341
  %v781 = vunpack.c.h.b16 %v341
  %v782 = vunpack.c.l.b16 %v342
  %v783 = vunpack.c.h.b16 %v342
  %v784 = vunpack.c.l.b16 %v343
  %v785 = vunpack.c.h.b16 %v343
  %v786 = vunpack.c.l.b16 %v344
  %v787 = vunpack.c.h.b16 %v344
  %v788 = vunpack.c.l.b16 %v345
  %v789 = vunpack.c.h.b16 %v345
  %v790 = vunpack.c.l.b16 %v346
  %v791 = vunpack.c.h.b16 %v346
  %v792 = vunpack.c.l.b16 %v347
  %v793 = vunpack.c.h.b16 %v347
  %v794 = vunpack.c.l.b16 %v348
  %v795 = vunpack.c.h.b16 %v348
  %v796 = vunpack.c.l.b16 %v349
  %v797 = vunpack.c.h.b16 %v349
  %v798 = vunpack.c.l.b16 %v350
  %v799 = vunpack.c.h.b16 %v350
  %v800 = vunpack.c.l.b16 %v351
  %v801 = vunpack.c.h.b16 %v351
  %v802 = vunpack.c.l.b16 %v352
  %v803 = vunpack.c.h.b16 %v352
  %v804 = vunpack.c.l.b16 %v353
  %v805 = vunpack.c.h.b16 %v353
  %v806 = vunpack.c.l.b16 %v354
  %v807 = vunpack.c.h.b16 %v354
  %v808 = vunpack.c.l.b16 %v355
  %v809 = vunpack.c.h.b16 %v355
  %v810 = vunpack.c.l.b16 %v356
  %v811 = vunpack.c.h.b16 %v356
  %v812 = vunpack.c.l.b16 %v357
  %v813 = vunpack.c.h.b16 %v357
  %v814 = vunpack.c.l.b16 %v358
  %v815 = vunpack.c.h.b16 %v358
  %v816 = vunpack.c.l.b16 %v359
  %v817 = vunpack.c.h.b16 %v359
  %v818 = vunpack.c.l.b16 %v360
  %v819 = vunpack.c.h.b16 %v360
  %v820 = vpack.c.b16 %v758, %v756
  %v821 = vpack.c.b16 %v759, %v757
  %v822 = vpack.c.b16 %v762, %v760
  %v823 = vpack.c.b16 %v763, %v761
  %v824 = vpack.c.b16 %v766, %v764
  %v825 = vpack.c.b16 %v767, %v765
  %v826 = vpack.c.b16 %v770, %v768
  %v827 = vpack.c.b16 %v771, %v769
  %v828 = vpack.c.b16 %v774, %v772
  %v829 = vpack.c.b16 %v775, %v773
  %v830 = vpack.c.b16 %v778, %v776
  %v831 = vpack.c.b16 %v779, %v777
  %v832 = vpack.c.b16 %v782, %v780
  %v833 = vpack.c.b16 %v783, %v781
  %v834 = vpack.c.b16 %v786, %v784
  %v835 = vpack.c.b16 %v787, %v785
  %v836 = vpack.c.b16 %v790, %v788
  %v837 = vpack.c.b16 %v791, %v789
  %v838 = vpack.c.b16 %v794, %v792
  %v839 = vpack.c.b16 %v795, %v793
  %v840 = vpack.c.b16 %v798, %v796
  %v841 = vpack.c.b16 %v799, %v797
  %v842 = vpack.c.b16 %v802, %v800
  %v843 = vpack.c.b16 %v803, %v801
  %v844 = vpack.c.b16 %v806, %v804
  %v845 = vpack.c.b16 %v807, %v805
  %v846 = vpack.c.b16 %v810, %v808
  %v847 = vpack.c.b16 %v811, %v809
  %v848 = vpack.c.b16 %v814, %v812
  %v849 = vpack.c.b16 %v815, %v813
  %v850 = vpack.c.b16 %v818, %v816
  %v851 = vpack.c.b16 %v819, %v817
  %884 = vmatprep.subr.bf16.mxu0 %v821
  %885 = vmatpush1.bf16.msra.mxu0 %v820
  %886 = vmatprep.subr.bf16.mxu0 %v823
  %887 = vmatpush1.bf16.msra.mxu0 %v822
  %888 = vmatprep.subr.bf16.mxu0 %v825
  %889 = vmatpush1.bf16.msra.mxu0 %v824
  %890 = vmatprep.subr.bf16.mxu0 %v827
  %891 = vmatpush1.bf16.msra.mxu0 %v826
  %892 = vmatprep.subr.bf16.mxu0 %v829
  %893 = vmatpush1.bf16.msra.mxu0 %v828
  %894 = vmatprep.subr.bf16.mxu0 %v831
  %895 = vmatpush1.bf16.msra.mxu0 %v830
  %896 = vmatprep.subr.bf16.mxu0 %v833
  %897 = vmatpush1.bf16.msra.mxu0 %v832
  %898 = vmatprep.subr.bf16.mxu0 %v835
  %899 = vmatpush1.bf16.msra.mxu0 %v834
  %900 = vmatprep.subr.bf16.mxu0 %v837
  %901 = vmatpush1.bf16.msra.mxu0 %v836
  %902 = vmatprep.subr.bf16.mxu0 %v839
  %903 = vmatpush1.bf16.msra.mxu0 %v838
  %904 = vmatprep.subr.bf16.mxu0 %v841
  %905 = vmatpush1.bf16.msra.mxu0 %v840
  %906 = vmatprep.subr.bf16.mxu0 %v843
  %907 = vmatpush1.bf16.msra.mxu0 %v842
  %908 = vmatprep.subr.bf16.mxu0 %v845
  %909 = vmatpush1.bf16.msra.mxu0 %v844
  %910 = vmatprep.subr.bf16.mxu0 %v847
  %911 = vmatpush1.bf16.msra.mxu0 %v846
  %912 = vmatprep.subr.bf16.mxu0 %v849
  %913 = vmatpush1.bf16.msra.mxu0 %v848
  %914 = vmatprep.subr.bf16.mxu0 %v851
  %915 = vmatpush1.bf16.msra.mxu0 %v850
  %916 = vmatprep.mubr.bf16.mxu0 %v698
  %917 = vmatmul.mubr.bf16.gmra.mrb[0].mxu0 %v697
  %v918 = vpop.f32.mrb[0].mxu0
  %v919 = vadd.f32 %v717, %v918
  %v920 = vpop.f32.mrb[0].mxu0
  %v921 = vadd.f32 %v721, %v920
  %v922 = vpop.f32.mrb[0].mxu0
  %v923 = vadd.f32 %v717, %v922
  %v924 = vpop.f32.mrb[0].mxu0
  %v925 = vadd.f32 %v721, %v924
  %926 = vmatprep.mubr.bf16.mxu0 %v700
  %927 = vmatmul.mubr.bf16.gmra.mrb[0].mxu0 %v699
  %v928 = vpop.f32.mrb[0].mxu0
  %v929 = vadd.f32 %v717, %v928
  %v930 = vpop.f32.mrb[0].mxu0
  %v931 = vadd.f32 %v721, %v930
  %v932 = vpop.f32.mrb[0].mxu0
  %v933 = vadd.f32 %v717, %v932
  %v934 = vpop.f32.mrb[0].mxu0
  %v935 = vadd.f32 %v721, %v934
  %936 = vmatprep.mubr.bf16.mxu0 %v702
  %937 = vmatmul.mubr.bf16.gmra.mrb[0].mxu0 %v701
  %v938 = vpop.f32.mrb[0].mxu0
  %v939 = vadd.f32 %v717, %v938
  %v940 = vpop.f32.mrb[0].mxu0
  %v941 = vadd.f32 %v721, %v940
  %v942 = vpop.f32.mrb[0].mxu0
  %v943 = vadd.f32 %v717, %v942
  %v944 = vpop.f32.mrb[0].mxu0
  %v945 = vadd.f32 %v721, %v944
  %946 = vmatprep.mubr.bf16.mxu0 %v704
  %947 = vmatmul.mubr.bf16.gmra.mrb[0].mxu0 %v703
  %v948 = vpop.f32.mrb[0].mxu0
  %v949 = vadd.f32 %v717, %v948
  %v950 = vpop.f32.mrb[0].mxu0
  %v951 = vadd.f32 %v721, %v950
  %v952 = vpop.f32.mrb[0].mxu0
  %v953 = vadd.f32 %v717, %v952
  %v954 = vpop.f32.mrb[0].mxu0
  %v955 = vadd.f32 %v721, %v954
  %956 = vmatprep.mubr.bf16.mxu0 %v706
  %957 = vmatmul.mubr.bf16.gmra.mrb[0].mxu0 %v705
  %v958 = vpop.f32.mrb[0].mxu0
  %v959 = vadd.f32 %v717, %v958
  %v960 = vpop.f32.mrb[0].mxu0
  %v961 = vadd.f32 %v721, %v960
  %v962 = vpop.f32.mrb[0].mxu0
  %v963 = vadd.f32 %v717, %v962
  %v964 = vpop.f32.mrb[0].mxu0
  %v965 = vadd.f32 %v721, %v964
  %966 = vmatprep.mubr.bf16.mxu0 %v708
  %967 = vmatmul.mubr.bf16.gmra.mrb[0].mxu0 %v707
  %v968 = vpop.f32.mrb[0].mxu0
  %v969 = vadd.f32 %v717, %v968
  %v970 = vpop.f32.mrb[0].mxu0
  %v971 = vadd.f32 %v721, %v970
  %v972 = vpop.f32.mrb[0].mxu0
  %v973 = vadd.f32 %v717, %v972
  %v974 = vpop.f32.mrb[0].mxu0
  %v975 = vadd.f32 %v721, %v974
  %976 = vmatprep.mubr.bf16.mxu0 %v710
  %977 = vmatmul.mubr.bf16.gmra.mrb[0].mxu0 %v709
  %v978 = vpop.f32.mrb[0].mxu0
  %v979 = vadd.f32 %v717, %v978
  %v980 = vpop.f32.mrb[0].mxu0
  %v981 = vadd.f32 %v721, %v980
  %v982 = vpop.f32.mrb[0].mxu0
  %v983 = vadd.f32 %v717, %v982
  %v984 = vpop.f32.mrb[0].mxu0
  %v985 = vadd.f32 %v721, %v984
  %986 = vmatprep.mubr.bf16.mxu0 %v712
  %987 = vmatmul.mubr.bf16.gmra.mrb[0].mxu0 %v711
  %v988 = vpop.f32.mrb[0].mxu0
  %v989 = vadd.f32 %v717, %v988
  %v990 = vpop.f32.mrb[0].mxu0
  %v991 = vadd.f32 %v721, %v990
  %v992 = vpop.f32.mrb[0].mxu0
  %v993 = vadd.f32 %v717, %v992
  %v994 = vpop.f32.mrb[0].mxu0
  %v995 = vadd.f32 %v721, %v994
  %996 = vdwg.mxu0
  %v997 = vadd.f32 %v919, %v265
  %v998 = vadd.f32 %v921, %v266
  %v999 = vadd.f32 %v923, %v267
  %v1000 = vadd.f32 %v925, %v268
  %v1001 = vadd.f32 %v929, %v269
  %v1002 = vadd.f32 %v931, %v270
  %v1003 = vadd.f32 %v933, %v271
  %v1004 = vadd.f32 %v935, %v272
  %v1005 = vadd.f32 %v939, %v273
  %v1006 = vadd.f32 %v941, %v274
  %v1007 = vadd.f32 %v943, %v275
  %v1008 = vadd.f32 %v945, %v276
  %v1009 = vadd.f32 %v949, %v277
  %v1010 = vadd.f32 %v951, %v278
  %v1011 = vadd.f32 %v953, %v279
  %v1012 = vadd.f32 %v955, %v280
  %v1013 = vadd.f32 %v959, %v281
  %v1014 = vadd.f32 %v961, %v282
  %v1015 = vadd.f32 %v963, %v283
  %v1016 = vadd.f32 %v965, %v284
  %v1017 = vadd.f32 %v969, %v285
  %v1018 = vadd.f32 %v971, %v286
  %v1019 = vadd.f32 %v973, %v287
  %v1020 = vadd.f32 %v975, %v288
  %v1021 = vadd.f32 %v979, %v289
  %v1022 = vadd.f32 %v981, %v290
  %v1023 = vadd.f32 %v983, %v291
  %v1024 = vadd.f32 %v985, %v292
  %v1025 = vadd.f32 %v989, %v293
  %v1026 = vadd.f32 %v991, %v294
  %v1027 = vadd.f32 %v993, %v295
  %v1028 = vadd.f32 %v995, %v296
  %v1029 = vmax.f32 %v997, 0.0
  %v1030 = vmax.f32 %v998, 0.0
  %v1031 = vmax.f32 %v999, 0.0
  %v1032 = vmax.f32 %v1000, 0.0
  %v1033 = vmax.f32 %v1001, 0.0
  %v1034 = vmax.f32 %v1002, 0.0
  %v1035 = vmax.f32 %v1003, 0.0
  %v1036 = vmax.f32 %v1004, 0.0
  %v1037 = vmax.f32 %v1005, 0.0
  %v1038 = vmax.f32 %v1006, 0.0
  %v1039 = vmax.f32 %v1007, 0.0
  %v1040 = vmax.f32 %v1008, 0.0
  %v1041 = vmax.f32 %v1009, 0.0
  %v1042 = vmax.f32 %v1010, 0.0
  %v1043 = vmax.f32 %v1011, 0.0
  %v1044 = vmax.f32 %v1012, 0.0
  %v1045 = vmax.f32 %v1013, 0.0
  %v1046 = vmax.f32 %v1014, 0.0
  %v1047 = vmax.f32 %v1015, 0.0
  %v1048 = vmax.f32 %v1016, 0.0
  %v1049 = vmax.f32 %v1017, 0.0
  %v1050 = vmax.f32 %v1018, 0.0
  %v1051 = vmax.f32 %v1019, 0.0
  %v1052 = vmax.f32 %v1020, 0.0
  %v1053 = vmax.f32 %v1021, 0.0
  %v1054 = vmax.f32 %v1022, 0.0
  %v1055 = vmax.f32 %v1023, 0.0
  %v1056 = vmax.f32 %v1024, 0.0
  %v1057 = vmax.f32 %v1025, 0.0
  %v1058 = vmax.f32 %v1026, 0.0
  %v1059 = vmax.f32 %v1027, 0.0
  %v1060 = vmax.f32 %v1028, 0.0
  %v1061 = vld [vmem:[%s1 + $0x280] sm:$0xff]
  %v1062 = vld [vmem:[%s1 + $0x288] sm:$0xff]
  %v1063 = vld [vmem:[%s1 + $0x290] sm:$0xff]
  %v1064 = vld [vmem:[%s1 + $0x298] sm:$0xff]
  %v1065 = vld [vmem:[%s1 + $0x2a0] sm:$0xff]
  %v1066 = vld [vmem:[%s1 + $0x2a8] sm:$0xff]
  %v1067 = vld [vmem:[%s1 + $0x2b0] sm:$0xff]
  %v1068 = vld [vmem:[%s1 + $0x2b8] sm:$0xff]
  %v1069 = vld [vmem:[%s1 + $0x2c0] sm:$0xff]
  %v1070 = vld [vmem:[%s1 + $0x2c8] sm:$0xff]
  %v1071 = vld [vmem:[%s1 + $0x2d0] sm:$0xff]
  %v1072 = vld [vmem:[%s1 + $0x2d8] sm:$0xff]
  %v1073 = vld [vmem:[%s1 + $0x2e0] sm:$0xff]
  %v1074 = vld [vmem:[%s1 + $0x2e8] sm:$0xff]
  %v1075 = vld [vmem:[%s1 + $0x2f0] sm:$0xff]
  %v1076 = vld [vmem:[%s1 + $0x2f8] sm:$0xff]
  %v1077 = vld [vmem:[%s1 + $0x300] sm:$0xff]
  %v1078 = vld [vmem:[%s1 + $0x308] sm:$0xff]
  %v1079 = vld [vmem:[%s1 + $0x310] sm:$0xff]
  %v1080 = vld [vmem:[%s1 + $0x318] sm:$0xff]
  %v1081 = vld [vmem:[%s1 + $0x320] sm:$0xff]
  %v1082 = vld [vmem:[%s1 + $0x328] sm:$0xff]
  %v1083 = vld [vmem:[%s1 + $0x330] sm:$0xff]
  %v1084 = vld [vmem:[%s1 + $0x338] sm:$0xff]
  %v1085 = vld [vmem:[%s1 + $0x340] sm:$0xff]
  %v1086 = vld [vmem:[%s1 + $0x348] sm:$0xff]
  %v1087 = vld [vmem:[%s1 + $0x350] sm:$0xff]
  %v1088 = vld [vmem:[%s1 + $0x358] sm:$0xff]
  %v1089 = vld [vmem:[%s1 + $0x360] sm:$0xff]
  %v1090 = vld [vmem:[%s1 + $0x368] sm:$0xff]
  %v1091 = vld [vmem:[%s1 + $0x370] sm:$0xff]
  %v1092 = vld [vmem:[%s1 + $0x378] sm:$0xff]
  %v1093 = vld [vmem:[%s1 + $0x380] sm:$0xff]
  %v1094 = vld [vmem:[%s1 + $0x388] sm:$0xff]
  %v1095 = vld [vmem:[%s1 + $0x390] sm:$0xff]
  %v1096 = vld [vmem:[%s1 + $0x398] sm:$0xff]
  %v1097 = vld [vmem:[%s1 + $0x3a0] sm:$0xff]
  %v1098 = vld [vmem:[%s1 + $0x3a8] sm:$0xff]
  %v1099 = vld [vmem:[%s1 + $0x3b0] sm:$0xff]
  %v1100 = vld [vmem:[%s1 + $0x3b8] sm:$0xff]
  %v1101 = vld [vmem:[%s1 + $0x3c0] sm:$0xff]
  %v1102 = vld [vmem:[%s1 + $0x3c8] sm:$0xff]
  %v1103 = vld [vmem:[%s1 + $0x3d0] sm:$0xff]
  %v1104 = vld [vmem:[%s1 + $0x3d8] sm:$0xff]
  %v1105 = vld [vmem:[%s1 + $0x3e0] sm:$0xff]
  %v1106 = vld [vmem:[%s1 + $0x3e8] sm:$0xff]
  %v1107 = vld [vmem:[%s1 + $0x3f0] sm:$0xff]
  %v1108 = vld [vmem:[%s1 + $0x3f8] sm:$0xff]
  %v1109 = vld [vmem:[%s1 + $0x400] sm:$0xff]
  %v1110 = vld [vmem:[%s1 + $0x408] sm:$0xff]
  %v1111 = vld [vmem:[%s1 + $0x410] sm:$0xff]
  %v1112 = vld [vmem:[%s1 + $0x418] sm:$0xff]
  %v1113 = vld [vmem:[%s1 + $0x420] sm:$0xff]
  %v1114 = vld [vmem:[%s1 + $0x428] sm:$0xff]
  %v1115 = vld [vmem:[%s1 + $0x430] sm:$0xff]
  %v1116 = vld [vmem:[%s1 + $0x438] sm:$0xff]
  %v1117 = vld [vmem:[%s1 + $0x440] sm:$0xff]
  %v1118 = vld [vmem:[%s1 + $0x448] sm:$0xff]
  %v1119 = vld [vmem:[%s1 + $0x450] sm:$0xff]
  %v1120 = vld [vmem:[%s1 + $0x458] sm:$0xff]
  %v1121 = vld [vmem:[%s1 + $0x460] sm:$0xff]
  %v1122 = vld [vmem:[%s1 + $0x468] sm:$0xff]
  %v1123 = vld [vmem:[%s1 + $0x470] sm:$0xff]
  %v1124 = vld [vmem:[%s1 + $0x478] sm:$0xff]
  %s1125 = scalar_lea.vmem %s3, 3
  %v1126 = vld [vmem:[%s1125] ss:$8 sm:$0x3]
  %s1127 = scalar_lea.vmem %s3, 4
  %v1128 = vld [vmem:[%s1127] ss:$8 sm:$0x3]
  %v1129 = vpack.c.bf16 %v1031, %v1029
  %v1130 = vpack.c.bf16 %v1032, %v1030
  %v1131 = vpack.c.bf16 %v1035, %v1033
  %v1132 = vpack.c.bf16 %v1036, %v1034
  %v1133 = vpack.c.bf16 %v1039, %v1037
  %v1134 = vpack.c.bf16 %v1040, %v1038
  %v1135 = vpack.c.bf16 %v1043, %v1041
  %v1136 = vpack.c.bf16 %v1044, %v1042
  %v1137 = vpack.c.bf16 %v1047, %v1045
  %v1138 = vpack.c.bf16 %v1048, %v1046
  %v1139 = vpack.c.bf16 %v1051, %v1049
  %v1140 = vpack.c.bf16 %v1052, %v1050
  %v1141 = vpack.c.bf16 %v1055, %v1053
  %v1142 = vpack.c.bf16 %v1056, %v1054
  %v1143 = vpack.c.bf16 %v1059, %v1057
  %v1144 = vpack.c.bf16 %v1060, %v1058
  %v1146 = vlaneseq
  %v1147 = vshrl.u32 %v1146, 7
  %v1148 = vsub.s32 0, %v1147
  %v1149 = vrot.slane %v1126, %v1148
  %v1150 = vlaneseq
  %v1151 = vshrl.u32 %v1150, 7
  %v1152 = vsub.s32 1, %v1151
  %v1153 = vrot.slane %v1126, %v1152
  %v1188 = vunpack.c.l.b16 %v1061
  %v1189 = vunpack.c.h.b16 %v1061
  %v1190 = vunpack.c.l.b16 %v1062
  %v1191 = vunpack.c.h.b16 %v1062
  %v1192 = vunpack.c.l.b16 %v1063
  %v1193 = vunpack.c.h.b16 %v1063
  %v1194 = vunpack.c.l.b16 %v1064
  %v1195 = vunpack.c.h.b16 %v1064
  %v1196 = vunpack.c.l.b16 %v1065
  %v1197 = vunpack.c.h.b16 %v1065
  %v1198 = vunpack.c.l.b16 %v1066
  %v1199 = vunpack.c.h.b16 %v1066
  %v1200 = vunpack.c.l.b16 %v1067
  %v1201 = vunpack.c.h.b16 %v1067
  %v1202 = vunpack.c.l.b16 %v1068
  %v1203 = vunpack.c.h.b16 %v1068
  %v1204 = vunpack.c.l.b16 %v1069
  %v1205 = vunpack.c.h.b16 %v1069
  %v1206 = vunpack.c.l.b16 %v1070
  %v1207 = vunpack.c.h.b16 %v1070
  %v1208 = vunpack.c.l.b16 %v1071
  %v1209 = vunpack.c.h.b16 %v1071
  %v1210 = vunpack.c.l.b16 %v1072
  %v1211 = vunpack.c.h.b16 %v1072
  %v1212 = vunpack.c.l.b16 %v1073
  %v1213 = vunpack.c.h.b16 %v1073
  %v1214 = vunpack.c.l.b16 %v1074
  %v1215 = vunpack.c.h.b16 %v1074
  %v1216 = vunpack.c.l.b16 %v1075
  %v1217 = vunpack.c.h.b16 %v1075
  %v1218 = vunpack.c.l.b16 %v1076
  %v1219 = vunpack.c.h.b16 %v1076
  %v1220 = vunpack.c.l.b16 %v1077
  %v1221 = vunpack.c.h.b16 %v1077
  %v1222 = vunpack.c.l.b16 %v1078
  %v1223 = vunpack.c.h.b16 %v1078
  %v1224 = vunpack.c.l.b16 %v1079
  %v1225 = vunpack.c.h.b16 %v1079
  %v1226 = vunpack.c.l.b16 %v1080
  %v1227 = vunpack.c.h.b16 %v1080
  %v1228 = vunpack.c.l.b16 %v1081
  %v1229 = vunpack.c.h.b16 %v1081
  %v1230 = vunpack.c.l.b16 %v1082
  %v1231 = vunpack.c.h.b16 %v1082
  %v1232 = vunpack.c.l.b16 %v1083
  %v1233 = vunpack.c.h.b16 %v1083
  %v1234 = vunpack.c.l.b16 %v1084
  %v1235 = vunpack.c.h.b16 %v1084
  %v1236 = vunpack.c.l.b16 %v1085
  %v1237 = vunpack.c.h.b16 %v1085
  %v1238 = vunpack.c.l.b16 %v1086
  %v1239 = vunpack.c.h.b16 %v1086
  %v1240 = vunpack.c.l.b16 %v1087
  %v1241 = vunpack.c.h.b16 %v1087
  %v1242 = vunpack.c.l.b16 %v1088
  %v1243 = vunpack.c.h.b16 %v1088
  %v1244 = vunpack.c.l.b16 %v1089
  %v1245 = vunpack.c.h.b16 %v1089
  %v1246 = vunpack.c.l.b16 %v1090
  %v1247 = vunpack.c.h.b16 %v1090
  %v1248 = vunpack.c.l.b16 %v1091
  %v1249 = vunpack.c.h.b16 %v1091
  %v1250 = vunpack.c.l.b16 %v1092
  %v1251 = vunpack.c.h.b16 %v1092
  %v1252 = vpack.c.b16 %v1190, %v1188
  %v1253 = vpack.c.b16 %v1191, %v1189
  %v1254 = vpack.c.b16 %v1194, %v1192
  %v1255 = vpack.c.b16 %v1195, %v1193
  %v1256 = vpack.c.b16 %v1198, %v1196
  %v1257 = vpack.c.b16 %v1199, %v1197
  %v1258 = vpack.c.b16 %v1202, %v1200
  %v1259 = vpack.c.b16 %v1203, %v1201
  %v1260 = vpack.c.b16 %v1206, %v1204
  %v1261 = vpack.c.b16 %v1207, %v1205
  %v1262 = vpack.c.b16 %v1210, %v1208
  %v1263 = vpack.c.b16 %v1211, %v1209
  %v1264 = vpack.c.b16 %v1214, %v1212
  %v1265 = vpack.c.b16 %v1215, %v1213
  %v1266 = vpack.c.b16 %v1218, %v1216
  %v1267 = vpack.c.b16 %v1219, %v1217
  %v1268 = vpack.c.b16 %v1222, %v1220
  %v1269 = vpack.c.b16 %v1223, %v1221
  %v1270 = vpack.c.b16 %v1226, %v1224
  %v1271 = vpack.c.b16 %v1227, %v1225
  %v1272 = vpack.c.b16 %v1230, %v1228
  %v1273 = vpack.c.b16 %v1231, %v1229
  %v1274 = vpack.c.b16 %v1234, %v1232
  %v1275 = vpack.c.b16 %v1235, %v1233
  %v1276 = vpack.c.b16 %v1238, %v1236
  %v1277 = vpack.c.b16 %v1239, %v1237
  %v1278 = vpack.c.b16 %v1242, %v1240
  %v1279 = vpack.c.b16 %v1243, %v1241
  %v1280 = vpack.c.b16 %v1246, %v1244
  %v1281 = vpack.c.b16 %v1247, %v1245
  %v1282 = vpack.c.b16 %v1250, %v1248
  %v1283 = vpack.c.b16 %v1251, %v1249
  %1316 = vmatprep.subr.bf16.mxu0 %v1253
  %1317 = vmatpush1.bf16.msra.mxu0 %v1252
  %1318 = vmatprep.subr.bf16.mxu0 %v1255
  %1319 = vmatpush1.bf16.msra.mxu0 %v1254
  %1320 = vmatprep.subr.bf16.mxu0 %v1257
  %1321 = vmatpush1.bf16.msra.mxu0 %v1256
  %1322 = vmatprep.subr.bf16.mxu0 %v1259
  %1323 = vmatpush1.bf16.msra.mxu0 %v1258
  %1324 = vmatprep.subr.bf16.mxu0 %v1261
  %1325 = vmatpush1.bf16.msra.mxu0 %v1260
  %1326 = vmatprep.subr.bf16.mxu0 %v1263
  %1327 = vmatpush1.bf16.msra.mxu0 %v1262
  %1328 = vmatprep.subr.bf16.mxu0 %v1265
  %1329 = vmatpush1.bf16.msra.mxu0 %v1264
  %1330 = vmatprep.subr.bf16.mxu0 %v1267
  %1331 = vmatpush1.bf16.msra.mxu0 %v1266
  %1332 = vmatprep.subr.bf16.mxu0 %v1269
  %1333 = vmatpush1.bf16.msra.mxu0 %v1268
  %1334 = vmatprep.subr.bf16.mxu0 %v1271
  %1335 = vmatpush1.bf16.msra.mxu0 %v1270
  %1336 = vmatprep.subr.bf16.mxu0 %v1273
  %1337 = vmatpush1.bf16.msra.mxu0 %v1272
  %1338 = vmatprep.subr.bf16.mxu0 %v1275
  %1339 = vmatpush1.bf16.msra.mxu0 %v1274
  %1340 = vmatprep.subr.bf16.mxu0 %v1277
  %1341 = vmatpush1.bf16.msra.mxu0 %v1276
  %1342 = vmatprep.subr.bf16.mxu0 %v1279
  %1343 = vmatpush1.bf16.msra.mxu0 %v1278
  %1344 = vmatprep.subr.bf16.mxu0 %v1281
  %1345 = vmatpush1.bf16.msra.mxu0 %v1280
  %1346 = vmatprep.subr.bf16.mxu0 %v1283
  %1347 = vmatpush1.bf16.msra.mxu0 %v1282
  %1348 = vmatprep.mubr.bf16.mxu0 %v1130
  %1349 = vmatmul.mubr.bf16.gmra.mrb[0].mxu0 %v1129
  %v1350 = vpop.f32.mrb[0].mxu0
  %v1351 = vadd.f32 %v1149, %v1350
  %v1352 = vpop.f32.mrb[0].mxu0
  %v1353 = vadd.f32 %v1153, %v1352
  %v1354 = vpop.f32.mrb[0].mxu0
  %v1355 = vadd.f32 %v1149, %v1354
  %v1356 = vpop.f32.mrb[0].mxu0
  %v1357 = vadd.f32 %v1153, %v1356
  %1358 = vmatprep.mubr.bf16.mxu0 %v1132
  %1359 = vmatmul.mubr.bf16.gmra.mrb[0].mxu0 %v1131
  %v1360 = vpop.f32.mrb[0].mxu0
  %v1361 = vadd.f32 %v1149, %v1360
  %v1362 = vpop.f32.mrb[0].mxu0
  %v1363 = vadd.f32 %v1153, %v1362
  %v1364 = vpop.f32.mrb[0].mxu0
  %v1365 = vadd.f32 %v1149, %v1364
  %v1366 = vpop.f32.mrb[0].mxu0
  %v1367 = vadd.f32 %v1153, %v1366
  %1368 = vmatprep.mubr.bf16.mxu0 %v1134
  %1369 = vmatmul.mubr.bf16.gmra.mrb[0].mxu0 %v1133
  %v1370 = vpop.f32.mrb[0].mxu0
  %v1371 = vadd.f32 %v1149, %v1370
  %v1372 = vpop.f32.mrb[0].mxu0
  %v1373 = vadd.f32 %v1153, %v1372
  %v1374 = vpop.f32.mrb[0].mxu0
  %v1375 = vadd.f32 %v1149, %v1374
  %v1376 = vpop.f32.mrb[0].mxu0
  %v1377 = vadd.f32 %v1153, %v1376
  %1378 = vmatprep.mubr.bf16.mxu0 %v1136
  %1379 = vmatmul.mubr.bf16.gmra.mrb[0].mxu0 %v1135
  %v1380 = vpop.f32.mrb[0].mxu0
  %v1381 = vadd.f32 %v1149, %v1380
  %v1382 = vpop.f32.mrb[0].mxu0
  %v1383 = vadd.f32 %v1153, %v1382
  %v1384 = vpop.f32.mrb[0].mxu0
  %v1385 = vadd.f32 %v1149, %v1384
  %v1386 = vpop.f32.mrb[0].mxu0
  %v1387 = vadd.f32 %v1153, %v1386
  %1388 = vmatprep.mubr.bf16.mxu0 %v1138
  %1389 = vmatmul.mubr.bf16.gmra.mrb[0].mxu0 %v1137
  %v1390 = vpop.f32.mrb[0].mxu0
  %v1391 = vadd.f32 %v1149, %v1390
  %v1392 = vpop.f32.mrb[0].mxu0
  %v1393 = vadd.f32 %v1153, %v1392
  %v1394 = vpop.f32.mrb[0].mxu0
  %v1395 = vadd.f32 %v1149, %v1394
  %v1396 = vpop.f32.mrb[0].mxu0
  %v1397 = vadd.f32 %v1153, %v1396
  %1398 = vmatprep.mubr.bf16.mxu0 %v1140
  %1399 = vmatmul.mubr.bf16.gmra.mrb[0].mxu0 %v1139
  %v1400 = vpop.f32.mrb[0].mxu0
  %v1401 = vadd.f32 %v1149, %v1400
  %v1402 = vpop.f32.mrb[0].mxu0
  %v1403 = vadd.f32 %v1153, %v1402
  %v1404 = vpop.f32.mrb[0].mxu0
  %v1405 = vadd.f32 %v1149, %v1404
  %v1406 = vpop.f32.mrb[0].mxu0
  %v1407 = vadd.f32 %v1153, %v1406
  %1408 = vmatprep.mubr.bf16.mxu0 %v1142
  %1409 = vmatmul.mubr.bf16.gmra.mrb[0].mxu0 %v1141
  %v1410 = vpop.f32.mrb[0].mxu0
  %v1411 = vadd.f32 %v1149, %v1410
  %v1412 = vpop.f32.mrb[0].mxu0
  %v1413 = vadd.f32 %v1153, %v1412
  %v1414 = vpop.f32.mrb[0].mxu0
  %v1415 = vadd.f32 %v1149, %v1414
  %v1416 = vpop.f32.mrb[0].mxu0
  %v1417 = vadd.f32 %v1153, %v1416
  %1418 = vmatprep.mubr.bf16.mxu0 %v1144
  %1419 = vmatmul.mubr.bf16.gmra.mrb[0].mxu0 %v1143
  %v1420 = vpop.f32.mrb[0].mxu0
  %v1421 = vadd.f32 %v1149, %v1420
  %v1422 = vpop.f32.mrb[0].mxu0
  %v1423 = vadd.f32 %v1153, %v1422
  %v1424 = vpop.f32.mrb[0].mxu0
  %v1425 = vadd.f32 %v1149, %v1424
  %v1426 = vpop.f32.mrb[0].mxu0
  %v1427 = vadd.f32 %v1153, %v1426
  %1428 = vdwg.mxu0
  %v1429 = vmax.f32 %v1351, 0.0
  %v1430 = vmax.f32 %v1353, 0.0
  %v1431 = vmax.f32 %v1355, 0.0
  %v1432 = vmax.f32 %v1357, 0.0
  %v1433 = vmax.f32 %v1361, 0.0
  %v1434 = vmax.f32 %v1363, 0.0
  %v1435 = vmax.f32 %v1365, 0.0
  %v1436 = vmax.f32 %v1367, 0.0
  %v1437 = vmax.f32 %v1371, 0.0
  %v1438 = vmax.f32 %v1373, 0.0
  %v1439 = vmax.f32 %v1375, 0.0
  %v1440 = vmax.f32 %v1377, 0.0
  %v1441 = vmax.f32 %v1381, 0.0
  %v1442 = vmax.f32 %v1383, 0.0
  %v1443 = vmax.f32 %v1385, 0.0
  %v1444 = vmax.f32 %v1387, 0.0
  %v1445 = vmax.f32 %v1391, 0.0
  %v1446 = vmax.f32 %v1393, 0.0
  %v1447 = vmax.f32 %v1395, 0.0
  %v1448 = vmax.f32 %v1397, 0.0
  %v1449 = vmax.f32 %v1401, 0.0
  %v1450 = vmax.f32 %v1403, 0.0
  %v1451 = vmax.f32 %v1405, 0.0
  %v1452 = vmax.f32 %v1407, 0.0
  %v1453 = vmax.f32 %v1411, 0.0
  %v1454 = vmax.f32 %v1413, 0.0
  %v1455 = vmax.f32 %v1415, 0.0
  %v1456 = vmax.f32 %v1417, 0.0
  %v1457 = vmax.f32 %v1421, 0.0
  %v1458 = vmax.f32 %v1423, 0.0
  %v1459 = vmax.f32 %v1425, 0.0
  %v1460 = vmax.f32 %v1427, 0.0
  %v1461 = vpack.c.bf16 %v1431, %v1429
  %v1462 = vpack.c.bf16 %v1432, %v1430
  %v1463 = vpack.c.bf16 %v1435, %v1433
  %v1464 = vpack.c.bf16 %v1436, %v1434
  %v1465 = vpack.c.bf16 %v1439, %v1437
  %v1466 = vpack.c.bf16 %v1440, %v1438
  %v1467 = vpack.c.bf16 %v1443, %v1441
  %v1468 = vpack.c.bf16 %v1444, %v1442
  %v1469 = vpack.c.bf16 %v1447, %v1445
  %v1470 = vpack.c.bf16 %v1448, %v1446
  %v1471 = vpack.c.bf16 %v1451, %v1449
  %v1472 = vpack.c.bf16 %v1452, %v1450
  %v1473 = vpack.c.bf16 %v1455, %v1453
  %v1474 = vpack.c.bf16 %v1456, %v1454
  %v1475 = vpack.c.bf16 %v1459, %v1457
  %v1476 = vpack.c.bf16 %v1460, %v1458
  %v1478 = vlaneseq
  %v1479 = vshrl.u32 %v1478, 7
  %v1480 = vsub.s32 0, %v1479
  %v1481 = vrot.slane %v1128, %v1480
  %v1482 = vlaneseq
  %v1483 = vshrl.u32 %v1482, 7
  %v1484 = vsub.s32 1, %v1483
  %v1485 = vrot.slane %v1128, %v1484
  %v1520 = vunpack.c.l.b16 %v1093
  %v1521 = vunpack.c.h.b16 %v1093
  %v1522 = vunpack.c.l.b16 %v1094
  %v1523 = vunpack.c.h.b16 %v1094
  %v1524 = vunpack.c.l.b16 %v1095
  %v1525 = vunpack.c.h.b16 %v1095
  %v1526 = vunpack.c.l.b16 %v1096
  %v1527 = vunpack.c.h.b16 %v1096
  %v1528 = vunpack.c.l.b16 %v1097
  %v1529 = vunpack.c.h.b16 %v1097
  %v1530 = vunpack.c.l.b16 %v1098
  %v1531 = vunpack.c.h.b16 %v1098
  %v1532 = vunpack.c.l.b16 %v1099
  %v1533 = vunpack.c.h.b16 %v1099
  %v1534 = vunpack.c.l.b16 %v1100
  %v1535 = vunpack.c.h.b16 %v1100
  %v1536 = vunpack.c.l.b16 %v1101
  %v1537 = vunpack.c.h.b16 %v1101
  %v1538 = vunpack.c.l.b16 %v1102
  %v1539 = vunpack.c.h.b16 %v1102
  %v1540 = vunpack.c.l.b16 %v1103
  %v1541 = vunpack.c.h.b16 %v1103
  %v1542 = vunpack.c.l.b16 %v1104
  %v1543 = vunpack.c.h.b16 %v1104
  %v1544 = vunpack.c.l.b16 %v1105
  %v1545 = vunpack.c.h.b16 %v1105
  %v1546 = vunpack.c.l.b16 %v1106
  %v1547 = vunpack.c.h.b16 %v1106
  %v1548 = vunpack.c.l.b16 %v1107
  %v1549 = vunpack.c.h.b16 %v1107
  %v1550 = vunpack.c.l.b16 %v1108
  %v1551 = vunpack.c.h.b16 %v1108
  %v1552 = vunpack.c.l.b16 %v1109
  %v1553 = vunpack.c.h.b16 %v1109
  %v1554 = vunpack.c.l.b16 %v1110
  %v1555 = vunpack.c.h.b16 %v1110
  %v1556 = vunpack.c.l.b16 %v1111
  %v1557 = vunpack.c.h.b16 %v1111
  %v1558 = vunpack.c.l.b16 %v1112
  %v1559 = vunpack.c.h.b16 %v1112
  %v1560 = vunpack.c.l.b16 %v1113
  %v1561 = vunpack.c.h.b16 %v1113
  %v1562 = vunpack.c.l.b16 %v1114
  %v1563 = vunpack.c.h.b16 %v1114
  %v1564 = vunpack.c.l.b16 %v1115
  %v1565 = vunpack.c.h.b16 %v1115
  %v1566 = vunpack.c.l.b16 %v1116
  %v1567 = vunpack.c.h.b16 %v1116
  %v1568 = vunpack.c.l.b16 %v1117
  %v1569 = vunpack.c.h.b16 %v1117
  %v1570 = vunpack.c.l.b16 %v1118
  %v1571 = vunpack.c.h.b16 %v1118
  %v1572 = vunpack.c.l.b16 %v1119
  %v1573 = vunpack.c.h.b16 %v1119
  %v1574 = vunpack.c.l.b16 %v1120
  %v1575 = vunpack.c.h.b16 %v1120
  %v1576 = vunpack.c.l.b16 %v1121
  %v1577 = vunpack.c.h.b16 %v1121
  %v1578 = vunpack.c.l.b16 %v1122
  %v1579 = vunpack.c.h.b16 %v1122
  %v1580 = vunpack.c.l.b16 %v1123
  %v1581 = vunpack.c.h.b16 %v1123
  %v1582 = vunpack.c.l.b16 %v1124
  %v1583 = vunpack.c.h.b16 %v1124
  %v1584 = vpack.c.b16 %v1522, %v1520
  %v1585 = vpack.c.b16 %v1523, %v1521
  %v1586 = vpack.c.b16 %v1526, %v1524
  %v1587 = vpack.c.b16 %v1527, %v1525
  %v1588 = vpack.c.b16 %v1530, %v1528
  %v1589 = vpack.c.b16 %v1531, %v1529
  %v1590 = vpack.c.b16 %v1534, %v1532
  %v1591 = vpack.c.b16 %v1535, %v1533
  %v1592 = vpack.c.b16 %v1538, %v1536
  %v1593 = vpack.c.b16 %v1539, %v1537
  %v1594 = vpack.c.b16 %v1542, %v1540
  %v1595 = vpack.c.b16 %v1543, %v1541
  %v1596 = vpack.c.b16 %v1546, %v1544
  %v1597 = vpack.c.b16 %v1547, %v1545
  %v1598 = vpack.c.b16 %v1550, %v1548
  %v1599 = vpack.c.b16 %v1551, %v1549
  %v1600 = vpack.c.b16 %v1554, %v1552
  %v1601 = vpack.c.b16 %v1555, %v1553
  %v1602 = vpack.c.b16 %v1558, %v1556
  %v1603 = vpack.c.b16 %v1559, %v1557
  %v1604 = vpack.c.b16 %v1562, %v1560
  %v1605 = vpack.c.b16 %v1563, %v1561
  %v1606 = vpack.c.b16 %v1566, %v1564
  %v1607 = vpack.c.b16 %v1567, %v1565
  %v1608 = vpack.c.b16 %v1570, %v1568
  %v1609 = vpack.c.b16 %v1571, %v1569
  %v1610 = vpack.c.b16 %v1574, %v1572
  %v1611 = vpack.c.b16 %v1575, %v1573
  %v1612 = vpack.c.b16 %v1578, %v1576
  %v1613 = vpack.c.b16 %v1579, %v1577
  %v1614 = vpack.c.b16 %v1582, %v1580
  %v1615 = vpack.c.b16 %v1583, %v1581
  %1648 = vmatprep.subr.bf16.mxu0 %v1585
  %1649 = vmatpush1.bf16.msra.mxu0 %v1584
  %1650 = vmatprep.subr.bf16.mxu0 %v1587
  %1651 = vmatpush1.bf16.msra.mxu0 %v1586
  %1652 = vmatprep.subr.bf16.mxu0 %v1589
  %1653 = vmatpush1.bf16.msra.mxu0 %v1588
  %1654 = vmatprep.subr.bf16.mxu0 %v1591
  %1655 = vmatpush1.bf16.msra.mxu0 %v1590
  %1656 = vmatprep.subr.bf16.mxu0 %v1593
  %1657 = vmatpush1.bf16.msra.mxu0 %v1592
  %1658 = vmatprep.subr.bf16.mxu0 %v1595
  %1659 = vmatpush1.bf16.msra.mxu0 %v1594
  %1660 = vmatprep.subr.bf16.mxu0 %v1597
  %1661 = vmatpush1.bf16.msra.mxu0 %v1596
  %1662 = vmatprep.subr.bf16.mxu0 %v1599
  %1663 = vmatpush1.bf16.msra.mxu0 %v1598
  %1664 = vmatprep.subr.bf16.mxu0 %v1601
  %1665 = vmatpush1.bf16.msra.mxu0 %v1600
  %1666 = vmatprep.subr.bf16.mxu0 %v1603
  %1667 = vmatpush1.bf16.msra.mxu0 %v1602
  %1668 = vmatprep.subr.bf16.mxu0 %v1605
  %1669 = vmatpush1.bf16.msra.mxu0 %v1604
  %1670 = vmatprep.subr.bf16.mxu0 %v1607
  %1671 = vmatpush1.bf16.msra.mxu0 %v1606
  %1672 = vmatprep.subr.bf16.mxu0 %v1609
  %1673 = vmatpush1.bf16.msra.mxu0 %v1608
  %1674 = vmatprep.subr.bf16.mxu0 %v1611
  %1675 = vmatpush1.bf16.msra.mxu0 %v1610
  %1676 = vmatprep.subr.bf16.mxu0 %v1613
  %1677 = vmatpush1.bf16.msra.mxu0 %v1612
  %1678 = vmatprep.subr.bf16.mxu0 %v1615
  %1679 = vmatpush1.bf16.msra.mxu0 %v1614
  %1680 = vmatprep.mubr.bf16.mxu0 %v1462
  %1681 = vmatmul.mubr.bf16.gmra.mrb[0].mxu0 %v1461
  %v1682 = vpop.f32.mrb[0].mxu0
  %v1683 = vadd.f32 %v1481, %v1682
  %v1684 = vpop.f32.mrb[0].mxu0
  %v1685 = vadd.f32 %v1485, %v1684
  %v1686 = vpop.f32.mrb[0].mxu0
  %v1687 = vadd.f32 %v1481, %v1686
  %v1688 = vpop.f32.mrb[0].mxu0
  %v1689 = vadd.f32 %v1485, %v1688
  %1690 = vmatprep.mubr.bf16.mxu0 %v1464
  %1691 = vmatmul.mubr.bf16.gmra.mrb[0].mxu0 %v1463
  %v1692 = vpop.f32.mrb[0].mxu0
  %v1693 = vadd.f32 %v1481, %v1692
  %v1694 = vpop.f32.mrb[0].mxu0
  %v1695 = vadd.f32 %v1485, %v1694
  %v1696 = vpop.f32.mrb[0].mxu0
  %v1697 = vadd.f32 %v1481, %v1696
  %v1698 = vpop.f32.mrb[0].mxu0
  %v1699 = vadd.f32 %v1485, %v1698
  %1700 = vmatprep.mubr.bf16.mxu0 %v1466
  %1701 = vmatmul.mubr.bf16.gmra.mrb[0].mxu0 %v1465
  %v1702 = vpop.f32.mrb[0].mxu0
  %v1703 = vadd.f32 %v1481, %v1702
  %v1704 = vpop.f32.mrb[0].mxu0
  %v1705 = vadd.f32 %v1485, %v1704
  %v1706 = vpop.f32.mrb[0].mxu0
  %v1707 = vadd.f32 %v1481, %v1706
  %v1708 = vpop.f32.mrb[0].mxu0
  %v1709 = vadd.f32 %v1485, %v1708
  %1710 = vmatprep.mubr.bf16.mxu0 %v1468
  %1711 = vmatmul.mubr.bf16.gmra.mrb[0].mxu0 %v1467
  %v1712 = vpop.f32.mrb[0].mxu0
  %v1713 = vadd.f32 %v1481, %v1712
  %v1714 = vpop.f32.mrb[0].mxu0
  %v1715 = vadd.f32 %v1485, %v1714
  %v1716 = vpop.f32.mrb[0].mxu0
  %v1717 = vadd.f32 %v1481, %v1716
  %v1718 = vpop.f32.mrb[0].mxu0
  %v1719 = vadd.f32 %v1485, %v1718
  %1720 = vmatprep.mubr.bf16.mxu0 %v1470
  %1721 = vmatmul.mubr.bf16.gmra.mrb[0].mxu0 %v1469
  %v1722 = vpop.f32.mrb[0].mxu0
  %v1723 = vadd.f32 %v1481, %v1722
  %v1724 = vpop.f32.mrb[0].mxu0
  %v1725 = vadd.f32 %v1485, %v1724
  %v1726 = vpop.f32.mrb[0].mxu0
  %v1727 = vadd.f32 %v1481, %v1726
  %v1728 = vpop.f32.mrb[0].mxu0
  %v1729 = vadd.f32 %v1485, %v1728
  %1730 = vmatprep.mubr.bf16.mxu0 %v1472
  %1731 = vmatmul.mubr.bf16.gmra.mrb[0].mxu0 %v1471
  %v1732 = vpop.f32.mrb[0].mxu0
  %v1733 = vadd.f32 %v1481, %v1732
  %v1734 = vpop.f32.mrb[0].mxu0
  %v1735 = vadd.f32 %v1485, %v1734
  %v1736 = vpop.f32.mrb[0].mxu0
  %v1737 = vadd.f32 %v1481, %v1736
  %v1738 = vpop.f32.mrb[0].mxu0
  %v1739 = vadd.f32 %v1485, %v1738
  %1740 = vmatprep.mubr.bf16.mxu0 %v1474
  %1741 = vmatmul.mubr.bf16.gmra.mrb[0].mxu0 %v1473
  %v1742 = vpop.f32.mrb[0].mxu0
  %v1743 = vadd.f32 %v1481, %v1742
  %v1744 = vpop.f32.mrb[0].mxu0
  %v1745 = vadd.f32 %v1485, %v1744
  %v1746 = vpop.f32.mrb[0].mxu0
  %v1747 = vadd.f32 %v1481, %v1746
  %v1748 = vpop.f32.mrb[0].mxu0
  %v1749 = vadd.f32 %v1485, %v1748
  %1750 = vmatprep.mubr.bf16.mxu0 %v1476
  %1751 = vmatmul.mubr.bf16.gmra.mrb[0].mxu0 %v1475
  %v1752 = vpop.f32.mrb[0].mxu0
  %v1753 = vadd.f32 %v1481, %v1752
  %v1754 = vpop.f32.mrb[0].mxu0
  %v1755 = vadd.f32 %v1485, %v1754
  %v1756 = vpop.f32.mrb[0].mxu0
  %v1757 = vadd.f32 %v1481, %v1756
  %v1758 = vpop.f32.mrb[0].mxu0
  %v1759 = vadd.f32 %v1485, %v1758
  %1760 = vdwg.mxu0
  %v1761 = vadd.f32 %v1683, %v1029
  %v1762 = vadd.f32 %v1685, %v1030
  %v1763 = vadd.f32 %v1687, %v1031
  %v1764 = vadd.f32 %v1689, %v1032
  %v1765 = vadd.f32 %v1693, %v1033
  %v1766 = vadd.f32 %v1695, %v1034
  %v1767 = vadd.f32 %v1697, %v1035
  %v1768 = vadd.f32 %v1699, %v1036
  %v1769 = vadd.f32 %v1703, %v1037
  %v1770 = vadd.f32 %v1705, %v1038
  %v1771 = vadd.f32 %v1707, %v1039
  %v1772 = vadd.f32 %v1709, %v1040
  %v1773 = vadd.f32 %v1713, %v1041
  %v1774 = vadd.f32 %v1715, %v1042
  %v1775 = vadd.f32 %v1717, %v1043
  %v1776 = vadd.f32 %v1719, %v1044
  %v1777 = vadd.f32 %v1723, %v1045
  %v1778 = vadd.f32 %v1725, %v1046
  %v1779 = vadd.f32 %v1727, %v1047
  %v1780 = vadd.f32 %v1729, %v1048
  %v1781 = vadd.f32 %v1733, %v1049
  %v1782 = vadd.f32 %v1735, %v1050
  %v1783 = vadd.f32 %v1737, %v1051
  %v1784 = vadd.f32 %v1739, %v1052
  %v1785 = vadd.f32 %v1743, %v1053
  %v1786 = vadd.f32 %v1745, %v1054
  %v1787 = vadd.f32 %v1747, %v1055
  %v1788 = vadd.f32 %v1749, %v1056
  %v1789 = vadd.f32 %v1753, %v1057
  %v1790 = vadd.f32 %v1755, %v1058
  %v1791 = vadd.f32 %v1757, %v1059
  %v1792 = vadd.f32 %v1759, %v1060
  %v1793 = vmax.f32 %v1761, 0.0
  %v1794 = vmax.f32 %v1762, 0.0
  %v1795 = vmax.f32 %v1763, 0.0
  %v1796 = vmax.f32 %v1764, 0.0
  %v1797 = vmax.f32 %v1765, 0.0
  %v1798 = vmax.f32 %v1766, 0.0
  %v1799 = vmax.f32 %v1767, 0.0
  %v1800 = vmax.f32 %v1768, 0.0
  %v1801 = vmax.f32 %v1769, 0.0
  %v1802 = vmax.f32 %v1770, 0.0
  %v1803 = vmax.f32 %v1771, 0.0
  %v1804 = vmax.f32 %v1772, 0.0
  %v1805 = vmax.f32 %v1773, 0.0
  %v1806 = vmax.f32 %v1774, 0.0
  %v1807 = vmax.f32 %v1775, 0.0
  %v1808 = vmax.f32 %v1776, 0.0
  %v1809 = vmax.f32 %v1777, 0.0
  %v1810 = vmax.f32 %v1778, 0.0
  %v1811 = vmax.f32 %v1779, 0.0
  %v1812 = vmax.f32 %v1780, 0.0
  %v1813 = vmax.f32 %v1781, 0.0
  %v1814 = vmax.f32 %v1782, 0.0
  %v1815 = vmax.f32 %v1783, 0.0
  %v1816 = vmax.f32 %v1784, 0.0
  %v1817 = vmax.f32 %v1785, 0.0
  %v1818 = vmax.f32 %v1786, 0.0
  %v1819 = vmax.f32 %v1787, 0.0
  %v1820 = vmax.f32 %v1788, 0.0
  %v1821 = vmax.f32 %v1789, 0.0
  %v1822 = vmax.f32 %v1790, 0.0
  %v1823 = vmax.f32 %v1791, 0.0
  %v1824 = vmax.f32 %v1792, 0.0
  %v1825 = vld [vmem:[%s2] sm:$0xff]
  %v1826 = vld [vmem:[%s2 + $0x8] sm:$0xff]
  %v1827 = vld [vmem:[%s2 + $0x10] sm:$0xff]
  %v1828 = vld [vmem:[%s2 + $0x18] sm:$0xff]
  %v1829 = vld [vmem:[%s2 + $0x20] sm:$0xff]
  %v1830 = vld [vmem:[%s2 + $0x28] sm:$0xff]
  %v1831 = vld [vmem:[%s2 + $0x30] sm:$0xff]
  %v1832 = vld [vmem:[%s2 + $0x38] sm:$0xff]
  %v1833 = vld [vmem:[%s2 + $0x40] sm:$0xff]
  %v1834 = vld [vmem:[%s2 + $0x48] sm:$0xff]
  %v1835 = vld [vmem:[%s2 + $0x50] sm:$0xff]
  %v1836 = vld [vmem:[%s2 + $0x58] sm:$0xff]
  %v1837 = vld [vmem:[%s2 + $0x60] sm:$0xff]
  %v1838 = vld [vmem:[%s2 + $0x68] sm:$0xff]
  %v1839 = vld [vmem:[%s2 + $0x70] sm:$0xff]
  %v1840 = vld [vmem:[%s2 + $0x78] sm:$0xff]
  %v1841 = vld [vmem:[%s2 + $0x80] sm:$0xff]
  %v1842 = vld [vmem:[%s2 + $0x88] sm:$0xff]
  %v1843 = vld [vmem:[%s2 + $0x90] sm:$0xff]
  %v1844 = vld [vmem:[%s2 + $0x98] sm:$0xff]
  %v1845 = vld [vmem:[%s2 + $0xa0] sm:$0xff]
  %v1846 = vld [vmem:[%s2 + $0xa8] sm:$0xff]
  %v1847 = vld [vmem:[%s2 + $0xb0] sm:$0xff]
  %v1848 = vld [vmem:[%s2 + $0xb8] sm:$0xff]
  %v1849 = vld [vmem:[%s2 + $0xc0] sm:$0xff]
  %v1850 = vld [vmem:[%s2 + $0xc8] sm:$0xff]
  %v1851 = vld [vmem:[%s2 + $0xd0] sm:$0xff]
  %v1852 = vld [vmem:[%s2 + $0xd8] sm:$0xff]
  %v1853 = vld [vmem:[%s2 + $0xe0] sm:$0xff]
  %v1854 = vld [vmem:[%s2 + $0xe8] sm:$0xff]
  %v1855 = vld [vmem:[%s2 + $0xf0] sm:$0xff]
  %v1856 = vld [vmem:[%s2 + $0xf8] sm:$0xff]
  %v1857 = vpack.c.bf16 %v1795, %v1793
  %v1858 = vpack.c.bf16 %v1796, %v1794
  %v1859 = vpack.c.bf16 %v1799, %v1797
  %v1860 = vpack.c.bf16 %v1800, %v1798
  %v1861 = vpack.c.bf16 %v1803, %v1801
  %v1862 = vpack.c.bf16 %v1804, %v1802
  %v1863 = vpack.c.bf16 %v1807, %v1805
  %v1864 = vpack.c.bf16 %v1808, %v1806
  %v1865 = vpack.c.bf16 %v1811, %v1809
  %v1866 = vpack.c.bf16 %v1812, %v1810
  %v1867 = vpack.c.bf16 %v1815, %v1813
  %v1868 = vpack.c.bf16 %v1816, %v1814
  %v1869 = vpack.c.bf16 %v1819, %v1817
  %v1870 = vpack.c.bf16 %v1820, %v1818
  %v1871 = vpack.c.bf16 %v1823, %v1821
  %v1872 = vpack.c.bf16 %v1824, %v1822
  %s1873 = scalar_lea.vmem %s3, 5
  %v1874 = vld [vmem:[%s1873] ss:$8 sm:$0x3]
  %v1876 = vlaneseq
  %v1877 = vshrl.u32 %v1876, 7
  %v1878 = vsub.s32 0, %v1877
  %v1879 = vrot.slane %v1874, %v1878
  %v1880 = vlaneseq
  %v1881 = vshrl.u32 %v1880, 7
  %v1882 = vsub.s32 1, %v1881
  %v1883 = vrot.slane %v1874, %v1882
  %v1918 = vunpack.c.l.b16 %v1825
  %v1919 = vunpack.c.h.b16 %v1825
  %v1920 = vunpack.c.l.b16 %v1826
  %v1921 = vunpack.c.h.b16 %v1826
  %v1922 = vunpack.c.l.b16 %v1827
  %v1923 = vunpack.c.h.b16 %v1827
  %v1924 = vunpack.c.l.b16 %v1828
  %v1925 = vunpack.c.h.b16 %v1828
  %v1926 = vunpack.c.l.b16 %v1829
  %v1927 = vunpack.c.h.b16 %v1829
  %v1928 = vunpack.c.l.b16 %v1830
  %v1929 = vunpack.c.h.b16 %v1830
  %v1930 = vunpack.c.l.b16 %v1831
  %v1931 = vunpack.c.h.b16 %v1831
  %v1932 = vunpack.c.l.b16 %v1832
  %v1933 = vunpack.c.h.b16 %v1832
  %v1934 = vunpack.c.l.b16 %v1833
  %v1935 = vunpack.c.h.b16 %v1833
  %v1936 = vunpack.c.l.b16 %v1834
  %v1937 = vunpack.c.h.b16 %v1834
  %v1938 = vunpack.c.l.b16 %v1835
  %v1939 = vunpack.c.h.b16 %v1835
  %v1940 = vunpack.c.l.b16 %v1836
  %v1941 = vunpack.c.h.b16 %v1836
  %v1942 = vunpack.c.l.b16 %v1837
  %v1943 = vunpack.c.h.b16 %v1837
  %v1944 = vunpack.c.l.b16 %v1838
  %v1945 = vunpack.c.h.b16 %v1838
  %v1946 = vunpack.c.l.b16 %v1839
  %v1947 = vunpack.c.h.b16 %v1839
  %v1948 = vunpack.c.l.b16 %v1840
  %v1949 = vunpack.c.h.b16 %v1840
  %v1950 = vunpack.c.l.b16 %v1841
  %v1951 = vunpack.c.h.b16 %v1841
  %v1952 = vunpack.c.l.b16 %v1842
  %v1953 = vunpack.c.h.b16 %v1842
  %v1954 = vunpack.c.l.b16 %v1843
  %v1955 = vunpack.c.h.b16 %v1843
  %v1956 = vunpack.c.l.b16 %v1844
  %v1957 = vunpack.c.h.b16 %v1844
  %v1958 = vunpack.c.l.b16 %v1845
  %v1959 = vunpack.c.h.b16 %v1845
  %v1960 = vunpack.c.l.b16 %v1846
  %v1961 = vunpack.c.h.b16 %v1846
  %v1962 = vunpack.c.l.b16 %v1847
  %v1963 = vunpack.c.h.b16 %v1847
  %v1964 = vunpack.c.l.b16 %v1848
  %v1965 = vunpack.c.h.b16 %v1848
  %v1966 = vunpack.c.l.b16 %v1849
  %v1967 = vunpack.c.h.b16 %v1849
  %v1968 = vunpack.c.l.b16 %v1850
  %v1969 = vunpack.c.h.b16 %v1850
  %v1970 = vunpack.c.l.b16 %v1851
  %v1971 = vunpack.c.h.b16 %v1851
  %v1972 = vunpack.c.l.b16 %v1852
  %v1973 = vunpack.c.h.b16 %v1852
  %v1974 = vunpack.c.l.b16 %v1853
  %v1975 = vunpack.c.h.b16 %v1853
  %v1976 = vunpack.c.l.b16 %v1854
  %v1977 = vunpack.c.h.b16 %v1854
  %v1978 = vunpack.c.l.b16 %v1855
  %v1979 = vunpack.c.h.b16 %v1855
  %v1980 = vunpack.c.l.b16 %v1856
  %v1981 = vunpack.c.h.b16 %v1856
  %v1982 = vpack.c.b16 %v1920, %v1918
  %v1983 = vpack.c.b16 %v1921, %v1919
  %v1984 = vpack.c.b16 %v1924, %v1922
  %v1985 = vpack.c.b16 %v1925, %v1923
  %v1986 = vpack.c.b16 %v1928, %v1926
  %v1987 = vpack.c.b16 %v1929, %v1927
  %v1988 = vpack.c.b16 %v1932, %v1930
  %v1989 = vpack.c.b16 %v1933, %v1931
  %v1990 = vpack.c.b16 %v1936, %v1934
  %v1991 = vpack.c.b16 %v1937, %v1935
  %v1992 = vpack.c.b16 %v1940, %v1938
  %v1993 = vpack.c.b16 %v1941, %v1939
  %v1994 = vpack.c.b16 %v1944, %v1942
  %v1995 = vpack.c.b16 %v1945, %v1943
  %v1996 = vpack.c.b16 %v1948, %v1946
  %v1997 = vpack.c.b16 %v1949, %v1947
  %v1998 = vpack.c.b16 %v1952, %v1950
  %v1999 = vpack.c.b16 %v1953, %v1951
  %v2000 = vpack.c.b16 %v1956, %v1954
  %v2001 = vpack.c.b16 %v1957, %v1955
  %v2002 = vpack.c.b16 %v1960, %v1958
  %v2003 = vpack.c.b16 %v1961, %v1959
  %v2004 = vpack.c.b16 %v1964, %v1962
  %v2005 = vpack.c.b16 %v1965, %v1963
  %v2006 = vpack.c.b16 %v1968, %v1966
  %v2007 = vpack.c.b16 %v1969, %v1967
  %v2008 = vpack.c.b16 %v1972, %v1970
  %v2009 = vpack.c.b16 %v1973, %v1971
  %v2010 = vpack.c.b16 %v1976, %v1974
  %v2011 = vpack.c.b16 %v1977, %v1975
  %v2012 = vpack.c.b16 %v1980, %v1978
  %v2013 = vpack.c.b16 %v1981, %v1979
  %2046 = vmatprep.subr.bf16.mxu0 %v1983
  %2047 = vmatpush1.bf16.msra.mxu0 %v1982
  %2048 = vmatprep.subr.bf16.mxu0 %v1985
  %2049 = vmatpush1.bf16.msra.mxu0 %v1984
  %2050 = vmatprep.subr.bf16.mxu0 %v1987
  %2051 = vmatpush1.bf16.msra.mxu0 %v1986
  %2052 = vmatprep.subr.bf16.mxu0 %v1989
  %2053 = vmatpush1.bf16.msra.mxu0 %v1988
  %2054 = vmatprep.subr.bf16.mxu0 %v1991
  %2055 = vmatpush1.bf16.msra.mxu0 %v1990
  %2056 = vmatprep.subr.bf16.mxu0 %v1993
  %2057 = vmatpush1.bf16.msra.mxu0 %v1992
  %2058 = vmatprep.subr.bf16.mxu0 %v1995
  %2059 = vmatpush1.bf16.msra.mxu0 %v1994
  %2060 = vmatprep.subr.bf16.mxu0 %v1997
  %2061 = vmatpush1.bf16.msra.mxu0 %v1996
  %2062 = vmatprep.subr.bf16.mxu0 %v1999
  %2063 = vmatpush1.bf16.msra.mxu0 %v1998
  %2064 = vmatprep.subr.bf16.mxu0 %v2001
  %2065 = vmatpush1.bf16.msra.mxu0 %v2000
  %2066 = vmatprep.subr.bf16.mxu0 %v2003
  %2067 = vmatpush1.bf16.msra.mxu0 %v2002
  %2068 = vmatprep.subr.bf16.mxu0 %v2005
  %2069 = vmatpush1.bf16.msra.mxu0 %v2004
  %2070 = vmatprep.subr.bf16.mxu0 %v2007
  %2071 = vmatpush1.bf16.msra.mxu0 %v2006
  %2072 = vmatprep.subr.bf16.mxu0 %v2009
  %2073 = vmatpush1.bf16.msra.mxu0 %v2008
  %2074 = vmatprep.subr.bf16.mxu0 %v2011
  %2075 = vmatpush1.bf16.msra.mxu0 %v2010
  %2076 = vmatprep.subr.bf16.mxu0 %v2013
  %2077 = vmatpush1.bf16.msra.mxu0 %v2012
  %2078 = vmatprep.mubr.bf16.mxu0 %v1858
  %2079 = vmatmul.mubr.bf16.gmra.mrb[0].mxu0 %v1857
  %v2080 = vpop.f32.mrb[0].mxu0
  %v2081 = vadd.f32 %v1879, %v2080
  %v2082 = vpop.f32.mrb[0].mxu0
  %v2083 = vadd.f32 %v1883, %v2082
  %v2084 = vpop.f32.mrb[0].mxu0
  %v2085 = vadd.f32 %v1879, %v2084
  %v2086 = vpop.f32.mrb[0].mxu0
  %v2087 = vadd.f32 %v1883, %v2086
  %2088 = vmatprep.mubr.bf16.mxu0 %v1860
  %2089 = vmatmul.mubr.bf16.gmra.mrb[0].mxu0 %v1859
  %v2090 = vpop.f32.mrb[0].mxu0
  %v2091 = vadd.f32 %v1879, %v2090
  %v2092 = vpop.f32.mrb[0].mxu0
  %v2093 = vadd.f32 %v1883, %v2092
  %v2094 = vpop.f32.mrb[0].mxu0
  %v2095 = vadd.f32 %v1879, %v2094
  %v2096 = vpop.f32.mrb[0].mxu0
  %v2097 = vadd.f32 %v1883, %v2096
  %2098 = vmatprep.mubr.bf16.mxu0 %v1862
  %2099 = vmatmul.mubr.bf16.gmra.mrb[0].mxu0 %v1861
  %v2100 = vpop.f32.mrb[0].mxu0
  %v2101 = vadd.f32 %v1879, %v2100
  %v2102 = vpop.f32.mrb[0].mxu0
  %v2103 = vadd.f32 %v1883, %v2102
  %v2104 = vpop.f32.mrb[0].mxu0
  %v2105 = vadd.f32 %v1879, %v2104
  %v2106 = vpop.f32.mrb[0].mxu0
  %v2107 = vadd.f32 %v1883, %v2106
  %2108 = vmatprep.mubr.bf16.mxu0 %v1864
  %2109 = vmatmul.mubr.bf16.gmra.mrb[0].mxu0 %v1863
  %v2110 = vpop.f32.mrb[0].mxu0
  %v2111 = vadd.f32 %v1879, %v2110
  %v2112 = vpop.f32.mrb[0].mxu0
  %v2113 = vadd.f32 %v1883, %v2112
  %v2114 = vpop.f32.mrb[0].mxu0
  %v2115 = vadd.f32 %v1879, %v2114
  %v2116 = vpop.f32.mrb[0].mxu0
  %v2117 = vadd.f32 %v1883, %v2116
  %2118 = vmatprep.mubr.bf16.mxu0 %v1866
  %2119 = vmatmul.mubr.bf16.gmra.mrb[0].mxu0 %v1865
  %v2120 = vpop.f32.mrb[0].mxu0
  %v2121 = vadd.f32 %v1879, %v2120
  %v2122 = vpop.f32.mrb[0].mxu0
  %v2123 = vadd.f32 %v1883, %v2122
  %v2124 = vpop.f32.mrb[0].mxu0
  %v2125 = vadd.f32 %v1879, %v2124
  %v2126 = vpop.f32.mrb[0].mxu0
  %v2127 = vadd.f32 %v1883, %v2126
  %2128 = vmatprep.mubr.bf16.mxu0 %v1868
  %2129 = vmatmul.mubr.bf16.gmra.mrb[0].mxu0 %v1867
  %v2130 = vpop.f32.mrb[0].mxu0
  %v2131 = vadd.f32 %v1879, %v2130
  %v2132 = vpop.f32.mrb[0].mxu0
  %v2133 = vadd.f32 %v1883, %v2132
  %v2134 = vpop.f32.mrb[0].mxu0
  %v2135 = vadd.f32 %v1879, %v2134
  %v2136 = vpop.f32.mrb[0].mxu0
  %v2137 = vadd.f32 %v1883, %v2136
  %2138 = vmatprep.mubr.bf16.mxu0 %v1870
  %2139 = vmatmul.mubr.bf16.gmra.mrb[0].mxu0 %v1869
  %v2140 = vpop.f32.mrb[0].mxu0
  %v2141 = vadd.f32 %v1879, %v2140
  %v2142 = vpop.f32.mrb[0].mxu0
  %v2143 = vadd.f32 %v1883, %v2142
  %v2144 = vpop.f32.mrb[0].mxu0
  %v2145 = vadd.f32 %v1879, %v2144
  %v2146 = vpop.f32.mrb[0].mxu0
  %v2147 = vadd.f32 %v1883, %v2146
  %2148 = vmatprep.mubr.bf16.mxu0 %v1872
  %2149 = vmatmul.mubr.bf16.gmra.mrb[0].mxu0 %v1871
  %v2150 = vpop.f32.mrb[0].mxu0
  %v2151 = vadd.f32 %v1879, %v2150
  %v2152 = vpop.f32.mrb[0].mxu0
  %v2153 = vadd.f32 %v1883, %v2152
  %v2154 = vpop.f32.mrb[0].mxu0
  %v2155 = vadd.f32 %v1879, %v2154
  %v2156 = vpop.f32.mrb[0].mxu0
  %v2157 = vadd.f32 %v1883, %v2156
  %2158 = vdwg.mxu0
  %v2159 = vmax.f32 %v2081, 0.0
  %v2160 = vmax.f32 %v2083, 0.0
  %v2161 = vmax.f32 %v2085, 0.0
  %v2162 = vmax.f32 %v2087, 0.0
  %v2163 = vmax.f32 %v2091, 0.0
  %v2164 = vmax.f32 %v2093, 0.0
  %v2165 = vmax.f32 %v2095, 0.0
  %v2166 = vmax.f32 %v2097, 0.0
  %v2167 = vmax.f32 %v2101, 0.0
  %v2168 = vmax.f32 %v2103, 0.0
  %v2169 = vmax.f32 %v2105, 0.0
  %v2170 = vmax.f32 %v2107, 0.0
  %v2171 = vmax.f32 %v2111, 0.0
  %v2172 = vmax.f32 %v2113, 0.0
  %v2173 = vmax.f32 %v2115, 0.0
  %v2174 = vmax.f32 %v2117, 0.0
  %v2175 = vmax.f32 %v2121, 0.0
  %v2176 = vmax.f32 %v2123, 0.0
  %v2177 = vmax.f32 %v2125, 0.0
  %v2178 = vmax.f32 %v2127, 0.0
  %v2179 = vmax.f32 %v2131, 0.0
  %v2180 = vmax.f32 %v2133, 0.0
  %v2181 = vmax.f32 %v2135, 0.0
  %v2182 = vmax.f32 %v2137, 0.0
  %v2183 = vmax.f32 %v2141, 0.0
  %v2184 = vmax.f32 %v2143, 0.0
  %v2185 = vmax.f32 %v2145, 0.0
  %v2186 = vmax.f32 %v2147, 0.0
  %v2187 = vmax.f32 %v2151, 0.0
  %v2188 = vmax.f32 %v2153, 0.0
  %v2189 = vmax.f32 %v2155, 0.0
  %v2190 = vmax.f32 %v2157, 0.0
  %v2191 = vld [vmem:[%s2 + $0x100] sm:$0xf]
  %v2192 = vld [vmem:[%s2 + $0x108] sm:$0xf]
  %v2193 = vld [vmem:[%s2 + $0x110] sm:$0xf]
  %v2194 = vld [vmem:[%s2 + $0x118] sm:$0xf]
  %v2195 = vld [vmem:[%s2 + $0x120] sm:$0xf]
  %v2196 = vld [vmem:[%s2 + $0x128] sm:$0xf]
  %v2197 = vld [vmem:[%s2 + $0x130] sm:$0xf]
  %v2198 = vld [vmem:[%s2 + $0x138] sm:$0xf]
  %v2199 = vld [vmem:[%s2 + $0x140] sm:$0xf]
  %v2200 = vld [vmem:[%s2 + $0x148] sm:$0xf]
  %v2201 = vld [vmem:[%s2 + $0x150] sm:$0xf]
  %v2202 = vld [vmem:[%s2 + $0x158] sm:$0xf]
  %v2203 = vld [vmem:[%s2 + $0x160] sm:$0xf]
  %v2204 = vld [vmem:[%s2 + $0x168] sm:$0xf]
  %v2205 = vld [vmem:[%s2 + $0x170] sm:$0xf]
  %v2206 = vld [vmem:[%s2 + $0x178] sm:$0xf]
  %v2207 = vld [vmem:[%s2 + $0x180] sm:$0xf]
  %v2208 = vld [vmem:[%s2 + $0x188] sm:$0xf]
  %v2209 = vld [vmem:[%s2 + $0x190] sm:$0xf]
  %v2210 = vld [vmem:[%s2 + $0x198] sm:$0xf]
  %v2211 = vld [vmem:[%s2 + $0x1a0] sm:$0xf]
  %v2212 = vld [vmem:[%s2 + $0x1a8] sm:$0xf]
  %v2213 = vld [vmem:[%s2 + $0x1b0] sm:$0xf]
  %v2214 = vld [vmem:[%s2 + $0x1b8] sm:$0xf]
  %v2215 = vpack.c.bf16 %v2161, %v2159
  %v2216 = vpack.c.bf16 %v2162, %v2160
  %v2217 = vpack.c.bf16 %v2165, %v2163
  %v2218 = vpack.c.bf16 %v2166, %v2164
  %v2219 = vpack.c.bf16 %v2169, %v2167
  %v2220 = vpack.c.bf16 %v2170, %v2168
  %v2221 = vpack.c.bf16 %v2173, %v2171
  %v2222 = vpack.c.bf16 %v2174, %v2172
  %v2223 = vpack.c.bf16 %v2177, %v2175
  %v2224 = vpack.c.bf16 %v2178, %v2176
  %v2225 = vpack.c.bf16 %v2181, %v2179
  %v2226 = vpack.c.bf16 %v2182, %v2180
  %v2227 = vpack.c.bf16 %v2185, %v2183
  %v2228 = vpack.c.bf16 %v2186, %v2184
  %v2229 = vpack.c.bf16 %v2189, %v2187
  %v2230 = vpack.c.bf16 %v2190, %v2188
  %v2231 = vld [vmem:[%s3 + $0x6] ss:$0 sm:$0xff]
  %v2256 = vunpack.c.l.b16 %v2191
  %v2257 = vunpack.c.l.b16 %v2192
  %v2258 = vunpack.c.l.b16 %v2193
  %v2259 = vunpack.c.l.b16 %v2194
  %v2260 = vunpack.c.l.b16 %v2195
  %v2261 = vunpack.c.l.b16 %v2196
  %v2262 = vunpack.c.l.b16 %v2197
  %v2263 = vunpack.c.l.b16 %v2198
  %v2264 = vunpack.c.l.b16 %v2199
  %v2265 = vunpack.c.l.b16 %v2200
  %v2266 = vunpack.c.l.b16 %v2201
  %v2267 = vunpack.c.l.b16 %v2202
  %v2268 = vunpack.c.l.b16 %v2203
  %v2269 = vunpack.c.l.b16 %v2204
  %v2270 = vunpack.c.l.b16 %v2205
  %v2271 = vunpack.c.l.b16 %v2206
  %v2272 = vunpack.c.l.b16 %v2207
  %v2273 = vunpack.c.l.b16 %v2208
  %v2274 = vunpack.c.l.b16 %v2209
  %v2275 = vunpack.c.l.b16 %v2210
  %v2276 = vunpack.c.l.b16 %v2211
  %v2277 = vunpack.c.l.b16 %v2212
  %v2278 = vunpack.c.l.b16 %v2213
  %v2279 = vunpack.c.l.b16 %v2214
  %v2280 = vpack.c.b16 %v2257, %v2256
  %v2281 = vpack.c.b16 %v2259, %v2258
  %v2282 = vpack.c.b16 %v2261, %v2260
  %v2283 = vpack.c.b16 %v2263, %v2262
  %v2284 = vpack.c.b16 %v2265, %v2264
  %v2285 = vpack.c.b16 %v2267, %v2266
  %v2286 = vpack.c.b16 %v2269, %v2268
  %v2287 = vpack.c.b16 %v2271, %v2270
  %v2288 = vpack.c.b16 %v2273, %v2272
  %v2289 = vpack.c.b16 %v2275, %v2274
  %v2290 = vpack.c.b16 %v2277, %v2276
  %v2291 = vpack.c.b16 %v2279, %v2278
  %vm2304 = vcmask 523264
  %v2306 = vsel %vm2304, %v2216, 0
  %v2309 = vsel %vm2304, %v2218, 0
  %v2312 = vsel %vm2304, %v2220, 0
  %v2315 = vsel %vm2304, %v2222, 0
  %v2318 = vsel %vm2304, %v2224, 0
  %v2321 = vsel %vm2304, %v2226, 0
  %v2324 = vsel %vm2304, %v2228, 0
  %v2327 = vsel %vm2304, %v2230, 0
  %2329 = vmatprep.subr.bf16.mxu0 0
  %2330 = vmatpush1.bf16.msra.mxu0 %v2280
  %2331 = vmatprep.subr.bf16.mxu0 0
  %2332 = vmatpush1.bf16.msra.mxu0 %v2281
  %2333 = vmatprep.subr.bf16.mxu0 0
  %2334 = vmatpush1.bf16.msra.mxu0 %v2282
  %2335 = vmatprep.subr.bf16.mxu0 0
  %2336 = vmatpush1.bf16.msra.mxu0 %v2283
  %2337 = vmatprep.subr.bf16.mxu0 0
  %2338 = vmatpush1.bf16.msra.mxu0 %v2284
  %2339 = vmatprep.subr.bf16.mxu0 0
  %2340 = vmatpush1.bf16.msra.mxu0 %v2285
  %2341 = vmatprep.subr.bf16.mxu0 0
  %2342 = vmatpush1.bf16.msra.mxu0 %v2286
  %2343 = vmatprep.subr.bf16.mxu0 0
  %2344 = vmatpush1.bf16.msra.mxu0 %v2287
  %2345 = vmatprep.subr.bf16.mxu0 0
  %2346 = vmatpush1.bf16.msra.mxu0 %v2288
  %2347 = vmatprep.subr.bf16.mxu0 0
  %2348 = vmatpush1.bf16.msra.mxu0 %v2289
  %2349 = vmatprep.subr.bf16.mxu0 0
  %2350 = vmatpush1.bf16.msra.mxu0 %v2290
  %2351 = vmatprep.subr.bf16.mxu0 0
  %2352 = vmatpush1.bf16.msra.mxu0 %v2291
  %2353 = vmatprep.subr.bf16.mxu0 0
  %2354 = vmatpush1.bf16.msra.mxu0 0
  %2355 = vmatprep.subr.bf16.mxu0 0
  %2356 = vmatpush1.bf16.msra.mxu0 0
  %2357 = vmatprep.subr.bf16.mxu0 0
  %2358 = vmatpush1.bf16.msra.mxu0 0
  %2359 = vmatprep.subr.bf16.mxu0 0
  %2360 = vmatpush1.bf16.msra.mxu0 0
  %2361 = vmatprep.mubr.bf16.mxu0 %v2306
  %2362 = vmatmul.mubr.bf16.gmra.mrb[0].mxu0 %v2215
  %v2363 = vpop.f32.mrb[0].mxu0
  %v2364 = vadd.f32 %v2231, %v2363
  %v2365 = vpop.f32.mrb[0].mxu0
  %v2366 = vpop.f32.mrb[0].mxu0
  %v2367 = vadd.f32 %v2231, %v2366
  %v2368 = vpop.f32.mrb[0].mxu0
  %2369 = vmatprep.mubr.bf16.mxu0 %v2309
  %2370 = vmatmul.mubr.bf16.gmra.mrb[0].mxu0 %v2217
  %v2371 = vpop.f32.mrb[0].mxu0
  %v2372 = vadd.f32 %v2231, %v2371
  %v2373 = vpop.f32.mrb[0].mxu0
  %v2374 = vpop.f32.mrb[0].mxu0
  %v2375 = vadd.f32 %v2231, %v2374
  %v2376 = vpop.f32.mrb[0].mxu0
  %2377 = vmatprep.mubr.bf16.mxu0 %v2312
  %2378 = vmatmul.mubr.bf16.gmra.mrb[0].mxu0 %v2219
  %v2379 = vpop.f32.mrb[0].mxu0
  %v2380 = vadd.f32 %v2231, %v2379
  %v2381 = vpop.f32.mrb[0].mxu0
  %v2382 = vpop.f32.mrb[0].mxu0
  %v2383 = vadd.f32 %v2231, %v2382
  %v2384 = vpop.f32.mrb[0].mxu0
  %2385 = vmatprep.mubr.bf16.mxu0 %v2315
  %2386 = vmatmul.mubr.bf16.gmra.mrb[0].mxu0 %v2221
  %v2387 = vpop.f32.mrb[0].mxu0
  %v2388 = vadd.f32 %v2231, %v2387
  %v2389 = vpop.f32.mrb[0].mxu0
  %v2390 = vpop.f32.mrb[0].mxu0
  %v2391 = vadd.f32 %v2231, %v2390
  %v2392 = vpop.f32.mrb[0].mxu0
  %2393 = vmatprep.mubr.bf16.mxu0 %v2318
  %2394 = vmatmul.mubr.bf16.gmra.mrb[0].mxu0 %v2223
  %v2395 = vpop.f32.mrb[0].mxu0
  %v2396 = vadd.f32 %v2231, %v2395
  %v2397 = vpop.f32.mrb[0].mxu0
  %v2398 = vpop.f32.mrb[0].mxu0
  %v2399 = vadd.f32 %v2231, %v2398
  %v2400 = vpop.f32.mrb[0].mxu0
  %2401 = vmatprep.mubr.bf16.mxu0 %v2321
  %2402 = vmatmul.mubr.bf16.gmra.mrb[0].mxu0 %v2225
  %v2403 = vpop.f32.mrb[0].mxu0
  %v2404 = vadd.f32 %v2231, %v2403
  %v2405 = vpop.f32.mrb[0].mxu0
  %v2406 = vpop.f32.mrb[0].mxu0
  %v2407 = vadd.f32 %v2231, %v2406
  %v2408 = vpop.f32.mrb[0].mxu0
  %2409 = vmatprep.mubr.bf16.mxu0 %v2324
  %2410 = vmatmul.mubr.bf16.gmra.mrb[0].mxu0 %v2227
  %v2411 = vpop.f32.mrb[0].mxu0
  %v2412 = vadd.f32 %v2231, %v2411
  %v2413 = vpop.f32.mrb[0].mxu0
  %v2414 = vpop.f32.mrb[0].mxu0
  %v2415 = vadd.f32 %v2231, %v2414
  %v2416 = vpop.f32.mrb[0].mxu0
  %2417 = vmatprep.mubr.bf16.mxu0 %v2327
  %2418 = vmatmul.mubr.bf16.gmra.mrb[0].mxu0 %v2229
  %v2419 = vpop.f32.mrb[0].mxu0
  %v2420 = vadd.f32 %v2231, %v2419
  %v2421 = vpop.f32.mrb[0].mxu0
  %v2422 = vpop.f32.mrb[0].mxu0
  %v2423 = vadd.f32 %v2231, %v2422
  %v2424 = vpop.f32.mrb[0].mxu0
  %2425 = vdwg.mxu0
  %v2426 = vmax.f32 %v2364, 0.0
  %v2427 = vmax.f32 %v2367, 0.0
  %v2428 = vmax.f32 %v2372, 0.0
  %v2429 = vmax.f32 %v2375, 0.0
  %v2430 = vmax.f32 %v2380, 0.0
  %v2431 = vmax.f32 %v2383, 0.0
  %v2432 = vmax.f32 %v2388, 0.0
  %v2433 = vmax.f32 %v2391, 0.0
  %v2434 = vmax.f32 %v2396, 0.0
  %v2435 = vmax.f32 %v2399, 0.0
  %v2436 = vmax.f32 %v2404, 0.0
  %v2437 = vmax.f32 %v2407, 0.0
  %v2438 = vmax.f32 %v2412, 0.0
  %v2439 = vmax.f32 %v2415, 0.0
  %v2440 = vmax.f32 %v2420, 0.0
  %v2441 = vmax.f32 %v2423, 0.0
  %v2442 = vld [vmem:[%s2 + $0x1c0] sm:$0xf]
  %v2443 = vld [vmem:[%s2 + $0x1c8] sm:$0xf]
  %v2444 = vld [vmem:[%s2 + $0x1d0] sm:$0xf]
  %v2445 = vld [vmem:[%s2 + $0x1d8] sm:$0xf]
  %v2446 = vld [vmem:[%s2 + $0x1e0] sm:$0xf]
  %v2447 = vld [vmem:[%s2 + $0x1e8] sm:$0xf]
  %v2448 = vld [vmem:[%s2 + $0x1f0] sm:$0xf]
  %v2449 = vld [vmem:[%s2 + $0x1f8] sm:$0xf]
  %v2450 = vld [vmem:[%s2 + $0x200] sm:$0xf]
  %v2451 = vld [vmem:[%s2 + $0x208] sm:$0xf]
  %v2452 = vld [vmem:[%s2 + $0x210] sm:$0xf]
  %v2453 = vld [vmem:[%s2 + $0x218] sm:$0xf]
  %v2454 = vpack.c.bf16 %v2427, %v2426
  %v2455 = vpack.c.bf16 %v2429, %v2428
  %v2456 = vpack.c.bf16 %v2431, %v2430
  %v2457 = vpack.c.bf16 %v2433, %v2432
  %v2458 = vpack.c.bf16 %v2435, %v2434
  %v2459 = vpack.c.bf16 %v2437, %v2436
  %v2460 = vpack.c.bf16 %v2439, %v2438
  %v2461 = vpack.c.bf16 %v2441, %v2440
  %v2462 = vld [vmem:[%s3 + $0x7] ss:$0 sm:$0xff]
  %v2475 = vunpack.c.l.b16 %v2442
  %v2476 = vunpack.c.l.b16 %v2443
  %v2477 = vunpack.c.l.b16 %v2444
  %v2478 = vunpack.c.l.b16 %v2445
  %v2479 = vunpack.c.l.b16 %v2446
  %v2480 = vunpack.c.l.b16 %v2447
  %v2481 = vunpack.c.l.b16 %v2448
  %v2482 = vunpack.c.l.b16 %v2449
  %v2483 = vunpack.c.l.b16 %v2450
  %v2484 = vunpack.c.l.b16 %v2451
  %v2485 = vunpack.c.l.b16 %v2452
  %v2486 = vunpack.c.l.b16 %v2453
  %v2487 = vpack.c.b16 %v2476, %v2475
  %v2488 = vpack.c.b16 %v2478, %v2477
  %v2489 = vpack.c.b16 %v2480, %v2479
  %v2490 = vpack.c.b16 %v2482, %v2481
  %v2491 = vpack.c.b16 %v2484, %v2483
  %v2492 = vpack.c.b16 %v2486, %v2485
  %vm2499 = vcmask 785408
  %v2501 = vsel %vm2499, %v2454, 0
  %v2504 = vsel %vm2499, %v2455, 0
  %v2507 = vsel %vm2499, %v2456, 0
  %v2510 = vsel %vm2499, %v2457, 0
  %v2513 = vsel %vm2499, %v2458, 0
  %v2516 = vsel %vm2499, %v2459, 0
  %v2519 = vsel %vm2499, %v2460, 0
  %v2522 = vsel %vm2499, %v2461, 0
  %2524 = vmatprep.subr.bf16.mxu0 0
  %2525 = vmatpush1.bf16.msra.mxu0 %v2487
  %2526 = vmatprep.subr.bf16.mxu0 0
  %2527 = vmatpush1.bf16.msra.mxu0 %v2488
  %2528 = vmatprep.subr.bf16.mxu0 0
  %2529 = vmatpush1.bf16.msra.mxu0 %v2489
  %2530 = vmatprep.subr.bf16.mxu0 0
  %2531 = vmatpush1.bf16.msra.mxu0 %v2490
  %2532 = vmatprep.subr.bf16.mxu0 0
  %2533 = vmatpush1.bf16.msra.mxu0 %v2491
  %2534 = vmatprep.subr.bf16.mxu0 0
  %2535 = vmatpush1.bf16.msra.mxu0 %v2492
  %2536 = vmatprep.subr.bf16.mxu0 0
  %2537 = vmatpush1.bf16.msra.mxu0 0
  %2538 = vmatprep.subr.bf16.mxu0 0
  %2539 = vmatpush1.bf16.msra.mxu0 0
  %2540 = vmatprep.subr.bf16.mxu0 0
  %2541 = vmatpush1.bf16.msra.mxu0 0
  %2542 = vmatprep.subr.bf16.mxu0 0
  %2543 = vmatpush1.bf16.msra.mxu0 0
  %2544 = vmatprep.subr.bf16.mxu0 0
  %2545 = vmatpush1.bf16.msra.mxu0 0
  %2546 = vmatprep.subr.bf16.mxu0 0
  %2547 = vmatpush1.bf16.msra.mxu0 0
  %2548 = vmatprep.subr.bf16.mxu0 0
  %2549 = vmatpush1.bf16.msra.mxu0 0
  %2550 = vmatprep.subr.bf16.mxu0 0
  %2551 = vmatpush1.bf16.msra.mxu0 0
  %2552 = vmatprep.subr.bf16.mxu0 0
  %2553 = vmatpush1.bf16.msra.mxu0 0
  %2554 = vmatprep.subr.bf16.mxu0 0
  %2555 = vmatpush1.bf16.msra.mxu0 0
  %2556 = vmatprep.mubr.bf16.mxu0 0
  %2557 = vmatmul.mubr.bf16.gmra.mrb[0].mxu0 %v2501
  %v2558 = vpop.f32.mrb[0].mxu0
  %v2559 = vadd.f32 %v2462, %v2558
  %v2560 = vpop.f32.mrb[0].mxu0
  %v2561 = vpop.f32.mrb[0].mxu0
  %v2562 = vadd.f32 %v2462, %v2561
  %v2563 = vpop.f32.mrb[0].mxu0
  %2564 = vmatprep.mubr.bf16.mxu0 0
  %2565 = vmatmul.mubr.bf16.gmra.mrb[0].mxu0 %v2504
  %v2566 = vpop.f32.mrb[0].mxu0
  %v2567 = vadd.f32 %v2462, %v2566
  %v2568 = vpop.f32.mrb[0].mxu0
  %v2569 = vpop.f32.mrb[0].mxu0
  %v2570 = vadd.f32 %v2462, %v2569
  %v2571 = vpop.f32.mrb[0].mxu0
  %2572 = vmatprep.mubr.bf16.mxu0 0
  %2573 = vmatmul.mubr.bf16.gmra.mrb[0].mxu0 %v2507
  %v2574 = vpop.f32.mrb[0].mxu0
  %v2575 = vadd.f32 %v2462, %v2574
  %v2576 = vpop.f32.mrb[0].mxu0
  %v2577 = vpop.f32.mrb[0].mxu0
  %v2578 = vadd.f32 %v2462, %v2577
  %v2579 = vpop.f32.mrb[0].mxu0
  %2580 = vmatprep.mubr.bf16.mxu0 0
  %2581 = vmatmul.mubr.bf16.gmra.mrb[0].mxu0 %v2510
  %v2582 = vpop.f32.mrb[0].mxu0
  %v2583 = vadd.f32 %v2462, %v2582
  %v2584 = vpop.f32.mrb[0].mxu0
  %v2585 = vpop.f32.mrb[0].mxu0
  %v2586 = vadd.f32 %v2462, %v2585
  %v2587 = vpop.f32.mrb[0].mxu0
  %2588 = vmatprep.mubr.bf16.mxu0 0
  %2589 = vmatmul.mubr.bf16.gmra.mrb[0].mxu0 %v2513
  %v2590 = vpop.f32.mrb[0].mxu0
  %v2591 = vadd.f32 %v2462, %v2590
  %v2592 = vpop.f32.mrb[0].mxu0
  %v2593 = vpop.f32.mrb[0].mxu0
  %v2594 = vadd.f32 %v2462, %v2593
  %v2595 = vpop.f32.mrb[0].mxu0
  %2596 = vmatprep.mubr.bf16.mxu0 0
  %2597 = vmatmul.mubr.bf16.gmra.mrb[0].mxu0 %v2516
  %v2598 = vpop.f32.mrb[0].mxu0
  %v2599 = vadd.f32 %v2462, %v2598
  %v2600 = vpop.f32.mrb[0].mxu0
  %v2601 = vpop.f32.mrb[0].mxu0
  %v2602 = vadd.f32 %v2462, %v2601
  %v2603 = vpop.f32.mrb[0].mxu0
  %2604 = vmatprep.mubr.bf16.mxu0 0
  %2605 = vmatmul.mubr.bf16.gmra.mrb[0].mxu0 %v2519
  %v2606 = vpop.f32.mrb[0].mxu0
  %v2607 = vadd.f32 %v2462, %v2606
  %v2608 = vpop.f32.mrb[0].mxu0
  %v2609 = vpop.f32.mrb[0].mxu0
  %v2610 = vadd.f32 %v2462, %v2609
  %v2611 = vpop.f32.mrb[0].mxu0
  %2612 = vmatprep.mubr.bf16.mxu0 0
  %2613 = vmatmul.mubr.bf16.gmra.mrb[0].mxu0 %v2522
  %v2614 = vpop.f32.mrb[0].mxu0
  %v2615 = vadd.f32 %v2462, %v2614
  %v2616 = vpop.f32.mrb[0].mxu0
  %v2617 = vpop.f32.mrb[0].mxu0
  %v2618 = vadd.f32 %v2462, %v2617
  %v2619 = vpop.f32.mrb[0].mxu0
  %2620 = vdwg.mxu0
  %vm2621 = vcmask 130048
  %v2622 = vsel %vm2621, %v2559, -inf
  %2623 = vmax.xlane.f32.xlu0 %v2622
  %v2624 = vpop.xlane.xlu0 %2623
  %v2625 = vsel %vm2621, %v2562, -inf
  %2626 = vmax.xlane.f32.xlu0 %v2625
  %v2627 = vpop.xlane.xlu0 %2626
  %v2628 = vsel %vm2621, %v2567, -inf
  %2629 = vmax.xlane.f32.xlu0 %v2628
  %v2630 = vpop.xlane.xlu0 %2629
  %v2631 = vsel %vm2621, %v2570, -inf
  %2632 = vmax.xlane.f32.xlu0 %v2631
  %v2633 = vpop.xlane.xlu0 %2632
  %v2634 = vsel %vm2621, %v2575, -inf
  %2635 = vmax.xlane.f32.xlu0 %v2634
  %v2636 = vpop.xlane.xlu0 %2635
  %v2637 = vsel %vm2621, %v2578, -inf
  %2638 = vmax.xlane.f32.xlu0 %v2637
  %v2639 = vpop.xlane.xlu0 %2638
  %v2640 = vsel %vm2621, %v2583, -inf
  %2641 = vmax.xlane.f32.xlu0 %v2640
  %v2642 = vpop.xlane.xlu0 %2641
  %v2643 = vsel %vm2621, %v2586, -inf
  %2644 = vmax.xlane.f32.xlu0 %v2643
  %v2645 = vpop.xlane.xlu0 %2644
  %v2646 = vsel %vm2621, %v2591, -inf
  %2647 = vmax.xlane.f32.xlu0 %v2646
  %v2648 = vpop.xlane.xlu0 %2647
  %v2649 = vsel %vm2621, %v2594, -inf
  %2650 = vmax.xlane.f32.xlu0 %v2649
  %v2651 = vpop.xlane.xlu0 %2650
  %v2652 = vsel %vm2621, %v2599, -inf
  %2653 = vmax.xlane.f32.xlu0 %v2652
  %v2654 = vpop.xlane.xlu0 %2653
  %v2655 = vsel %vm2621, %v2602, -inf
  %2656 = vmax.xlane.f32.xlu0 %v2655
  %v2657 = vpop.xlane.xlu0 %2656
  %v2658 = vsel %vm2621, %v2607, -inf
  %2659 = vmax.xlane.f32.xlu0 %v2658
  %v2660 = vpop.xlane.xlu0 %2659
  %v2661 = vsel %vm2621, %v2610, -inf
  %2662 = vmax.xlane.f32.xlu0 %v2661
  %v2663 = vpop.xlane.xlu0 %2662
  %v2664 = vsel %vm2621, %v2615, -inf
  %2665 = vmax.xlane.f32.xlu0 %v2664
  %v2666 = vpop.xlane.xlu0 %2665
  %v2667 = vsel %vm2621, %v2618, -inf
  %2668 = vmax.xlane.f32.xlu0 %v2667
  %v2669 = vpop.xlane.xlu0 %2668
  %v2670 = vsub.f32 %v2559, %v2624
  %v2671 = vsub.f32 %v2562, %v2627
  %v2672 = vsub.f32 %v2567, %v2630
  %v2673 = vsub.f32 %v2570, %v2633
  %v2674 = vsub.f32 %v2575, %v2636
  %v2675 = vsub.f32 %v2578, %v2639
  %v2676 = vsub.f32 %v2583, %v2642
  %v2677 = vsub.f32 %v2586, %v2645
  %v2678 = vsub.f32 %v2591, %v2648
  %v2679 = vsub.f32 %v2594, %v2651
  %v2680 = vsub.f32 %v2599, %v2654
  %v2681 = vsub.f32 %v2602, %v2657
  %v2682 = vsub.f32 %v2607, %v2660
  %v2683 = vsub.f32 %v2610, %v2663
  %v2684 = vsub.f32 %v2615, %v2666
  %v2685 = vsub.f32 %v2618, %v2669
  %v2686 = vmul.f32 %v2670, 1.442695
  %v2687 = vpow.pop %v2686
  %v2688 = vmul.f32 %v2671, 1.442695
  %v2689 = vpow.pop %v2688
  %v2690 = vmul.f32 %v2672, 1.442695
  %v2691 = vpow.pop %v2690
  %v2692 = vmul.f32 %v2673, 1.442695
  %v2693 = vpow.pop %v2692
  %v2694 = vmul.f32 %v2674, 1.442695
  %v2695 = vpow.pop %v2694
  %v2696 = vmul.f32 %v2675, 1.442695
  %v2697 = vpow.pop %v2696
  %v2698 = vmul.f32 %v2676, 1.442695
  %v2699 = vpow.pop %v2698
  %v2700 = vmul.f32 %v2677, 1.442695
  %v2701 = vpow.pop %v2700
  %v2702 = vmul.f32 %v2678, 1.442695
  %v2703 = vpow.pop %v2702
  %v2704 = vmul.f32 %v2679, 1.442695
  %v2705 = vpow.pop %v2704
  %v2706 = vmul.f32 %v2680, 1.442695
  %v2707 = vpow.pop %v2706
  %v2708 = vmul.f32 %v2681, 1.442695
  %v2709 = vpow.pop %v2708
  %v2710 = vmul.f32 %v2682, 1.442695
  %v2711 = vpow.pop %v2710
  %v2712 = vmul.f32 %v2683, 1.442695
  %v2713 = vpow.pop %v2712
  %v2714 = vmul.f32 %v2684, 1.442695
  %v2715 = vpow.pop %v2714
  %v2716 = vmul.f32 %v2685, 1.442695
  %v2717 = vpow.pop %v2716
  %v2718 = vsel %vm2621, %v2687, 0.0
  %2719 = vadd.xlane.f32.xlu0 %v2718
  %v2720 = vpop.xlane.xlu0 %2719
  %v2721 = vsel %vm2621, %v2689, 0.0
  %2722 = vadd.xlane.f32.xlu0 %v2721
  %v2723 = vpop.xlane.xlu0 %2722
  %v2724 = vsel %vm2621, %v2691, 0.0
  %2725 = vadd.xlane.f32.xlu0 %v2724
  %v2726 = vpop.xlane.xlu0 %2725
  %v2727 = vsel %vm2621, %v2693, 0.0
  %2728 = vadd.xlane.f32.xlu0 %v2727
  %v2729 = vpop.xlane.xlu0 %2728
  %v2730 = vsel %vm2621, %v2695, 0.0
  %2731 = vadd.xlane.f32.xlu0 %v2730
  %v2732 = vpop.xlane.xlu0 %2731
  %v2733 = vsel %vm2621, %v2697, 0.0
  %2734 = vadd.xlane.f32.xlu0 %v2733
  %v2735 = vpop.xlane.xlu0 %2734
  %v2736 = vsel %vm2621, %v2699, 0.0
  %2737 = vadd.xlane.f32.xlu0 %v2736
  %v2738 = vpop.xlane.xlu0 %2737
  %v2739 = vsel %vm2621, %v2701, 0.0
  %2740 = vadd.xlane.f32.xlu0 %v2739
  %v2741 = vpop.xlane.xlu0 %2740
  %v2742 = vsel %vm2621, %v2703, 0.0
  %2743 = vadd.xlane.f32.xlu0 %v2742
  %v2744 = vpop.xlane.xlu0 %2743
  %v2745 = vsel %vm2621, %v2705, 0.0
  %2746 = vadd.xlane.f32.xlu0 %v2745
  %v2747 = vpop.xlane.xlu0 %2746
  %v2748 = vsel %vm2621, %v2707, 0.0
  %2749 = vadd.xlane.f32.xlu0 %v2748
  %v2750 = vpop.xlane.xlu0 %2749
  %v2751 = vsel %vm2621, %v2709, 0.0
  %2752 = vadd.xlane.f32.xlu0 %v2751
  %v2753 = vpop.xlane.xlu0 %2752
  %v2754 = vsel %vm2621, %v2711, 0.0
  %2755 = vadd.xlane.f32.xlu0 %v2754
  %v2756 = vpop.xlane.xlu0 %2755
  %v2757 = vsel %vm2621, %v2713, 0.0
  %2758 = vadd.xlane.f32.xlu0 %v2757
  %v2759 = vpop.xlane.xlu0 %2758
  %v2760 = vsel %vm2621, %v2715, 0.0
  %2761 = vadd.xlane.f32.xlu0 %v2760
  %v2762 = vpop.xlane.xlu0 %2761
  %v2763 = vsel %vm2621, %v2717, 0.0
  %2764 = vadd.xlane.f32.xlu0 %v2763
  %v2765 = vpop.xlane.xlu0 %2764
  %v2766 = vlog2.pop %v2720
  %v2767 = vmul.f32 %v2766, 0.6931472
  %v2768 = vlog2.pop %v2723
  %v2769 = vmul.f32 %v2768, 0.6931472
  %v2770 = vlog2.pop %v2726
  %v2771 = vmul.f32 %v2770, 0.6931472
  %v2772 = vlog2.pop %v2729
  %v2773 = vmul.f32 %v2772, 0.6931472
  %v2774 = vlog2.pop %v2732
  %v2775 = vmul.f32 %v2774, 0.6931472
  %v2776 = vlog2.pop %v2735
  %v2777 = vmul.f32 %v2776, 0.6931472
  %v2778 = vlog2.pop %v2738
  %v2779 = vmul.f32 %v2778, 0.6931472
  %v2780 = vlog2.pop %v2741
  %v2781 = vmul.f32 %v2780, 0.6931472
  %v2782 = vlog2.pop %v2744
  %v2783 = vmul.f32 %v2782, 0.6931472
  %v2784 = vlog2.pop %v2747
  %v2785 = vmul.f32 %v2784, 0.6931472
  %v2786 = vlog2.pop %v2750
  %v2787 = vmul.f32 %v2786, 0.6931472
  %v2788 = vlog2.pop %v2753
  %v2789 = vmul.f32 %v2788, 0.6931472
  %v2790 = vlog2.pop %v2756
  %v2791 = vmul.f32 %v2790, 0.6931472
  %v2792 = vlog2.pop %v2759
  %v2793 = vmul.f32 %v2792, 0.6931472
  %v2794 = vlog2.pop %v2762
  %v2795 = vmul.f32 %v2794, 0.6931472
  %v2796 = vlog2.pop %v2765
  %v2797 = vmul.f32 %v2796, 0.6931472
  %v2798 = vsub.f32 %v2670, %v2767
  %v2799 = vsub.f32 %v2671, %v2769
  %v2800 = vsub.f32 %v2672, %v2771
  %v2801 = vsub.f32 %v2673, %v2773
  %v2802 = vsub.f32 %v2674, %v2775
  %v2803 = vsub.f32 %v2675, %v2777
  %v2804 = vsub.f32 %v2676, %v2779
  %v2805 = vsub.f32 %v2677, %v2781
  %v2806 = vsub.f32 %v2678, %v2783
  %v2807 = vsub.f32 %v2679, %v2785
  %v2808 = vsub.f32 %v2680, %v2787
  %v2809 = vsub.f32 %v2681, %v2789
  %v2810 = vsub.f32 %v2682, %v2791
  %v2811 = vsub.f32 %v2683, %v2793
  %v2812 = vsub.f32 %v2684, %v2795
  %v2813 = vsub.f32 %v2685, %v2797
  %vm2814 = vcmask 261248
  %v2815 = vsel %vm2814, %v2559, -inf
  %2816 = vmax.xlane.f32.xlu0 %v2815
  %v2817 = vpop.xlane.xlu0 %2816
  %v2818 = vsel %vm2814, %v2562, -inf
  %2819 = vmax.xlane.f32.xlu0 %v2818
  %v2820 = vpop.xlane.xlu0 %2819
  %v2821 = vsel %vm2814, %v2567, -inf
  %2822 = vmax.xlane.f32.xlu0 %v2821
  %v2823 = vpop.xlane.xlu0 %2822
  %v2824 = vsel %vm2814, %v2570, -inf
  %2825 = vmax.xlane.f32.xlu0 %v2824
  %v2826 = vpop.xlane.xlu0 %2825
  %v2827 = vsel %vm2814, %v2575, -inf
  %2828 = vmax.xlane.f32.xlu0 %v2827
  %v2829 = vpop.xlane.xlu0 %2828
  %v2830 = vsel %vm2814, %v2578, -inf
  %2831 = vmax.xlane.f32.xlu0 %v2830
  %v2832 = vpop.xlane.xlu0 %2831
  %v2833 = vsel %vm2814, %v2583, -inf
  %2834 = vmax.xlane.f32.xlu0 %v2833
  %v2835 = vpop.xlane.xlu0 %2834
  %v2836 = vsel %vm2814, %v2586, -inf
  %2837 = vmax.xlane.f32.xlu0 %v2836
  %v2838 = vpop.xlane.xlu0 %2837
  %v2839 = vsel %vm2814, %v2591, -inf
  %2840 = vmax.xlane.f32.xlu0 %v2839
  %v2841 = vpop.xlane.xlu0 %2840
  %v2842 = vsel %vm2814, %v2594, -inf
  %2843 = vmax.xlane.f32.xlu0 %v2842
  %v2844 = vpop.xlane.xlu0 %2843
  %v2845 = vsel %vm2814, %v2599, -inf
  %2846 = vmax.xlane.f32.xlu0 %v2845
  %v2847 = vpop.xlane.xlu0 %2846
  %v2848 = vsel %vm2814, %v2602, -inf
  %2849 = vmax.xlane.f32.xlu0 %v2848
  %v2850 = vpop.xlane.xlu0 %2849
  %v2851 = vsel %vm2814, %v2607, -inf
  %2852 = vmax.xlane.f32.xlu0 %v2851
  %v2853 = vpop.xlane.xlu0 %2852
  %v2854 = vsel %vm2814, %v2610, -inf
  %2855 = vmax.xlane.f32.xlu0 %v2854
  %v2856 = vpop.xlane.xlu0 %2855
  %v2857 = vsel %vm2814, %v2615, -inf
  %2858 = vmax.xlane.f32.xlu0 %v2857
  %v2859 = vpop.xlane.xlu0 %2858
  %v2860 = vsel %vm2814, %v2618, -inf
  %2861 = vmax.xlane.f32.xlu0 %v2860
  %v2862 = vpop.xlane.xlu0 %2861
  %v2863 = vsub.f32 %v2559, %v2817
  %v2864 = vsub.f32 %v2562, %v2820
  %v2865 = vsub.f32 %v2567, %v2823
  %v2866 = vsub.f32 %v2570, %v2826
  %v2867 = vsub.f32 %v2575, %v2829
  %v2868 = vsub.f32 %v2578, %v2832
  %v2869 = vsub.f32 %v2583, %v2835
  %v2870 = vsub.f32 %v2586, %v2838
  %v2871 = vsub.f32 %v2591, %v2841
  %v2872 = vsub.f32 %v2594, %v2844
  %v2873 = vsub.f32 %v2599, %v2847
  %v2874 = vsub.f32 %v2602, %v2850
  %v2875 = vsub.f32 %v2607, %v2853
  %v2876 = vsub.f32 %v2610, %v2856
  %v2877 = vsub.f32 %v2615, %v2859
  %v2878 = vsub.f32 %v2618, %v2862
  %v2879 = vmul.f32 %v2863, 1.442695
  %v2880 = vpow.pop %v2879
  %v2881 = vmul.f32 %v2864, 1.442695
  %v2882 = vpow.pop %v2881
  %v2883 = vmul.f32 %v2865, 1.442695
  %v2884 = vpow.pop %v2883
  %v2885 = vmul.f32 %v2866, 1.442695
  %v2886 = vpow.pop %v2885
  %v2887 = vmul.f32 %v2867, 1.442695
  %v2888 = vpow.pop %v2887
  %v2889 = vmul.f32 %v2868, 1.442695
  %v2890 = vpow.pop %v2889
  %v2891 = vmul.f32 %v2869, 1.442695
  %v2892 = vpow.pop %v2891
  %v2893 = vmul.f32 %v2870, 1.442695
  %v2894 = vpow.pop %v2893
  %v2895 = vmul.f32 %v2871, 1.442695
  %v2896 = vpow.pop %v2895
  %v2897 = vmul.f32 %v2872, 1.442695
  %v2898 = vpow.pop %v2897
  %v2899 = vmul.f32 %v2873, 1.442695
  %v2900 = vpow.pop %v2899
  %v2901 = vmul.f32 %v2874, 1.442695
  %v2902 = vpow.pop %v2901
  %v2903 = vmul.f32 %v2875, 1.442695
  %v2904 = vpow.pop %v2903
  %v2905 = vmul.f32 %v2876, 1.442695
  %v2906 = vpow.pop %v2905
  %v2907 = vmul.f32 %v2877, 1.442695
  %v2908 = vpow.pop %v2907
  %v2909 = vmul.f32 %v2878, 1.442695
  %v2910 = vpow.pop %v2909
  %2927 = vrot.lane.b32.xlu0 %v2880, 112
  %v2928 = vpop.permute.xlu0 %2927
  %2929 = vrot.lane.b32.xlu0 %v2882, 112
  %v2930 = vpop.permute.xlu0 %2929
  %2931 = vrot.lane.b32.xlu0 %v2884, 112
  %v2932 = vpop.permute.xlu0 %2931
  %2933 = vrot.lane.b32.xlu0 %v2886, 112
  %v2934 = vpop.permute.xlu0 %2933
  %2935 = vrot.lane.b32.xlu0 %v2888, 112
  %v2936 = vpop.permute.xlu0 %2935
  %2937 = vrot.lane.b32.xlu0 %v2890, 112
  %v2938 = vpop.permute.xlu0 %2937
  %2939 = vrot.lane.b32.xlu0 %v2892, 112
  %v2940 = vpop.permute.xlu0 %2939
  %2941 = vrot.lane.b32.xlu0 %v2894, 112
  %v2942 = vpop.permute.xlu0 %2941
  %2943 = vrot.lane.b32.xlu0 %v2896, 112
  %v2944 = vpop.permute.xlu0 %2943
  %2945 = vrot.lane.b32.xlu0 %v2898, 112
  %v2946 = vpop.permute.xlu0 %2945
  %2947 = vrot.lane.b32.xlu0 %v2900, 112
  %v2948 = vpop.permute.xlu0 %2947
  %2949 = vrot.lane.b32.xlu0 %v2902, 112
  %v2950 = vpop.permute.xlu0 %2949
  %2951 = vrot.lane.b32.xlu0 %v2904, 112
  %v2952 = vpop.permute.xlu0 %2951
  %2953 = vrot.lane.b32.xlu0 %v2906, 112
  %v2954 = vpop.permute.xlu0 %2953
  %2955 = vrot.lane.b32.xlu0 %v2908, 112
  %v2956 = vpop.permute.xlu0 %2955
  %2957 = vrot.lane.b32.xlu0 %v2910, 112
  %v2958 = vpop.permute.xlu0 %2957
  %v2975 = vsel %vm2621, %v2928, 0.0
  %2976 = vadd.xlane.f32.xlu0 %v2975
  %v2977 = vpop.xlane.xlu0 %2976
  %v2978 = vsel %vm2621, %v2930, 0.0
  %2979 = vadd.xlane.f32.xlu0 %v2978
  %v2980 = vpop.xlane.xlu0 %2979
  %v2981 = vsel %vm2621, %v2932, 0.0
  %2982 = vadd.xlane.f32.xlu0 %v2981
  %v2983 = vpop.xlane.xlu0 %2982
  %v2984 = vsel %vm2621, %v2934, 0.0
  %2985 = vadd.xlane.f32.xlu0 %v2984
  %v2986 = vpop.xlane.xlu0 %2985
  %v2987 = vsel %vm2621, %v2936, 0.0
  %2988 = vadd.xlane.f32.xlu0 %v2987
  %v2989 = vpop.xlane.xlu0 %2988
  %v2990 = vsel %vm2621, %v2938, 0.0
  %2991 = vadd.xlane.f32.xlu0 %v2990
  %v2992 = vpop.xlane.xlu0 %2991
  %v2993 = vsel %vm2621, %v2940, 0.0
  %2994 = vadd.xlane.f32.xlu0 %v2993
  %v2995 = vpop.xlane.xlu0 %2994
  %v2996 = vsel %vm2621, %v2942, 0.0
  %2997 = vadd.xlane.f32.xlu0 %v2996
  %v2998 = vpop.xlane.xlu0 %2997
  %v2999 = vsel %vm2621, %v2944, 0.0
  %3000 = vadd.xlane.f32.xlu0 %v2999
  %v3001 = vpop.xlane.xlu0 %3000
  %v3002 = vsel %vm2621, %v2946, 0.0
  %3003 = vadd.xlane.f32.xlu0 %v3002
  %v3004 = vpop.xlane.xlu0 %3003
  %v3005 = vsel %vm2621, %v2948, 0.0
  %3006 = vadd.xlane.f32.xlu0 %v3005
  %v3007 = vpop.xlane.xlu0 %3006
  %v3008 = vsel %vm2621, %v2950, 0.0
  %3009 = vadd.xlane.f32.xlu0 %v3008
  %v3010 = vpop.xlane.xlu0 %3009
  %v3011 = vsel %vm2621, %v2952, 0.0
  %3012 = vadd.xlane.f32.xlu0 %v3011
  %v3013 = vpop.xlane.xlu0 %3012
  %v3014 = vsel %vm2621, %v2954, 0.0
  %3015 = vadd.xlane.f32.xlu0 %v3014
  %v3016 = vpop.xlane.xlu0 %3015
  %v3017 = vsel %vm2621, %v2956, 0.0
  %3018 = vadd.xlane.f32.xlu0 %v3017
  %v3019 = vpop.xlane.xlu0 %3018
  %v3020 = vsel %vm2621, %v2958, 0.0
  %3021 = vadd.xlane.f32.xlu0 %v3020
  %v3022 = vpop.xlane.xlu0 %3021
  %v3023 = vlog2.pop %v2977
  %v3024 = vmul.f32 %v3023, 0.6931472
  %v3025 = vlog2.pop %v2980
  %v3026 = vmul.f32 %v3025, 0.6931472
  %v3027 = vlog2.pop %v2983
  %v3028 = vmul.f32 %v3027, 0.6931472
  %v3029 = vlog2.pop %v2986
  %v3030 = vmul.f32 %v3029, 0.6931472
  %v3031 = vlog2.pop %v2989
  %v3032 = vmul.f32 %v3031, 0.6931472
  %v3033 = vlog2.pop %v2992
  %v3034 = vmul.f32 %v3033, 0.6931472
  %v3035 = vlog2.pop %v2995
  %v3036 = vmul.f32 %v3035, 0.6931472
  %v3037 = vlog2.pop %v2998
  %v3038 = vmul.f32 %v3037, 0.6931472
  %v3039 = vlog2.pop %v3001
  %v3040 = vmul.f32 %v3039, 0.6931472
  %v3041 = vlog2.pop %v3004
  %v3042 = vmul.f32 %v3041, 0.6931472
  %v3043 = vlog2.pop %v3007
  %v3044 = vmul.f32 %v3043, 0.6931472
  %v3045 = vlog2.pop %v3010
  %v3046 = vmul.f32 %v3045, 0.6931472
  %v3047 = vlog2.pop %v3013
  %v3048 = vmul.f32 %v3047, 0.6931472
  %v3049 = vlog2.pop %v3016
  %v3050 = vmul.f32 %v3049, 0.6931472
  %v3051 = vlog2.pop %v3019
  %v3052 = vmul.f32 %v3051, 0.6931472
  %v3053 = vlog2.pop %v3022
  %v3054 = vmul.f32 %v3053, 0.6931472
  %v3055 = vsub.f32 %v2863, %v3024
  %v3056 = vsub.f32 %v2864, %v3026
  %v3057 = vsub.f32 %v2865, %v3028
  %v3058 = vsub.f32 %v2866, %v3030
  %v3059 = vsub.f32 %v2867, %v3032
  %v3060 = vsub.f32 %v2868, %v3034
  %v3061 = vsub.f32 %v2869, %v3036
  %v3062 = vsub.f32 %v2870, %v3038
  %v3063 = vsub.f32 %v2871, %v3040
  %v3064 = vsub.f32 %v2872, %v3042
  %v3065 = vsub.f32 %v2873, %v3044
  %v3066 = vsub.f32 %v2874, %v3046
  %v3067 = vsub.f32 %v2875, %v3048
  %v3068 = vsub.f32 %v2876, %v3050
  %v3069 = vsub.f32 %v2877, %v3052
  %v3070 = vsub.f32 %v2878, %v3054
  %v3071 = vtanh.pop %v2559
  %v3072 = vtanh.pop %v2562
  %v3073 = vtanh.pop %v2567
  %v3074 = vtanh.pop %v2570
  %v3075 = vtanh.pop %v2575
  %v3076 = vtanh.pop %v2578
  %v3077 = vtanh.pop %v2583
  %v3078 = vtanh.pop %v2586
  %v3079 = vtanh.pop %v2591
  %v3080 = vtanh.pop %v2594
  %v3081 = vtanh.pop %v2599
  %v3082 = vtanh.pop %v2602
  %v3083 = vtanh.pop %v2607
  %v3084 = vtanh.pop %v2610
  %v3085 = vtanh.pop %v2615
  %v3086 = vtanh.pop %v2618
  %v3087 = vsel %vm2621, %v2798, %v3055
  %v3088 = vsel %vm2621, %v2799, %v3056
  %v3089 = vsel %vm2621, %v2800, %v3057
  %v3090 = vsel %vm2621, %v2801, %v3058
  %v3091 = vsel %vm2621, %v2802, %v3059
  %v3092 = vsel %vm2621, %v2803, %v3060
  %v3093 = vsel %vm2621, %v2804, %v3061
  %v3094 = vsel %vm2621, %v2805, %v3062
  %v3095 = vsel %vm2621, %v2806, %v3063
  %v3096 = vsel %vm2621, %v2807, %v3064
  %v3097 = vsel %vm2621, %v2808, %v3065
  %v3098 = vsel %vm2621, %v2809, %v3066
  %v3099 = vsel %vm2621, %v2810, %v3067
  %v3100 = vsel %vm2621, %v2811, %v3068
  %v3101 = vsel %vm2621, %v2812, %v3069
  %v3102 = vsel %vm2621, %v2813, %v3070
  %v3103 = vld [vmem:[%s3 + $0x10] sm:$0xff]
  %v3104 = vld [vmem:[%s3 + $0x18] sm:$0xff]
  %v3105 = vld [vmem:[%s3 + $0x20] sm:$0xff]
  %v3106 = vld [vmem:[%s3 + $0x28] sm:$0xff]
  %v3107 = vld [vmem:[%s3 + $0x30] sm:$0xff]
  %v3108 = vld [vmem:[%s3 + $0x38] sm:$0xff]
  %v3109 = vld [vmem:[%s3 + $0x40] sm:$0xff]
  %v3110 = vld [vmem:[%s3 + $0x48] sm:$0xff]
  %vm3111 = vcmask 261120
  %v3113 = vsel %vm3111, %v3087, 0
  %v3116 = vsel %vm3111, %v3088, 0
  %v3119 = vsel %vm3111, %v3089, 0
  %v3122 = vsel %vm3111, %v3090, 0
  %v3125 = vsel %vm3111, %v3091, 0
  %v3128 = vsel %vm3111, %v3092, 0
  %v3131 = vsel %vm3111, %v3093, 0
  %v3134 = vsel %vm3111, %v3094, 0
  %v3137 = vsel %vm3111, %v3095, 0
  %v3140 = vsel %vm3111, %v3096, 0
  %v3143 = vsel %vm3111, %v3097, 0
  %v3146 = vsel %vm3111, %v3098, 0
  %v3149 = vsel %vm3111, %v3099, 0
  %v3152 = vsel %vm3111, %v3100, 0
  %v3155 = vsel %vm3111, %v3101, 0
  %v3158 = vsel %vm3111, %v3102, 0
  %3160 = vmatprep.subr.mxu0 %v3104
  %3161 = vmatpush1.msra.mxu0 %v3103
  %3162 = vmatprep.subr.mxu0 %v3106
  %3163 = vmatpush1.msra.mxu0 %v3105
  %3164 = vmatprep.subr.mxu0 %v3108
  %3165 = vmatpush1.msra.mxu0 %v3107
  %3166 = vmatprep.subr.mxu0 %v3110
  %3167 = vmatpush1.msra.mxu0 %v3109
  %3168 = vmatprep.subr.mxu0 0.0
  %3169 = vmatpush1.msra.mxu0 0.0
  %3170 = vmatprep.subr.mxu0 0.0
  %3171 = vmatpush1.msra.mxu0 0.0
  %3172 = vmatprep.subr.mxu0 0.0
  %3173 = vmatpush1.msra.mxu0 0.0
  %3174 = vmatprep.subr.mxu0 0.0
  %3175 = vmatpush1.msra.mxu0 0.0
  %3176 = vmatprep.subr.mxu0 0.0
  %3177 = vmatpush1.msra.mxu0 0.0
  %3178 = vmatprep.subr.mxu0 0.0
  %3179 = vmatpush1.msra.mxu0 0.0
  %3180 = vmatprep.subr.mxu0 0.0
  %3181 = vmatpush1.msra.mxu0 0.0
  %3182 = vmatprep.subr.mxu0 0.0
  %3183 = vmatpush1.msra.mxu0 0.0
  %3184 = vmatprep.subr.mxu0 0.0
  %3185 = vmatpush1.msra.mxu0 0.0
  %3186 = vmatprep.subr.mxu0 0.0
  %3187 = vmatpush1.msra.mxu0 0.0
  %3188 = vmatprep.subr.mxu0 0.0
  %3189 = vmatpush1.msra.mxu0 0.0
  %3190 = vmatprep.subr.mxu0 0.0
  %3191 = vmatpush1.msra.mxu0 0.0
  %3192 = vmatprep.subr.mxu0 0.0
  %3193 = vmatpush1.msra.mxu0 0.0
  %3194 = vmatprep.subr.mxu0 0.0
  %3195 = vmatpush1.msra.mxu0 0.0
  %3196 = vmatprep.subr.mxu0 0.0
  %3197 = vmatpush1.msra.mxu0 0.0
  %3198 = vmatprep.subr.mxu0 0.0
  %3199 = vmatpush1.msra.mxu0 0.0
  %3200 = vmatprep.subr.mxu0 0.0
  %3201 = vmatpush1.msra.mxu0 0.0
  %3202 = vmatprep.subr.mxu0 0.0
  %3203 = vmatpush1.msra.mxu0 0.0
  %3204 = vmatprep.subr.mxu0 0.0
  %3205 = vmatpush1.msra.mxu0 0.0
  %3206 = vmatprep.subr.mxu0 0.0
  %3207 = vmatpush1.msra.mxu0 0.0
  %3208 = vmatprep.subr.mxu0 0.0
  %3209 = vmatpush1.msra.mxu0 0.0
  %3210 = vmatprep.subr.mxu0 0.0
  %3211 = vmatpush1.msra.mxu0 0.0
  %3212 = vmatprep.subr.mxu0 0.0
  %3213 = vmatpush1.msra.mxu0 0.0
  %3214 = vmatprep.subr.mxu0 0.0
  %3215 = vmatpush1.msra.mxu0 0.0
  %3216 = vmatprep.subr.mxu0 0.0
  %3217 = vmatpush1.msra.mxu0 0.0
  %3218 = vmatprep.subr.mxu0 0.0
  %3219 = vmatpush1.msra.mxu0 0.0
  %3220 = vmatprep.subr.mxu0 0.0
  %3221 = vmatpush1.msra.mxu0 0.0
  %3222 = vmatprep.subr.mxu0 0.0
  %3223 = vmatpush1.msra.mxu0 0.0
  %3224 = vmatprep.mubr.f32.mxu0 0.0
  %3225 = vmatmul.mubr.f32.gmra.mrb[0].mxu0 %v3113
  %v3226 = vpop.f32.mrb[0].mxu0
  %v3227 = vadd.f32 0.0, %v3226
  %v3228 = vpop.f32.mrb[0].mxu0
  %v3229 = vadd.f32 0.0, %v3228
  %3230 = vmatprep.mubr.f32.mxu0 0.0
  %3231 = vmatmul.mubr.f32.gmra.mrb[0].mxu0 %v3116
  %v3232 = vpop.f32.mrb[0].mxu0
  %v3233 = vadd.f32 0.0, %v3232
  %v3234 = vpop.f32.mrb[0].mxu0
  %v3235 = vadd.f32 0.0, %v3234
  %3236 = vmatprep.mubr.f32.mxu0 0.0
  %3237 = vmatmul.mubr.f32.gmra.mrb[0].mxu0 %v3119
  %v3238 = vpop.f32.mrb[0].mxu0
  %v3239 = vadd.f32 0.0, %v3238
  %v3240 = vpop.f32.mrb[0].mxu0
  %v3241 = vadd.f32 0.0, %v3240
  %3242 = vmatprep.mubr.f32.mxu0 0.0
  %3243 = vmatmul.mubr.f32.gmra.mrb[0].mxu0 %v3122
  %v3244 = vpop.f32.mrb[0].mxu0
  %v3245 = vadd.f32 0.0, %v3244
  %v3246 = vpop.f32.mrb[0].mxu0
  %v3247 = vadd.f32 0.0, %v3246
  %3248 = vmatprep.mubr.f32.mxu0 0.0
  %3249 = vmatmul.mubr.f32.gmra.mrb[0].mxu0 %v3125
  %v3250 = vpop.f32.mrb[0].mxu0
  %v3251 = vadd.f32 0.0, %v3250
  %v3252 = vpop.f32.mrb[0].mxu0
  %v3253 = vadd.f32 0.0, %v3252
  %3254 = vmatprep.mubr.f32.mxu0 0.0
  %3255 = vmatmul.mubr.f32.gmra.mrb[0].mxu0 %v3128
  %v3256 = vpop.f32.mrb[0].mxu0
  %v3257 = vadd.f32 0.0, %v3256
  %v3258 = vpop.f32.mrb[0].mxu0
  %v3259 = vadd.f32 0.0, %v3258
  %3260 = vmatprep.mubr.f32.mxu0 0.0
  %3261 = vmatmul.mubr.f32.gmra.mrb[0].mxu0 %v3131
  %v3262 = vpop.f32.mrb[0].mxu0
  %v3263 = vadd.f32 0.0, %v3262
  %v3264 = vpop.f32.mrb[0].mxu0
  %v3265 = vadd.f32 0.0, %v3264
  %3266 = vmatprep.mubr.f32.mxu0 0.0
  %3267 = vmatmul.mubr.f32.gmra.mrb[0].mxu0 %v3134
  %v3268 = vpop.f32.mrb[0].mxu0
  %v3269 = vadd.f32 0.0, %v3268
  %v3270 = vpop.f32.mrb[0].mxu0
  %v3271 = vadd.f32 0.0, %v3270
  %3272 = vmatprep.mubr.f32.mxu0 0.0
  %3273 = vmatmul.mubr.f32.gmra.mrb[0].mxu0 %v3137
  %v3274 = vpop.f32.mrb[0].mxu0
  %v3275 = vadd.f32 0.0, %v3274
  %v3276 = vpop.f32.mrb[0].mxu0
  %v3277 = vadd.f32 0.0, %v3276
  %3278 = vmatprep.mubr.f32.mxu0 0.0
  %3279 = vmatmul.mubr.f32.gmra.mrb[0].mxu0 %v3140
  %v3280 = vpop.f32.mrb[0].mxu0
  %v3281 = vadd.f32 0.0, %v3280
  %v3282 = vpop.f32.mrb[0].mxu0
  %v3283 = vadd.f32 0.0, %v3282
  %3284 = vmatprep.mubr.f32.mxu0 0.0
  %3285 = vmatmul.mubr.f32.gmra.mrb[0].mxu0 %v3143
  %v3286 = vpop.f32.mrb[0].mxu0
  %v3287 = vadd.f32 0.0, %v3286
  %v3288 = vpop.f32.mrb[0].mxu0
  %v3289 = vadd.f32 0.0, %v3288
  %3290 = vmatprep.mubr.f32.mxu0 0.0
  %3291 = vmatmul.mubr.f32.gmra.mrb[0].mxu0 %v3146
  %v3292 = vpop.f32.mrb[0].mxu0
  %v3293 = vadd.f32 0.0, %v3292
  %v3294 = vpop.f32.mrb[0].mxu0
  %v3295 = vadd.f32 0.0, %v3294
  %3296 = vmatprep.mubr.f32.mxu0 0.0
  %3297 = vmatmul.mubr.f32.gmra.mrb[0].mxu0 %v3149
  %v3298 = vpop.f32.mrb[0].mxu0
  %v3299 = vadd.f32 0.0, %v3298
  %v3300 = vpop.f32.mrb[0].mxu0
  %v3301 = vadd.f32 0.0, %v3300
  %3302 = vmatprep.mubr.f32.mxu0 0.0
  %3303 = vmatmul.mubr.f32.gmra.mrb[0].mxu0 %v3152
  %v3304 = vpop.f32.mrb[0].mxu0
  %v3305 = vadd.f32 0.0, %v3304
  %v3306 = vpop.f32.mrb[0].mxu0
  %v3307 = vadd.f32 0.0, %v3306
  %3308 = vmatprep.mubr.f32.mxu0 0.0
  %3309 = vmatmul.mubr.f32.gmra.mrb[0].mxu0 %v3155
  %v3310 = vpop.f32.mrb[0].mxu0
  %v3311 = vadd.f32 0.0, %v3310
  %v3312 = vpop.f32.mrb[0].mxu0
  %v3313 = vadd.f32 0.0, %v3312
  %3314 = vmatprep.mubr.f32.mxu0 0.0
  %3315 = vmatmul.mubr.f32.gmra.mrb[0].mxu0 %v3158
  %v3316 = vpop.f32.mrb[0].mxu0
  %v3317 = vadd.f32 0.0, %v3316
  %v3318 = vpop.f32.mrb[0].mxu0
  %v3319 = vadd.f32 0.0, %v3318
  %3320 = vdwg.mxu0
  %3321 = vst [vmem:[%s4] sm:$0xff] %v3227
  %3322 = vst [vmem:[%s4 + $0x8] sm:$0xff] %v3229
  %3323 = vst [vmem:[%s4 + $0x10] sm:$0xff] %v3233
  %3324 = vst [vmem:[%s4 + $0x18] sm:$0xff] %v3235
  %3325 = vst [vmem:[%s4 + $0x20] sm:$0xff] %v3239
  %3326 = vst [vmem:[%s4 + $0x28] sm:$0xff] %v3241
  %3327 = vst [vmem:[%s4 + $0x30] sm:$0xff] %v3245
  %3328 = vst [vmem:[%s4 + $0x38] sm:$0xff] %v3247
  %3329 = vst [vmem:[%s4 + $0x40] sm:$0xff] %v3251
  %3330 = vst [vmem:[%s4 + $0x48] sm:$0xff] %v3253
  %3331 = vst [vmem:[%s4 + $0x50] sm:$0xff] %v3257
  %3332 = vst [vmem:[%s4 + $0x58] sm:$0xff] %v3259
  %3333 = vst [vmem:[%s4 + $0x60] sm:$0xff] %v3263
  %3334 = vst [vmem:[%s4 + $0x68] sm:$0xff] %v3265
  %3335 = vst [vmem:[%s4 + $0x70] sm:$0xff] %v3269
  %3336 = vst [vmem:[%s4 + $0x78] sm:$0xff] %v3271
  %3337 = vst [vmem:[%s4 + $0x80] sm:$0xff] %v3275
  %3338 = vst [vmem:[%s4 + $0x88] sm:$0xff] %v3277
  %3339 = vst [vmem:[%s4 + $0x90] sm:$0xff] %v3281
  %3340 = vst [vmem:[%s4 + $0x98] sm:$0xff] %v3283
  %3341 = vst [vmem:[%s4 + $0xa0] sm:$0xff] %v3287
  %3342 = vst [vmem:[%s4 + $0xa8] sm:$0xff] %v3289
  %3343 = vst [vmem:[%s4 + $0xb0] sm:$0xff] %v3293
  %3344 = vst [vmem:[%s4 + $0xb8] sm:$0xff] %v3295
  %3345 = vst [vmem:[%s4 + $0xc0] sm:$0xff] %v3299
  %3346 = vst [vmem:[%s4 + $0xc8] sm:$0xff] %v3301
  %3347 = vst [vmem:[%s4 + $0xd0] sm:$0xff] %v3305
  %3348 = vst [vmem:[%s4 + $0xd8] sm:$0xff] %v3307
  %3349 = vst [vmem:[%s4 + $0xe0] sm:$0xff] %v3311
  %3350 = vst [vmem:[%s4 + $0xe8] sm:$0xff] %v3313
  %3351 = vst [vmem:[%s4 + $0xf0] sm:$0xff] %v3317
  %3352 = vst [vmem:[%s4 + $0xf8] sm:$0xff] %v3319
  %3369 = vrot.lane.b32.xlu0 %v3071, 96
  %v3370 = vpop.permute.xlu0 %3369
  %3371 = vrot.lane.b32.xlu0 %v3072, 96
  %v3372 = vpop.permute.xlu0 %3371
  %3373 = vrot.lane.b32.xlu0 %v3073, 96
  %v3374 = vpop.permute.xlu0 %3373
  %3375 = vrot.lane.b32.xlu0 %v3074, 96
  %v3376 = vpop.permute.xlu0 %3375
  %3377 = vrot.lane.b32.xlu0 %v3075, 96
  %v3378 = vpop.permute.xlu0 %3377
  %3379 = vrot.lane.b32.xlu0 %v3076, 96
  %v3380 = vpop.permute.xlu0 %3379
  %3381 = vrot.lane.b32.xlu0 %v3077, 96
  %v3382 = vpop.permute.xlu0 %3381
  %3383 = vrot.lane.b32.xlu0 %v3078, 96
  %v3384 = vpop.permute.xlu0 %3383
  %3385 = vrot.lane.b32.xlu0 %v3079, 96
  %v3386 = vpop.permute.xlu0 %3385
  %3387 = vrot.lane.b32.xlu0 %v3080, 96
  %v3388 = vpop.permute.xlu0 %3387
  %3389 = vrot.lane.b32.xlu0 %v3081, 96
  %v3390 = vpop.permute.xlu0 %3389
  %3391 = vrot.lane.b32.xlu0 %v3082, 96
  %v3392 = vpop.permute.xlu0 %3391
  %3393 = vrot.lane.b32.xlu0 %v3083, 96
  %v3394 = vpop.permute.xlu0 %3393
  %3395 = vrot.lane.b32.xlu0 %v3084, 96
  %v3396 = vpop.permute.xlu0 %3395
  %3397 = vrot.lane.b32.xlu0 %v3085, 96
  %v3398 = vpop.permute.xlu0 %3397
  %3399 = vrot.lane.b32.xlu0 %v3086, 96
  %v3400 = vpop.permute.xlu0 %3399
  %vm3417 = vcmask 7168
  %3418 = vst.msk [vmem:[%s5] sm:$0xff] %vm3417, %v3370
  %3419 = vst.msk [vmem:[%s5 + $0x8] sm:$0xff] %vm3417, %v3372
  %3420 = vst.msk [vmem:[%s5 + $0x10] sm:$0xff] %vm3417, %v3374
  %3421 = vst.msk [vmem:[%s5 + $0x18] sm:$0xff] %vm3417, %v3376
  %3422 = vst.msk [vmem:[%s5 + $0x20] sm:$0xff] %vm3417, %v3378
  %3423 = vst.msk [vmem:[%s5 + $0x28] sm:$0xff] %vm3417, %v3380
  %3424 = vst.msk [vmem:[%s5 + $0x30] sm:$0xff] %vm3417, %v3382
  %3425 = vst.msk [vmem:[%s5 + $0x38] sm:$0xff] %vm3417, %v3384
  %3426 = vst.msk [vmem:[%s5 + $0x40] sm:$0xff] %vm3417, %v3386
  %3427 = vst.msk [vmem:[%s5 + $0x48] sm:$0xff] %vm3417, %v3388
  %3428 = vst.msk [vmem:[%s5 + $0x50] sm:$0xff] %vm3417, %v3390
  %3429 = vst.msk [vmem:[%s5 + $0x58] sm:$0xff] %vm3417, %v3392
  %3430 = vst.msk [vmem:[%s5 + $0x60] sm:$0xff] %vm3417, %v3394
  %3431 = vst.msk [vmem:[%s5 + $0x68] sm:$0xff] %vm3417, %v3396
  %3432 = vst.msk [vmem:[%s5 + $0x70] sm:$0xff] %vm3417, %v3398
  %3433 = vst.msk [vmem:[%s5 + $0x78] sm:$0xff] %vm3417, %v3400
  // Predicated region
  $region18: #{model_forward.1} parent=0 // pred_check
    _
  $region19: #{model_forward.1} parent=0 // pred_check_branch
    %3435 = sbr.rel (0) target = $region21
  $region20: #{model_forward.1} parent=0 // pred_region
    _
  $region21: #{model_forward.1} parent=0 // pred_fallthru
    _
  // Predicated region
  $region22: #{model_forward.1} parent=0 // pred_check
    _
  $region23: #{model_forward.1} parent=0 // pred_check_branch
    %3437 = sbr.rel (0) target = $region25
  $region24: #{model_forward.1} parent=0 // pred_region
    _
  $region25: #{model_forward.1} parent=0 // pred_fallthru
    _
  // Predicated region
  $region26: #{model_forward.1} parent=0 // pred_check
    _
  $region27: #{model_forward.1} parent=0 // pred_check_branch
    %3439 = sbr.rel (0) target = $region29
  $region28: #{model_forward.1} parent=0 // pred_region
    _
  $region29: #{model_forward.1} parent=0 // pred_fallthru
    _
  // Predicated region
  $region30: #{model_forward.1} parent=0 // pred_check
    _
  $region31: #{model_forward.1} parent=0 // pred_check_branch
    %3441 = sbr.rel (0) target = $region33
  $region32: #{model_forward.1} parent=0 // pred_region
    _
  $region33: #{model_forward.1} parent=0 // pred_fallthru
    _

</llo_original>
